<compile_context>
chip_gen: v7x
topology: tpu7x:2x2x1
jax: 0.10.0
libtpu: 0.0.40
codegen_flags: <defaults>
</compile_context>

<pallas_src>
import functools

import numpy as np

import jax
import jax.numpy as jnp
from jax.experimental import pallas as pl
from jax.experimental.pallas import tpu as pltpu


# --------------------------------- kernel --------------------------------- #
def _compose_kernel(key_ref, query_ref, mk_ref, mq_ref, out_ref):
    """One grid step = `cb` flattened (b, c) planes.

    key_ref / query_ref : (1, cb, H*W)    flattened input planes (lane-dense rows)
    mk_ref              : (H*W, k*k*L)    one-hot: column g -> key-unfold flat element g
    mq_ref              : (H*W, k*k*L)    one-hot: column g -> scrambled centre tap of row g//k^2
    out_ref             : (1, cb, k*k*L)  final module output rows (lane-dense)
    """
    # One batched MXU dot per side covers every channel of the block.  The
    # selectors are one-hot, so the "matmul" is an exact gather; the all-zero
    # columns realise torch.nn.Unfold's zero padding.
    k_flat = jnp.dot(key_ref[0], mk_ref[...], preferred_element_type=jnp.float32)
    q_tap = jnp.dot(query_ref[0], mq_ref[...], preferred_element_type=jnp.float32)
    # Fused epilogue: the broadcasted centre-tap multiply happens here, so the
    # wrapper's reshape to (B, C, L, k*k) is a free row-major reinterpretation.
    out_ref[0] = (k_flat * q_tap).astype(out_ref.dtype)


# --------------------------- selector construction ------------------------- #
def _unfold_src_rowcol(g, *, k, padding, stride, L, ow):
    """(row, col) in the *unpadded* input read by flat element g of one
    per-channel unfold block (g = p * L + m: p = kernel tap, m = out position).
    Out-of-range row/col means the tap lands in the zero padding."""
    p, m = g // L, g % L
    i, j = p // k, p % k
    r, c = m // ow, m % ow
    return i + r * stride - padding, j + c * stride - padding


def _build_selectors(*, k, padding, stride, H, W, oh, ow):
    """One-hot (H*W, k*k*L) gather matrices for the key / query sides."""
    kk, L, HW = k * k, oh * ow, H * W
    G = kk * L
    g = np.arange(G)

    # Key side: flat element g of the unfold block == scrambled view (l, q) with
    # g = l*kk + q (raw row-major reinterpretation, as in torch's .view).
    k_row, k_col = _unfold_src_rowcol(g, k=k, padding=padding, stride=stride, L=L, ow=ow)
    # Query side: centre tap of the scrambled view row l = g // kk,
    # i.e. flat unfold element l*kk + kk//2.
    g_ctr = (g // kk) * kk + kk // 2
    q_row, q_col = _unfold_src_rowcol(g_ctr, k=k, padding=padding, stride=stride, L=L, ow=ow)

    def onehot(rows, cols):
        m = np.zeros((HW, G), np.float32)
        ok = (rows >= 0) & (rows < H) & (cols >= 0) & (cols < W)
        m[(rows * W + cols)[ok], g[ok]] = 1.0      # all-zero column == padded tap
        return m

    return onehot(k_row, k_col), onehot(q_row, q_col)


# ----------------------- pure-XLA reference / fallback ---------------------- #
def _torch_unfold_ref(x, k, padding, stride):
    B, C, H, W = x.shape
    xp = jnp.pad(x, ((0, 0), (0, 0), (padding, padding), (padding, padding)))
    out_h = (H + 2 * padding - k) // stride + 1
    out_w = (W + 2 * padding - k) // stride + 1
    cols = []
    for i in range(k):
        for j in range(k):
            cols.append(xp[:, :,
                           i:i + (out_h - 1) * stride + 1:stride,
                           j:j + (out_w - 1) * stride + 1:stride])
    patches = jnp.stack(cols, axis=2)                    # (B, C, k*k, oh, ow)
    return patches.reshape(B, C * k * k, out_h * out_w)  # torch.nn.Unfold output


def appearance_composability_ref(key_map, query_map, *, k, padding, stride):
    B, C = key_map.shape[0], key_map.shape[1]
    ku = _torch_unfold_ref(key_map, k, padding, stride)
    qu = _torch_unfold_ref(query_map, k, padding, stride)
    ku = ku.reshape(B, C, -1, ku.shape[-2] // C)   # == torch .view (scrambled)
    qu = qu.reshape(B, C, -1, qu.shape[-2] // C)
    c = k * k // 2
    return ku * qu[:, :, :, c:c + 1]


# ------------------------------ forward wrapper ----------------------------- #
_MIN_GRID = 4          # >= 2 pipeline steps per v7x TensorCore, never grid=1
_MXU_ROW_CAP = 128     # no benefit pushing the dot's M dim past the MXU rows


def _vmem_budget_bytes():
    # Budget-driven sizing (v5e/v6e: 128 MiB physical, v7x: 64 MiB).
    try:
        return min(int(pltpu.get_tpu_info().vmem_capacity_bytes * 0.6),
                   96 * 1024 * 1024)
    except Exception:
        return 40 * 1024 * 1024   # conservative: safe under v7x's 64 MiB


def appearance_composability(key_map, query_map, *, k, padding, stride):
    """out[b,c,l,q] = unfold(key).view(B,C,L,kk)[b,c,l,q]
                      * unfold(query).view(B,C,L,kk)[b,c,l,kk//2]  (torch semantics)."""
    B, C, H, W = key_map.shape
    kk = k * k
    oh = (H + 2 * padding - k) // stride + 1
    ow = (W + 2 * padding - k) // stride + 1
    L, HW, BC = oh * ow, H * W, B * C
    G = kk * L
    dtype = key_map.dtype
    isz = np.dtype(dtype).itemsize

    budget = _vmem_budget_bytes()
    sel_vmem = 2 * 2 * HW * G * isz          # MK + MQ, worst case double-buffered
    if sel_vmem > budget // 2:
        # TODO(synk): selector-free slab + piecewise-strided-gather kernel for
        # large feature maps; the one-hot matrices scale O(k^2 * (H*W)^2).
        return appearance_composability_ref(key_map, query_map,
                                            k=k, padding=padding, stride=stride)

    # VMEM cost of one extra channel per block: 2 double-buffered input rows,
    # 1 double-buffered output row, 2 f32 dot intermediates.
    per_cb = 2 * 2 * HW * isz + 2 * G * isz + 2 * G * 4
    cb_cap = max(1, (budget - sel_vmem) // per_cb)
    cb = int(max(1, min(_MXU_ROW_CAP, cb_cap, BC // _MIN_GRID)))
    grid = int(pl.cdiv(BC, cb))
    if grid % 2:
        grid += 1                 # even grid: both v7x TensorCores get equal halves
    bc_pad = grid * cb

    mk, mq = _build_selectors(k=k, padding=padding, stride=stride,
                              H=H, W=W, oh=oh, ow=ow)
    mk = jnp.asarray(mk, dtype=dtype)   # one-hot is exact in bf16 too
    mq = jnp.asarray(mq, dtype=dtype)

    key_rows = key_map.reshape(BC, HW)       # free row-major merges
    query_rows = query_map.reshape(BC, HW)
    if bc_pad != BC:                         # pad channels so grid/cb never degrade
        pad_cfg = ((0, bc_pad - BC), (0, 0))
        key_rows = jnp.pad(key_rows, pad_cfg)
        query_rows = jnp.pad(query_rows, pad_cfg)
    key_rows = key_rows.reshape(grid, cb, HW)
    query_rows = query_rows.reshape(grid, cb, HW)

    vmem_limit = int(min(sel_vmem + cb * per_cb + (4 << 20), 100 * 1024 * 1024))

    out = pl.pallas_call(
        _compose_kernel,
        out_shape=jax.ShapeDtypeStruct((grid, cb, G), dtype),
        grid=(grid,),
        in_specs=[
            pl.BlockSpec((1, cb, HW), lambda n: (n, 0, 0)),
            pl.BlockSpec((1, cb, HW), lambda n: (n, 0, 0)),
            pl.BlockSpec((HW, G), lambda n: (0, 0)),   # constant block: fetched once
            pl.BlockSpec((HW, G), lambda n: (0, 0)),
        ],
        out_specs=pl.BlockSpec((1, cb, G), lambda n: (n, 0, 0)),
        compiler_params=pltpu.CompilerParams(
            dimension_semantics=("parallel",),
            vmem_limit_bytes=vmem_limit),
    )(key_rows, query_rows, mk, mq)

    out = out.reshape(bc_pad, G)
    if bc_pad != BC:
        out = out[:BC]
    # Raw row-major reinterpretation == torch's .view: free metadata reshape.
    return out.reshape(B, C, L, kk)


# ------------------------------------ test ---------------------------------- #
if __name__ == "__main__":
    B, C, H, W = 2, 4, 16, 16
    key0, key1 = jax.random.split(jax.random.PRNGKey(0))
    key_map = jax.random.normal(key0, (B, C, H, W), dtype=jnp.float32)
    query_map = jax.random.normal(key1, (B, C, H, W), dtype=jnp.float32)

    # stride=1 (the LRNet default) and stride=2 (exercises the general selector path).
    for (k_, pad_, stride_) in [(3, 1, 1), (3, 1, 2)]:
        fwd = jax.jit(functools.partial(appearance_composability,
                                        k=k_, padding=pad_, stride=stride_))
        out = jax.block_until_ready(fwd(key_map, query_map))
        ref = appearance_composability_ref(key_map, query_map,
                                           k=k_, padding=pad_, stride=stride_)
        assert out.shape == ref.shape, (out.shape, ref.shape)
        assert jnp.allclose(out, ref, atol=1e-5, rtol=1e-5), \
            f"mismatch vs reference (k={k_}, stride={stride_})"

    print("KERNEL_OK")
</pallas_src>

<mosaic_0001>
module attributes {stable_mosaic.version = 11 : i64} {
  func.func @_compose_kernel(%arg0: i32, %arg1: memref<1x2x256xf32, #tpu.memory_space<vmem>>, %arg2: memref<1x2x256xf32, #tpu.memory_space<vmem>>, %arg3: memref<256x2304xf32, #tpu.memory_space<vmem>>, %arg4: memref<256x2304xf32, #tpu.memory_space<vmem>>, %arg5: memref<1x2x2304xf32, #tpu.memory_space<vmem>>) attributes {dimension_semantics = [#tpu.dimension_semantics<parallel>], iteration_bounds = array<i64: 4>, scalar_prefetch = 0 : i64, scratch_operands = 0 : i64, tpu.core_type = #tpu.core_type<tc>, window_params = [{transform_indices = @transform_0, window_bounds = array<i64: 1, 2, 256>}, {transform_indices = @transform_1, window_bounds = array<i64: 1, 2, 256>}, {pipeline_mode = #tpu.pipeline_mode<synchronous>, transform_indices = @transform_2, window_bounds = array<i64: 256, 2304>}, {pipeline_mode = #tpu.pipeline_mode<synchronous>, transform_indices = @transform_3, window_bounds = array<i64: 256, 2304>}, {transform_indices = @transform_4, window_bounds = array<i64: 1, 2, 2304>}]} {
    %c0 = arith.constant 0 : index
    %c0_0 = arith.constant 0 : index
    %c0_1 = arith.constant 0 : index
    %0 = vector.load %arg1[%c0, %c0_0, %c0_1] : memref<1x2x256xf32, #tpu.memory_space<vmem>>, vector<1x2x256xf32>
    %1 = vector.shape_cast %0 : vector<1x2x256xf32> to vector<2x256xf32>
    %c0_2 = arith.constant 0 : index
    %c0_3 = arith.constant 0 : index
    %2 = vector.load %arg3[%c0_2, %c0_3] : memref<256x2304xf32, #tpu.memory_space<vmem>>, vector<256x2304xf32>
    %cst = arith.constant dense<0.000000e+00> : vector<2x2304xf32>
    %3 = tpu.matmul %1, %2, %cst {dimension_numbers = #tpu.dot_dimension_numbers<[1], [0], [0], [1], [0, 0, 1, 1], [], []>} : vector<2x256xf32>, vector<256x2304xf32>, vector<2x2304xf32> -> vector<2x2304xf32>
    %c0_4 = arith.constant 0 : index
    %c0_5 = arith.constant 0 : index
    %c0_6 = arith.constant 0 : index
    %4 = vector.load %arg2[%c0_4, %c0_5, %c0_6] : memref<1x2x256xf32, #tpu.memory_space<vmem>>, vector<1x2x256xf32>
    %5 = vector.shape_cast %4 : vector<1x2x256xf32> to vector<2x256xf32>
    %c0_7 = arith.constant 0 : index
    %c0_8 = arith.constant 0 : index
    %6 = vector.load %arg4[%c0_7, %c0_8] : memref<256x2304xf32, #tpu.memory_space<vmem>>, vector<256x2304xf32>
    %cst_9 = arith.constant dense<0.000000e+00> : vector<2x2304xf32>
    %7 = tpu.matmul %5, %6, %cst_9 {dimension_numbers = #tpu.dot_dimension_numbers<[1], [0], [0], [1], [0, 0, 1, 1], [], []>} : vector<2x256xf32>, vector<256x2304xf32>, vector<2x2304xf32> -> vector<2x2304xf32>
    %8 = arith.mulf %3, %7 : vector<2x2304xf32>
    %c0_10 = arith.constant 0 : index
    %c0_11 = arith.constant 0 : index
    %c0_12 = arith.constant 0 : index
    %9 = vector.load %arg5[%c0_10, %c0_11, %c0_12] : memref<1x2x2304xf32, #tpu.memory_space<vmem>>, vector<1x2x2304xf32>
    %10 = vector.shape_cast %9 : vector<1x2x2304xf32> to vector<2x2304xf32>
    %11 = vector.shape_cast %8 : vector<2x2304xf32> to vector<1x2x2304xf32>
    tpu.vector_store %arg5[%c0_10, %c0_11, %c0_12], %11 {strides = array<i32>} : memref<1x2x2304xf32, #tpu.memory_space<vmem>>, vector<1x2x2304xf32>,
    return
  }
  func.func @transform_0(%arg0: i32) -> (i32, i32, i32) {
    %c0_i32 = arith.constant 0 : i32
    %c0_i32_0 = arith.constant 0 : i32
    %c0_i32_1 = arith.constant 0 : i32
    return %arg0, %c0_i32, %c0_i32_0 : i32, i32, i32
  }
  func.func @transform_1(%arg0: i32) -> (i32, i32, i32) {
    %c0_i32 = arith.constant 0 : i32
    %c0_i32_0 = arith.constant 0 : i32
    %c0_i32_1 = arith.constant 0 : i32
    return %arg0, %c0_i32, %c0_i32_0 : i32, i32, i32
  }
  func.func @transform_2(%arg0: i32) -> (i32, i32) {
    %c0_i32 = arith.constant 0 : i32
    %c0_i32_0 = arith.constant 0 : i32
    %c0_i32_1 = arith.constant 0 : i32
    return %c0_i32, %c0_i32_0 : i32, i32
  }
  func.func @transform_3(%arg0: i32) -> (i32, i32) {
    %c0_i32 = arith.constant 0 : i32
    %c0_i32_0 = arith.constant 0 : i32
    %c0_i32_1 = arith.constant 0 : i32
    return %c0_i32, %c0_i32_0 : i32, i32
  }
  func.func @transform_4(%arg0: i32) -> (i32, i32, i32) {
    %c0_i32 = arith.constant 0 : i32
    %c0_i32_0 = arith.constant 0 : i32
    %c0_i32_1 = arith.constant 0 : i32
    return %arg0, %c0_i32, %c0_i32_0 : i32, i32, i32
  }
}

</mosaic_0001>

<llo_original>
// kernel: appearance_composability.1
$region0: #{appearance_composability.1}
  #allocation0 [shape = 'u32[]', space=smem, size = 0x4, offset = 0x4, fixed_abs, tag = 'smem constant byte address 0x4 - core index']
  #allocation1 [shape = 'u32[144,128]{1,0:T(1,128)}', space=vmem, size = 0x12000, scoped, tag = 'internal scratch']
  %s0 = inlined_call_operand.vmem [shape: f32[4,2,256], index: 0, kind: input, shape index: {}]
  %s1 = inlined_call_operand.vmem [shape: f32[4,2,256], index: 1, kind: input, shape index: {}]
  %s2 = inlined_call_operand.hbm [shape: f32[256,2304], index: 2, kind: input, shape index: {}]
  %s3 = inlined_call_operand.hbm [shape: f32[256,2304], index: 3, kind: input, shape index: {}]
  %s4 = inlined_call_operand.vmem [shape: f32[4,2,2304], index: 4, kind: output, shape index: {}]
  %s5 = sld [smem:[#allocation0]]
  $region57: #{appearance_composability.1} parent=0
    _
  %s7 = ssub.s32 1, %s5
  %s8 = scalar_select 0, %s7, %s5
  $region1: #{appearance_composability.1} parent=0
    #allocation2 [shape = 'u8[2359296]{0}', space=vmem, size = 0x240000, scoped, tag = 'input window, operand 2, single buffered']
    #allocation3 [shape = 's32[2]{0}', space=sflag, size = 0x8, scoped, tag = 'scoped memory for appearance_composability.1']
    #allocation4 [shape = 'u8[2359296]{0}', space=vmem, size = 0x240000, scoped, tag = 'input window, operand 3, single buffered']
    #allocation5 [shape = 's32[1]{0}', space=sflag, size = 0x4, scoped, tag = 'scoped memory for appearance_composability.1']
    %9 = vsyncpa [#allocation3], 0
    %10 = vsyncpa [#allocation5], 0
    loop: start=0, step=1, limit=6
    $region2: #{appearance_composability.1} parent=1 // loop_pre_header
      _
    $region3: #{appearance_composability.1} parent=1 // loop_header
      %s12 = sphi 0, %s16
      %p13 = scmp.ge.s32.totalorder %s12, 6
      %s22 = sphi 0, %s24
      %s25 = sphi 0, %s22
      %s26 = sphi 0, %s25
      %s42 = sphi 0, %s26
      %s48 = sphi 0, %s50
      %s51 = sphi 0, %s48
      %s52 = sphi 0, %s51
      %s68 = sphi 0, %s52
      %s72 = sphi 0, %s72
      %s74 = sphi 0, %s72
      %s75 = sphi 0, %s74
      %s89 = sphi 0, %s75
      %s93 = sphi 0, %s93
      %s95 = sphi 0, %s93
      %s96 = sphi 0, %s95
      %s110 = sphi 0, %s96
      %s116 = sphi 0, %s118
      %s119 = sphi 0, %s116
      %s120 = sphi 0, %s119
      %s136 = sphi 0, %s120
    $region4: #{appearance_composability.1} parent=1 // loop_header_branch
      %15 = sbr.rel (%p13) target = $region8
    $region5: #{appearance_composability.1} parent=1 // loop_body
      %s17 = ssub.s32 %s12, 1
      %s18 = ssub.s32 %s12, 2
      %s19 = sadd.s32 %s12, 1
      %s20 = ssub.s32 %s12, %s19
      %p21 = scmp.eq.s32.totalorder %s20, 0
      %s23 = sadd.s32 %s22, 1
      %s24 = scalar_select %p21, %s22, %s23
      %p27 = pneg %p21
      %p28 = scmp.eq.s32.totalorder %s12, 3
      %p29 = por %p27, %p28
      %p30 = scmp.ne.s32.totalorder %s22, %s25
      %p31 = scmp.eq.s32.totalorder %s12, 0
      %p32 = por %p30, %p31
      %p33 = scmp.ne.s32.totalorder %s22, %s25
      %p34 = scmp.eq.s32.totalorder %s17, 3
      %p35 = por %p33, %p34
      %p36 = scmp.ne.s32.totalorder %s25, %s26
      %p37 = scmp.eq.s32.totalorder %s17, 0
      %p38 = por %p36, %p37
      %p39 = scmp.ne.s32.totalorder %s25, %s26
      %p40 = scmp.eq.s32.totalorder %s18, 3
      %p41 = por %p39, %p40
      %p43 = scmp.ne.s32.totalorder %s26, %s42
      %p44 = scmp.eq.s32.totalorder %s18, 0
      %p45 = por %p43, %p44
      %s46 = ssub.s32 %s12, %s19
      %p47 = scmp.eq.s32.totalorder %s46, 0
      %s49 = sadd.s32 %s48, 1
      %s50 = scalar_select %p47, %s48, %s49
      %p53 = pneg %p47
      %p54 = scmp.eq.s32.totalorder %s12, 3
      %p55 = por %p53, %p54
      %p56 = scmp.ne.s32.totalorder %s48, %s51
      %p57 = scmp.eq.s32.totalorder %s12, 0
      %p58 = por %p56, %p57
      %p59 = scmp.ne.s32.totalorder %s48, %s51
      %p60 = scmp.eq.s32.totalorder %s17, 3
      %p61 = por %p59, %p60
      %p62 = scmp.ne.s32.totalorder %s51, %s52
      %p63 = scmp.eq.s32.totalorder %s17, 0
      %p64 = por %p62, %p63
      %p65 = scmp.ne.s32.totalorder %s51, %s52
      %p66 = scmp.eq.s32.totalorder %s18, 3
      %p67 = por %p65, %p66
      %p69 = scmp.ne.s32.totalorder %s52, %s68
      %p70 = scmp.eq.s32.totalorder %s18, 0
      %p71 = por %p69, %p70
      %s73 = sadd.s32 %s72, 1
      %p76 = scmp.eq.s32.totalorder %s12, 3
      %p77 = scmp.ne.s32.totalorder %s72, %s74
      %p78 = scmp.eq.s32.totalorder %s12, 0
      %p79 = por %p77, %p78
      %p80 = scmp.ne.s32.totalorder %s72, %s74
      %p81 = scmp.eq.s32.totalorder %s17, 3
      %p82 = por %p80, %p81
      %p83 = scmp.ne.s32.totalorder %s74, %s75
      %p84 = scmp.eq.s32.totalorder %s17, 0
      %p85 = por %p83, %p84
      %p86 = scmp.ne.s32.totalorder %s74, %s75
      %p87 = scmp.eq.s32.totalorder %s18, 3
      %p88 = por %p86, %p87
      %p90 = scmp.ne.s32.totalorder %s75, %s89
      %p91 = scmp.eq.s32.totalorder %s18, 0
      %p92 = por %p90, %p91
      %s94 = sadd.s32 %s93, 1
      %p97 = scmp.eq.s32.totalorder %s12, 3
      %p98 = scmp.ne.s32.totalorder %s93, %s95
      %p99 = scmp.eq.s32.totalorder %s12, 0
      %p100 = por %p98, %p99
      %p101 = scmp.ne.s32.totalorder %s93, %s95
      %p102 = scmp.eq.s32.totalorder %s17, 3
      %p103 = por %p101, %p102
      %p104 = scmp.ne.s32.totalorder %s95, %s96
      %p105 = scmp.eq.s32.totalorder %s17, 0
      %p106 = por %p104, %p105
      %p107 = scmp.ne.s32.totalorder %s95, %s96
      %p108 = scmp.eq.s32.totalorder %s18, 3
      %p109 = por %p107, %p108
      %p111 = scmp.ne.s32.totalorder %s96, %s110
      %p112 = scmp.eq.s32.totalorder %s18, 0
      %p113 = por %p111, %p112
      %s114 = ssub.s32 %s12, %s19
      %p115 = scmp.eq.s32.totalorder %s114, 0
      %s117 = sadd.s32 %s116, 1
      %s118 = scalar_select %p115, %s116, %s117
      %p121 = pneg %p115
      %p122 = scmp.eq.s32.totalorder %s12, 3
      %p123 = por %p121, %p122
      %p124 = scmp.ne.s32.totalorder %s116, %s119
      %p125 = scmp.eq.s32.totalorder %s12, 0
      %p126 = por %p124, %p125
      %p127 = scmp.ne.s32.totalorder %s116, %s119
      %p128 = scmp.eq.s32.totalorder %s17, 3
      %p129 = por %p127, %p128
      %p130 = scmp.ne.s32.totalorder %s119, %s120
      %p131 = scmp.eq.s32.totalorder %s17, 0
      %p132 = por %p130, %p131
      %p133 = scmp.ne.s32.totalorder %s119, %s120
      %p134 = scmp.eq.s32.totalorder %s18, 3
      %p135 = por %p133, %p134
      %p137 = scmp.ne.s32.totalorder %s120, %s136
      %p138 = scmp.eq.s32.totalorder %s18, 0
      %p139 = por %p137, %p138
      %p140 = scmp.le.s32.totalorder 1, %s12
      %p141 = scmp.lt.s32.totalorder %s12, 5
      %p142 = pnand %p140, %p141
      %p143 = pneg %p142
      // Predicated region
      $region9: #{appearance_composability.1} parent=5 // pred_check
        _
      $region10: #{appearance_composability.1} parent=5 // pred_check_branch
        %145 = sbr.rel (%p142) target = $region12
      $region11: #{appearance_composability.1} parent=5 // pred_region
        %s146 = ssub.s32 %s12, 1
        // Predicated region
        $region13: #{appearance_composability.1} parent=11 // pred_check
          %p147 = pneg %p85
        $region14: #{appearance_composability.1} parent=11 // pred_check_branch
          %149 = sbr.rel (%p147) target = $region16
        $region15: #{appearance_composability.1} parent=11 // pred_region
          %s151 = ssub.s32 73728, 73728
          %152 = vsyncadd [#allocation3], %s151
          %s153 = sshll.u32 [#allocation2], 4
          %s154 = int_to_ptr.vmem [resolvable:$true] %s153
          %159 = dma.hbm_to_vmem [thread:$0]  %s2, 73728, %s154, [#allocation3], 2304, 2304, 144
        $region16: #{appearance_composability.1} parent=11 // pred_fallthru
          _
        // Predicated region
        $region17: #{appearance_composability.1} parent=11 // pred_check
          %p160 = pneg %p106
        $region18: #{appearance_composability.1} parent=11 // pred_check_branch
          %162 = sbr.rel (%p160) target = $region20
        $region19: #{appearance_composability.1} parent=11 // pred_region
          %s164 = ssub.s32 73728, 73728
          %165 = vsyncadd [#allocation5], %s164
          %s166 = sshll.u32 [#allocation4], 4
          %s167 = int_to_ptr.vmem [resolvable:$true] %s166
          %172 = dma.hbm_to_vmem [thread:$0]  %s3, 73728, %s167, [#allocation5], 2304, 2304, 144
        $region20: #{appearance_composability.1} parent=11 // pred_fallthru
          _
      $region12: #{appearance_composability.1} parent=5 // pred_fallthru
        _
      %p173 = scmp.lt.s32.totalorder %s12, 4
      // Predicated region
      $region21: #{appearance_composability.1} parent=5 // pred_check
        %p174 = pneg %p173
      $region22: #{appearance_composability.1} parent=5 // pred_check_branch
        %176 = sbr.rel (%p174) target = $region24
      $region23: #{appearance_composability.1} parent=5 // pred_region
        // Predicated region
        $region25: #{appearance_composability.1} parent=23 // pred_check
          %p177 = pneg %p32
        $region26: #{appearance_composability.1} parent=23 // pred_check_branch
          %179 = sbr.rel (%p177) target = $region28
        $region27: #{appearance_composability.1} parent=23 // pred_region
          %p180 = scmp.lt.s32.totalorder %s12, 3
          %s181 = scalar_select %p180, %s12, 3
          %s182 = smul.addr %s181, 2
          %s183 = smul.addr %s182, 2
          %s184 = scalar_lea.vmem %s0, %s183
        $region28: #{appearance_composability.1} parent=23 // pred_fallthru
          _
        // Predicated region
        $region29: #{appearance_composability.1} parent=23 // pred_check
          %p185 = pneg %p58
        $region30: #{appearance_composability.1} parent=23 // pred_check_branch
          %187 = sbr.rel (%p185) target = $region32
        $region31: #{appearance_composability.1} parent=23 // pred_region
          %p188 = scmp.lt.s32.totalorder %s12, 3
          %s189 = scalar_select %p188, %s12, 3
          %s190 = smul.addr %s189, 2
          %s191 = smul.addr %s190, 2
          %s192 = scalar_lea.vmem %s1, %s191
        $region32: #{appearance_composability.1} parent=23 // pred_fallthru
          _
      $region24: #{appearance_composability.1} parent=5 // pred_fallthru
        _
      %p193 = scmp.le.s32.totalorder 1, %s12
      %p194 = scmp.lt.s32.totalorder %s12, 5
      %p195 = pnand %p193, %p194
      %p196 = pneg %p195
      // Predicated region
      $region33: #{appearance_composability.1} parent=5 // pred_check
        _
      $region34: #{appearance_composability.1} parent=5 // pred_check_branch
        %198 = sbr.rel (%p195) target = $region36
      $region35: #{appearance_composability.1} parent=5 // pred_region
        %s199 = ssub.s32 %s12, 1
        // Predicated region
        $region37: #{appearance_composability.1} parent=35 // pred_check
          %p200 = pneg %p85
        $region38: #{appearance_composability.1} parent=35 // pred_check_branch
          %202 = sbr.rel (%p200) target = $region40
        $region39: #{appearance_composability.1} parent=35 // pred_region
          %203 = dma.done [#allocation3], 73728
        $region40: #{appearance_composability.1} parent=35 // pred_fallthru
          _
        // Predicated region
        $region41: #{appearance_composability.1} parent=35 // pred_check
          %p204 = pneg %p106
        $region42: #{appearance_composability.1} parent=35 // pred_check_branch
          %206 = sbr.rel (%p204) target = $region44
        $region43: #{appearance_composability.1} parent=35 // pred_region
          %207 = dma.done [#allocation5], 73728
        $region44: #{appearance_composability.1} parent=35 // pred_fallthru
          _
        %p208 = scmp.lt.s32.totalorder %s17, 3
        %s209 = scalar_select %p208, %s17, 3
        %s210 = smul.addr %s209, 2
        %s211 = smul.addr %s210, 2
        %s212 = scalar_lea.vmem %s0, %s211
        %p213 = pneg %p38
        %p214 = pneg %p35
        %p215 = scmp.lt.s32.totalorder %s17, 3
        %s216 = scalar_select %p215, %s17, 3
        %s217 = smul.addr %s216, 2
        %s218 = smul.addr %s217, 2
        %s219 = scalar_lea.vmem %s1, %s218
        %p220 = pneg %p64
        %p221 = pneg %p61
        %p222 = pneg %p85
        %p223 = pneg %p82
        %p224 = pneg %p106
        %p225 = pneg %p103
        %p226 = pneg %p132
        %p227 = pneg %p129
        %p228 = scmp.lt.s32.totalorder %s17, 3
        %s229 = scalar_select %p228, %s17, 3
        %s230 = smul.addr %s229, 18
        %s231 = smul.addr %s230, 2
        %s232 = scalar_lea.vmem %s4, %s231
        %p233 = scmp.lt.s32.totalorder %s17, 3
        %s234 = scalar_select %p233, %s17, 3
        %s235 = smul.addr %s234, 2
        %s236 = smul.addr %s235, 2
        %s237 = scalar_lea.vmem %s0, %s236
        %p238 = scmp.lt.s32.totalorder %s17, 3
        %s239 = scalar_select %p238, %s17, 3
        %s240 = smul.addr %s239, 2
        %s241 = smul.addr %s240, 2
        %s242 = scalar_lea.vmem %s1, %s241
        %p243 = scmp.lt.s32.totalorder %s17, 3
        %s244 = scalar_select %p243, %s17, 3
        %s245 = smul.addr %s244, 18
        %s246 = smul.addr %s245, 2
        %s247 = scalar_lea.vmem %s4, %s246
        %v248 = vld [vmem:[%s237] sm:$0xf]
        %v249 = vld [vmem:[#allocation2] sm:$0xff]
        %v250 = vld [vmem:[#allocation2 + $0x8] sm:$0xff]
        %v251 = vld [vmem:[#allocation2 + $0x10] sm:$0xff]
        %v252 = vld [vmem:[#allocation2 + $0x18] sm:$0xff]
        %v253 = vld [vmem:[#allocation2 + $0x20] sm:$0xff]
        %v254 = vld [vmem:[#allocation2 + $0x28] sm:$0xff]
        %v255 = vld [vmem:[#allocation2 + $0x30] sm:$0xff]
        %v256 = vld [vmem:[#allocation2 + $0x38] sm:$0xff]
        %v257 = vld [vmem:[#allocation2 + $0x40] sm:$0xff]
        %v258 = vld [vmem:[#allocation2 + $0x48] sm:$0xff]
        %v259 = vld [vmem:[#allocation2 + $0x50] sm:$0xff]
        %v260 = vld [vmem:[#allocation2 + $0x58] sm:$0xff]
        %v261 = vld [vmem:[#allocation2 + $0x60] sm:$0xff]
        %v262 = vld [vmem:[#allocation2 + $0x68] sm:$0xff]
        %v263 = vld [vmem:[#allocation2 + $0x70] sm:$0xff]
        %v264 = vld [vmem:[#allocation2 + $0x78] sm:$0xff]
        %v265 = vld [vmem:[#allocation2 + $0x80] sm:$0xff]
        %v266 = vld [vmem:[#allocation2 + $0x88] sm:$0xff]
        %v267 = vld [vmem:[#allocation2 + $0x90] sm:$0xff]
        %v268 = vld [vmem:[#allocation2 + $0x98] sm:$0xff]
        %v269 = vld [vmem:[#allocation2 + $0xa0] sm:$0xff]
        %v270 = vld [vmem:[#allocation2 + $0xa8] sm:$0xff]
        %v271 = vld [vmem:[#allocation2 + $0xb0] sm:$0xff]
        %v272 = vld [vmem:[#allocation2 + $0xb8] sm:$0xff]
        %v273 = vld [vmem:[#allocation2 + $0xc0] sm:$0xff]
        %v274 = vld [vmem:[#allocation2 + $0xc8] sm:$0xff]
        %v275 = vld [vmem:[#allocation2 + $0xd0] sm:$0xff]
        %v276 = vld [vmem:[#allocation2 + $0xd8] sm:$0xff]
        %v277 = vld [vmem:[#allocation2 + $0xe0] sm:$0xff]
        %v278 = vld [vmem:[#allocation2 + $0xe8] sm:$0xff]
        %v279 = vld [vmem:[#allocation2 + $0xf0] sm:$0xff]
        %v280 = vld [vmem:[#allocation2 + $0xf8] sm:$0xff]
        %v281 = vld [vmem:[#allocation2 + $0x100] sm:$0xff]
        %v282 = vld [vmem:[#allocation2 + $0x108] sm:$0xff]
        %v283 = vld [vmem:[#allocation2 + $0x110] sm:$0xff]
        %v284 = vld [vmem:[#allocation2 + $0x118] sm:$0xff]
        %v285 = vld [vmem:[#allocation2 + $0x120] sm:$0xff]
        %v286 = vld [vmem:[#allocation2 + $0x128] sm:$0xff]
        %v287 = vld [vmem:[#allocation2 + $0x130] sm:$0xff]
        %v288 = vld [vmem:[#allocation2 + $0x138] sm:$0xff]
        %v289 = vld [vmem:[#allocation2 + $0x140] sm:$0xff]
        %v290 = vld [vmem:[#allocation2 + $0x148] sm:$0xff]
        %v291 = vld [vmem:[#allocation2 + $0x150] sm:$0xff]
        %v292 = vld [vmem:[#allocation2 + $0x158] sm:$0xff]
        %v293 = vld [vmem:[#allocation2 + $0x160] sm:$0xff]
        %v294 = vld [vmem:[#allocation2 + $0x168] sm:$0xff]
        %v295 = vld [vmem:[#allocation2 + $0x170] sm:$0xff]
        %v296 = vld [vmem:[#allocation2 + $0x178] sm:$0xff]
        %v297 = vld [vmem:[#allocation2 + $0x180] sm:$0xff]
        %v298 = vld [vmem:[#allocation2 + $0x188] sm:$0xff]
        %v299 = vld [vmem:[#allocation2 + $0x190] sm:$0xff]
        %v300 = vld [vmem:[#allocation2 + $0x198] sm:$0xff]
        %v301 = vld [vmem:[#allocation2 + $0x1a0] sm:$0xff]
        %v302 = vld [vmem:[#allocation2 + $0x1a8] sm:$0xff]
        %v303 = vld [vmem:[#allocation2 + $0x1b0] sm:$0xff]
        %v304 = vld [vmem:[#allocation2 + $0x1b8] sm:$0xff]
        %v305 = vld [vmem:[#allocation2 + $0x1c0] sm:$0xff]
        %v306 = vld [vmem:[#allocation2 + $0x1c8] sm:$0xff]
        %v307 = vld [vmem:[#allocation2 + $0x1d0] sm:$0xff]
        %v308 = vld [vmem:[#allocation2 + $0x1d8] sm:$0xff]
        %v309 = vld [vmem:[#allocation2 + $0x1e0] sm:$0xff]
        %v310 = vld [vmem:[#allocation2 + $0x1e8] sm:$0xff]
        %v311 = vld [vmem:[#allocation2 + $0x1f0] sm:$0xff]
        %v312 = vld [vmem:[#allocation2 + $0x1f8] sm:$0xff]
        %v313 = vld [vmem:[#allocation2 + $0x200] sm:$0xff]
        %v314 = vld [vmem:[#allocation2 + $0x208] sm:$0xff]
        %v315 = vld [vmem:[#allocation2 + $0x210] sm:$0xff]
        %v316 = vld [vmem:[#allocation2 + $0x218] sm:$0xff]
        %v317 = vld [vmem:[#allocation2 + $0x220] sm:$0xff]
        %v318 = vld [vmem:[#allocation2 + $0x228] sm:$0xff]
        %v319 = vld [vmem:[#allocation2 + $0x230] sm:$0xff]
        %v320 = vld [vmem:[#allocation2 + $0x238] sm:$0xff]
        %v321 = vld [vmem:[#allocation2 + $0x240] sm:$0xff]
        %v322 = vld [vmem:[#allocation2 + $0x248] sm:$0xff]
        %v323 = vld [vmem:[#allocation2 + $0x250] sm:$0xff]
        %v324 = vld [vmem:[#allocation2 + $0x258] sm:$0xff]
        %v325 = vld [vmem:[#allocation2 + $0x260] sm:$0xff]
        %v326 = vld [vmem:[#allocation2 + $0x268] sm:$0xff]
        %v327 = vld [vmem:[#allocation2 + $0x270] sm:$0xff]
        %v328 = vld [vmem:[#allocation2 + $0x278] sm:$0xff]
        %v329 = vld [vmem:[#allocation2 + $0x280] sm:$0xff]
        %v330 = vld [vmem:[#allocation2 + $0x288] sm:$0xff]
        %v331 = vld [vmem:[#allocation2 + $0x290] sm:$0xff]
        %v332 = vld [vmem:[#allocation2 + $0x298] sm:$0xff]
        %v333 = vld [vmem:[#allocation2 + $0x2a0] sm:$0xff]
        %v334 = vld [vmem:[#allocation2 + $0x2a8] sm:$0xff]
        %v335 = vld [vmem:[#allocation2 + $0x2b0] sm:$0xff]
        %v336 = vld [vmem:[#allocation2 + $0x2b8] sm:$0xff]
        %v337 = vld [vmem:[#allocation2 + $0x2c0] sm:$0xff]
        %v338 = vld [vmem:[#allocation2 + $0x2c8] sm:$0xff]
        %v339 = vld [vmem:[#allocation2 + $0x2d0] sm:$0xff]
        %v340 = vld [vmem:[#allocation2 + $0x2d8] sm:$0xff]
        %v341 = vld [vmem:[#allocation2 + $0x2e0] sm:$0xff]
        %v342 = vld [vmem:[#allocation2 + $0x2e8] sm:$0xff]
        %v343 = vld [vmem:[#allocation2 + $0x2f0] sm:$0xff]
        %v344 = vld [vmem:[#allocation2 + $0x2f8] sm:$0xff]
        %v345 = vld [vmem:[#allocation2 + $0x300] sm:$0xff]
        %v346 = vld [vmem:[#allocation2 + $0x308] sm:$0xff]
        %v347 = vld [vmem:[#allocation2 + $0x310] sm:$0xff]
        %v348 = vld [vmem:[#allocation2 + $0x318] sm:$0xff]
        %v349 = vld [vmem:[#allocation2 + $0x320] sm:$0xff]
        %v350 = vld [vmem:[#allocation2 + $0x328] sm:$0xff]
        %v351 = vld [vmem:[#allocation2 + $0x330] sm:$0xff]
        %v352 = vld [vmem:[#allocation2 + $0x338] sm:$0xff]
        %v353 = vld [vmem:[#allocation2 + $0x340] sm:$0xff]
        %v354 = vld [vmem:[#allocation2 + $0x348] sm:$0xff]
        %v355 = vld [vmem:[#allocation2 + $0x350] sm:$0xff]
        %v356 = vld [vmem:[#allocation2 + $0x358] sm:$0xff]
        %v357 = vld [vmem:[#allocation2 + $0x360] sm:$0xff]
        %v358 = vld [vmem:[#allocation2 + $0x368] sm:$0xff]
        %v359 = vld [vmem:[#allocation2 + $0x370] sm:$0xff]
        %v360 = vld [vmem:[#allocation2 + $0x378] sm:$0xff]
        %v361 = vld [vmem:[#allocation2 + $0x380] sm:$0xff]
        %v362 = vld [vmem:[#allocation2 + $0x388] sm:$0xff]
        %v363 = vld [vmem:[#allocation2 + $0x390] sm:$0xff]
        %v364 = vld [vmem:[#allocation2 + $0x398] sm:$0xff]
        %v365 = vld [vmem:[#allocation2 + $0x3a0] sm:$0xff]
        %v366 = vld [vmem:[#allocation2 + $0x3a8] sm:$0xff]
        %v367 = vld [vmem:[#allocation2 + $0x3b0] sm:$0xff]
        %v368 = vld [vmem:[#allocation2 + $0x3b8] sm:$0xff]
        %v369 = vld [vmem:[#allocation2 + $0x3c0] sm:$0xff]
        %v370 = vld [vmem:[#allocation2 + $0x3c8] sm:$0xff]
        %v371 = vld [vmem:[#allocation2 + $0x3d0] sm:$0xff]
        %v372 = vld [vmem:[#allocation2 + $0x3d8] sm:$0xff]
        %v373 = vld [vmem:[#allocation2 + $0x3e0] sm:$0xff]
        %v374 = vld [vmem:[#allocation2 + $0x3e8] sm:$0xff]
        %v375 = vld [vmem:[#allocation2 + $0x3f0] sm:$0xff]
        %v376 = vld [vmem:[#allocation2 + $0x3f8] sm:$0xff]
        %v377 = vld [vmem:[#allocation2 + $0x400] sm:$0xff]
        %v378 = vld [vmem:[#allocation2 + $0x408] sm:$0xff]
        %v379 = vld [vmem:[#allocation2 + $0x410] sm:$0xff]
        %v380 = vld [vmem:[#allocation2 + $0x418] sm:$0xff]
        %v381 = vld [vmem:[#allocation2 + $0x420] sm:$0xff]
        %v382 = vld [vmem:[#allocation2 + $0x428] sm:$0xff]
        %v383 = vld [vmem:[#allocation2 + $0x430] sm:$0xff]
        %v384 = vld [vmem:[#allocation2 + $0x438] sm:$0xff]
        %v385 = vld [vmem:[#allocation2 + $0x440] sm:$0xff]
        %v386 = vld [vmem:[#allocation2 + $0x448] sm:$0xff]
        %v387 = vld [vmem:[#allocation2 + $0x450] sm:$0xff]
        %v388 = vld [vmem:[#allocation2 + $0x458] sm:$0xff]
        %v389 = vld [vmem:[#allocation2 + $0x460] sm:$0xff]
        %v390 = vld [vmem:[#allocation2 + $0x468] sm:$0xff]
        %v391 = vld [vmem:[#allocation2 + $0x470] sm:$0xff]
        %v392 = vld [vmem:[#allocation2 + $0x478] sm:$0xff]
        %v393 = vld [vmem:[#allocation2 + $0x480] sm:$0xff]
        %v394 = vld [vmem:[#allocation2 + $0x488] sm:$0xff]
        %v395 = vld [vmem:[#allocation2 + $0x490] sm:$0xff]
        %v396 = vld [vmem:[#allocation2 + $0x498] sm:$0xff]
        %v397 = vld [vmem:[#allocation2 + $0x4a0] sm:$0xff]
        %v398 = vld [vmem:[#allocation2 + $0x4a8] sm:$0xff]
        %v399 = vld [vmem:[#allocation2 + $0x4b0] sm:$0xff]
        %v400 = vld [vmem:[#allocation2 + $0x4b8] sm:$0xff]
        %v401 = vld [vmem:[#allocation2 + $0x4c0] sm:$0xff]
        %v402 = vld [vmem:[#allocation2 + $0x4c8] sm:$0xff]
        %v403 = vld [vmem:[#allocation2 + $0x4d0] sm:$0xff]
        %v404 = vld [vmem:[#allocation2 + $0x4d8] sm:$0xff]
        %v405 = vld [vmem:[#allocation2 + $0x4e0] sm:$0xff]
        %v406 = vld [vmem:[#allocation2 + $0x4e8] sm:$0xff]
        %v407 = vld [vmem:[#allocation2 + $0x4f0] sm:$0xff]
        %v408 = vld [vmem:[#allocation2 + $0x4f8] sm:$0xff]
        %v409 = vld [vmem:[#allocation2 + $0x500] sm:$0xff]
        %v410 = vld [vmem:[#allocation2 + $0x508] sm:$0xff]
        %v411 = vld [vmem:[#allocation2 + $0x510] sm:$0xff]
        %v412 = vld [vmem:[#allocation2 + $0x518] sm:$0xff]
        %v413 = vld [vmem:[#allocation2 + $0x520] sm:$0xff]
        %v414 = vld [vmem:[#allocation2 + $0x528] sm:$0xff]
        %v415 = vld [vmem:[#allocation2 + $0x530] sm:$0xff]
        %v416 = vld [vmem:[#allocation2 + $0x538] sm:$0xff]
        %v417 = vld [vmem:[#allocation2 + $0x540] sm:$0xff]
        %v418 = vld [vmem:[#allocation2 + $0x548] sm:$0xff]
        %v419 = vld [vmem:[#allocation2 + $0x550] sm:$0xff]
        %v420 = vld [vmem:[#allocation2 + $0x558] sm:$0xff]
        %v421 = vld [vmem:[#allocation2 + $0x560] sm:$0xff]
        %v422 = vld [vmem:[#allocation2 + $0x568] sm:$0xff]
        %v423 = vld [vmem:[#allocation2 + $0x570] sm:$0xff]
        %v424 = vld [vmem:[#allocation2 + $0x578] sm:$0xff]
        %v425 = vld [vmem:[#allocation2 + $0x580] sm:$0xff]
        %v426 = vld [vmem:[#allocation2 + $0x588] sm:$0xff]
        %v427 = vld [vmem:[#allocation2 + $0x590] sm:$0xff]
        %v428 = vld [vmem:[#allocation2 + $0x598] sm:$0xff]
        %v429 = vld [vmem:[#allocation2 + $0x5a0] sm:$0xff]
        %v430 = vld [vmem:[#allocation2 + $0x5a8] sm:$0xff]
        %v431 = vld [vmem:[#allocation2 + $0x5b0] sm:$0xff]
        %v432 = vld [vmem:[#allocation2 + $0x5b8] sm:$0xff]
        %v433 = vld [vmem:[#allocation2 + $0x5c0] sm:$0xff]
        %v434 = vld [vmem:[#allocation2 + $0x5c8] sm:$0xff]
        %v435 = vld [vmem:[#allocation2 + $0x5d0] sm:$0xff]
        %v436 = vld [vmem:[#allocation2 + $0x5d8] sm:$0xff]
        %v437 = vld [vmem:[#allocation2 + $0x5e0] sm:$0xff]
        %v438 = vld [vmem:[#allocation2 + $0x5e8] sm:$0xff]
        %v439 = vld [vmem:[#allocation2 + $0x5f0] sm:$0xff]
        %v440 = vld [vmem:[#allocation2 + $0x5f8] sm:$0xff]
        %v441 = vld [vmem:[#allocation2 + $0x600] sm:$0xff]
        %v442 = vld [vmem:[#allocation2 + $0x608] sm:$0xff]
        %v443 = vld [vmem:[#allocation2 + $0x610] sm:$0xff]
        %v444 = vld [vmem:[#allocation2 + $0x618] sm:$0xff]
        %v445 = vld [vmem:[#allocation2 + $0x620] sm:$0xff]
        %v446 = vld [vmem:[#allocation2 + $0x628] sm:$0xff]
        %v447 = vld [vmem:[#allocation2 + $0x630] sm:$0xff]
        %v448 = vld [vmem:[#allocation2 + $0x638] sm:$0xff]
        %v449 = vld [vmem:[#allocation2 + $0x640] sm:$0xff]
        %v450 = vld [vmem:[#allocation2 + $0x648] sm:$0xff]
        %v451 = vld [vmem:[#allocation2 + $0x650] sm:$0xff]
        %v452 = vld [vmem:[#allocation2 + $0x658] sm:$0xff]
        %v453 = vld [vmem:[#allocation2 + $0x660] sm:$0xff]
        %v454 = vld [vmem:[#allocation2 + $0x668] sm:$0xff]
        %v455 = vld [vmem:[#allocation2 + $0x670] sm:$0xff]
        %v456 = vld [vmem:[#allocation2 + $0x678] sm:$0xff]
        %v457 = vld [vmem:[#allocation2 + $0x680] sm:$0xff]
        %v458 = vld [vmem:[#allocation2 + $0x688] sm:$0xff]
        %v459 = vld [vmem:[#allocation2 + $0x690] sm:$0xff]
        %v460 = vld [vmem:[#allocation2 + $0x698] sm:$0xff]
        %v461 = vld [vmem:[#allocation2 + $0x6a0] sm:$0xff]
        %v462 = vld [vmem:[#allocation2 + $0x6a8] sm:$0xff]
        %v463 = vld [vmem:[#allocation2 + $0x6b0] sm:$0xff]
        %v464 = vld [vmem:[#allocation2 + $0x6b8] sm:$0xff]
        %v465 = vld [vmem:[#allocation2 + $0x6c0] sm:$0xff]
        %v466 = vld [vmem:[#allocation2 + $0x6c8] sm:$0xff]
        %v467 = vld [vmem:[#allocation2 + $0x6d0] sm:$0xff]
        %v468 = vld [vmem:[#allocation2 + $0x6d8] sm:$0xff]
        %v469 = vld [vmem:[#allocation2 + $0x6e0] sm:$0xff]
        %v470 = vld [vmem:[#allocation2 + $0x6e8] sm:$0xff]
        %v471 = vld [vmem:[#allocation2 + $0x6f0] sm:$0xff]
        %v472 = vld [vmem:[#allocation2 + $0x6f8] sm:$0xff]
        %v473 = vld [vmem:[#allocation2 + $0x700] sm:$0xff]
        %v474 = vld [vmem:[#allocation2 + $0x708] sm:$0xff]
        %v475 = vld [vmem:[#allocation2 + $0x710] sm:$0xff]
        %v476 = vld [vmem:[#allocation2 + $0x718] sm:$0xff]
        %v477 = vld [vmem:[#allocation2 + $0x720] sm:$0xff]
        %v478 = vld [vmem:[#allocation2 + $0x728] sm:$0xff]
        %v479 = vld [vmem:[#allocation2 + $0x730] sm:$0xff]
        %v480 = vld [vmem:[#allocation2 + $0x738] sm:$0xff]
        %v481 = vld [vmem:[#allocation2 + $0x740] sm:$0xff]
        %v482 = vld [vmem:[#allocation2 + $0x748] sm:$0xff]
        %v483 = vld [vmem:[#allocation2 + $0x750] sm:$0xff]
        %v484 = vld [vmem:[#allocation2 + $0x758] sm:$0xff]
        %v485 = vld [vmem:[#allocation2 + $0x760] sm:$0xff]
        %v486 = vld [vmem:[#allocation2 + $0x768] sm:$0xff]
        %v487 = vld [vmem:[#allocation2 + $0x770] sm:$0xff]
        %v488 = vld [vmem:[#allocation2 + $0x778] sm:$0xff]
        %v489 = vld [vmem:[#allocation2 + $0x780] sm:$0xff]
        %v490 = vld [vmem:[#allocation2 + $0x788] sm:$0xff]
        %v491 = vld [vmem:[#allocation2 + $0x790] sm:$0xff]
        %v492 = vld [vmem:[#allocation2 + $0x798] sm:$0xff]
        %v493 = vld [vmem:[#allocation2 + $0x7a0] sm:$0xff]
        %v494 = vld [vmem:[#allocation2 + $0x7a8] sm:$0xff]
        %v495 = vld [vmem:[#allocation2 + $0x7b0] sm:$0xff]
        %v496 = vld [vmem:[#allocation2 + $0x7b8] sm:$0xff]
        %v497 = vld [vmem:[#allocation2 + $0x7c0] sm:$0xff]
        %v498 = vld [vmem:[#allocation2 + $0x7c8] sm:$0xff]
        %v499 = vld [vmem:[#allocation2 + $0x7d0] sm:$0xff]
        %v500 = vld [vmem:[#allocation2 + $0x7d8] sm:$0xff]
        %v501 = vld [vmem:[#allocation2 + $0x7e0] sm:$0xff]
        %v502 = vld [vmem:[#allocation2 + $0x7e8] sm:$0xff]
        %v503 = vld [vmem:[#allocation2 + $0x7f0] sm:$0xff]
        %v504 = vld [vmem:[#allocation2 + $0x7f8] sm:$0xff]
        %v505 = vld [vmem:[#allocation2 + $0x800] sm:$0xff]
        %v506 = vld [vmem:[#allocation2 + $0x808] sm:$0xff]
        %v507 = vld [vmem:[#allocation2 + $0x810] sm:$0xff]
        %v508 = vld [vmem:[#allocation2 + $0x818] sm:$0xff]
        %v509 = vld [vmem:[#allocation2 + $0x820] sm:$0xff]
        %v510 = vld [vmem:[#allocation2 + $0x828] sm:$0xff]
        %v511 = vld [vmem:[#allocation2 + $0x830] sm:$0xff]
        %v512 = vld [vmem:[#allocation2 + $0x838] sm:$0xff]
        %v513 = vld [vmem:[#allocation2 + $0x840] sm:$0xff]
        %v514 = vld [vmem:[#allocation2 + $0x848] sm:$0xff]
        %v515 = vld [vmem:[#allocation2 + $0x850] sm:$0xff]
        %v516 = vld [vmem:[#allocation2 + $0x858] sm:$0xff]
        %v517 = vld [vmem:[#allocation2 + $0x860] sm:$0xff]
        %v518 = vld [vmem:[#allocation2 + $0x868] sm:$0xff]
        %v519 = vld [vmem:[#allocation2 + $0x870] sm:$0xff]
        %v520 = vld [vmem:[#allocation2 + $0x878] sm:$0xff]
        %v521 = vld [vmem:[#allocation2 + $0x880] sm:$0xff]
        %v522 = vld [vmem:[#allocation2 + $0x888] sm:$0xff]
        %v523 = vld [vmem:[#allocation2 + $0x890] sm:$0xff]
        %v524 = vld [vmem:[#allocation2 + $0x898] sm:$0xff]
        %v525 = vld [vmem:[#allocation2 + $0x8a0] sm:$0xff]
        %v526 = vld [vmem:[#allocation2 + $0x8a8] sm:$0xff]
        %v527 = vld [vmem:[#allocation2 + $0x8b0] sm:$0xff]
        %v528 = vld [vmem:[#allocation2 + $0x8b8] sm:$0xff]
        %v529 = vld [vmem:[#allocation2 + $0x8c0] sm:$0xff]
        %v530 = vld [vmem:[#allocation2 + $0x8c8] sm:$0xff]
        %v531 = vld [vmem:[#allocation2 + $0x8d0] sm:$0xff]
        %v532 = vld [vmem:[#allocation2 + $0x8d8] sm:$0xff]
        %v533 = vld [vmem:[#allocation2 + $0x8e0] sm:$0xff]
        %v534 = vld [vmem:[#allocation2 + $0x8e8] sm:$0xff]
        %v535 = vld [vmem:[#allocation2 + $0x8f0] sm:$0xff]
        %v536 = vld [vmem:[#allocation2 + $0x8f8] sm:$0xff]
        %v537 = vld [vmem:[#allocation2 + $0x900] sm:$0xff]
        %v538 = vld [vmem:[#allocation2 + $0x908] sm:$0xff]
        %v539 = vld [vmem:[#allocation2 + $0x910] sm:$0xff]
        %v540 = vld [vmem:[#allocation2 + $0x918] sm:$0xff]
        %v541 = vld [vmem:[#allocation2 + $0x920] sm:$0xff]
        %v542 = vld [vmem:[#allocation2 + $0x928] sm:$0xff]
        %v543 = vld [vmem:[#allocation2 + $0x930] sm:$0xff]
        %v544 = vld [vmem:[#allocation2 + $0x938] sm:$0xff]
        %v545 = vld [vmem:[#allocation2 + $0x940] sm:$0xff]
        %v546 = vld [vmem:[#allocation2 + $0x948] sm:$0xff]
        %v547 = vld [vmem:[#allocation2 + $0x950] sm:$0xff]
        %v548 = vld [vmem:[#allocation2 + $0x958] sm:$0xff]
        %v549 = vld [vmem:[#allocation2 + $0x960] sm:$0xff]
        %v550 = vld [vmem:[#allocation2 + $0x968] sm:$0xff]
        %v551 = vld [vmem:[#allocation2 + $0x970] sm:$0xff]
        %v552 = vld [vmem:[#allocation2 + $0x978] sm:$0xff]
        %v553 = vld [vmem:[#allocation2 + $0x980] sm:$0xff]
        %v554 = vld [vmem:[#allocation2 + $0x988] sm:$0xff]
        %v555 = vld [vmem:[#allocation2 + $0x990] sm:$0xff]
        %v556 = vld [vmem:[#allocation2 + $0x998] sm:$0xff]
        %v557 = vld [vmem:[#allocation2 + $0x9a0] sm:$0xff]
        %v558 = vld [vmem:[#allocation2 + $0x9a8] sm:$0xff]
        %v559 = vld [vmem:[#allocation2 + $0x9b0] sm:$0xff]
        %v560 = vld [vmem:[#allocation2 + $0x9b8] sm:$0xff]
        %v561 = vld [vmem:[#allocation2 + $0x9c0] sm:$0xff]
        %v562 = vld [vmem:[#allocation2 + $0x9c8] sm:$0xff]
        %v563 = vld [vmem:[#allocation2 + $0x9d0] sm:$0xff]
        %v564 = vld [vmem:[#allocation2 + $0x9d8] sm:$0xff]
        %v565 = vld [vmem:[#allocation2 + $0x9e0] sm:$0xff]
        %v566 = vld [vmem:[#allocation2 + $0x9e8] sm:$0xff]
        %v567 = vld [vmem:[#allocation2 + $0x9f0] sm:$0xff]
        %v568 = vld [vmem:[#allocation2 + $0x9f8] sm:$0xff]
        %v569 = vld [vmem:[#allocation2 + $0xa00] sm:$0xff]
        %v570 = vld [vmem:[#allocation2 + $0xa08] sm:$0xff]
        %v571 = vld [vmem:[#allocation2 + $0xa10] sm:$0xff]
        %v572 = vld [vmem:[#allocation2 + $0xa18] sm:$0xff]
        %v573 = vld [vmem:[#allocation2 + $0xa20] sm:$0xff]
        %v574 = vld [vmem:[#allocation2 + $0xa28] sm:$0xff]
        %v575 = vld [vmem:[#allocation2 + $0xa30] sm:$0xff]
        %v576 = vld [vmem:[#allocation2 + $0xa38] sm:$0xff]
        %v577 = vld [vmem:[#allocation2 + $0xa40] sm:$0xff]
        %v578 = vld [vmem:[#allocation2 + $0xa48] sm:$0xff]
        %v579 = vld [vmem:[#allocation2 + $0xa50] sm:$0xff]
        %v580 = vld [vmem:[#allocation2 + $0xa58] sm:$0xff]
        %v581 = vld [vmem:[#allocation2 + $0xa60] sm:$0xff]
        %v582 = vld [vmem:[#allocation2 + $0xa68] sm:$0xff]
        %v583 = vld [vmem:[#allocation2 + $0xa70] sm:$0xff]
        %v584 = vld [vmem:[#allocation2 + $0xa78] sm:$0xff]
        %v585 = vld [vmem:[#allocation2 + $0xa80] sm:$0xff]
        %v586 = vld [vmem:[#allocation2 + $0xa88] sm:$0xff]
        %v587 = vld [vmem:[#allocation2 + $0xa90] sm:$0xff]
        %v588 = vld [vmem:[#allocation2 + $0xa98] sm:$0xff]
        %v589 = vld [vmem:[#allocation2 + $0xaa0] sm:$0xff]
        %v590 = vld [vmem:[#allocation2 + $0xaa8] sm:$0xff]
        %v591 = vld [vmem:[#allocation2 + $0xab0] sm:$0xff]
        %v592 = vld [vmem:[#allocation2 + $0xab8] sm:$0xff]
        %v593 = vld [vmem:[#allocation2 + $0xac0] sm:$0xff]
        %v594 = vld [vmem:[#allocation2 + $0xac8] sm:$0xff]
        %v595 = vld [vmem:[#allocation2 + $0xad0] sm:$0xff]
        %v596 = vld [vmem:[#allocation2 + $0xad8] sm:$0xff]
        %v597 = vld [vmem:[#allocation2 + $0xae0] sm:$0xff]
        %v598 = vld [vmem:[#allocation2 + $0xae8] sm:$0xff]
        %v599 = vld [vmem:[#allocation2 + $0xaf0] sm:$0xff]
        %v600 = vld [vmem:[#allocation2 + $0xaf8] sm:$0xff]
        %v601 = vld [vmem:[#allocation2 + $0xb00] sm:$0xff]
        %v602 = vld [vmem:[#allocation2 + $0xb08] sm:$0xff]
        %v603 = vld [vmem:[#allocation2 + $0xb10] sm:$0xff]
        %v604 = vld [vmem:[#allocation2 + $0xb18] sm:$0xff]
        %v605 = vld [vmem:[#allocation2 + $0xb20] sm:$0xff]
        %v606 = vld [vmem:[#allocation2 + $0xb28] sm:$0xff]
        %v607 = vld [vmem:[#allocation2 + $0xb30] sm:$0xff]
        %v608 = vld [vmem:[#allocation2 + $0xb38] sm:$0xff]
        %v609 = vld [vmem:[#allocation2 + $0xb40] sm:$0xff]
        %v610 = vld [vmem:[#allocation2 + $0xb48] sm:$0xff]
        %v611 = vld [vmem:[#allocation2 + $0xb50] sm:$0xff]
        %v612 = vld [vmem:[#allocation2 + $0xb58] sm:$0xff]
        %v613 = vld [vmem:[#allocation2 + $0xb60] sm:$0xff]
        %v614 = vld [vmem:[#allocation2 + $0xb68] sm:$0xff]
        %v615 = vld [vmem:[#allocation2 + $0xb70] sm:$0xff]
        %v616 = vld [vmem:[#allocation2 + $0xb78] sm:$0xff]
        %v617 = vld [vmem:[#allocation2 + $0xb80] sm:$0xff]
        %v618 = vld [vmem:[#allocation2 + $0xb88] sm:$0xff]
        %v619 = vld [vmem:[#allocation2 + $0xb90] sm:$0xff]
        %v620 = vld [vmem:[#allocation2 + $0xb98] sm:$0xff]
        %v621 = vld [vmem:[#allocation2 + $0xba0] sm:$0xff]
        %v622 = vld [vmem:[#allocation2 + $0xba8] sm:$0xff]
        %v623 = vld [vmem:[#allocation2 + $0xbb0] sm:$0xff]
        %v624 = vld [vmem:[#allocation2 + $0xbb8] sm:$0xff]
        %v625 = vld [vmem:[#allocation2 + $0xbc0] sm:$0xff]
        %v626 = vld [vmem:[#allocation2 + $0xbc8] sm:$0xff]
        %v627 = vld [vmem:[#allocation2 + $0xbd0] sm:$0xff]
        %v628 = vld [vmem:[#allocation2 + $0xbd8] sm:$0xff]
        %v629 = vld [vmem:[#allocation2 + $0xbe0] sm:$0xff]
        %v630 = vld [vmem:[#allocation2 + $0xbe8] sm:$0xff]
        %v631 = vld [vmem:[#allocation2 + $0xbf0] sm:$0xff]
        %v632 = vld [vmem:[#allocation2 + $0xbf8] sm:$0xff]
        %v633 = vld [vmem:[#allocation2 + $0xc00] sm:$0xff]
        %v634 = vld [vmem:[#allocation2 + $0xc08] sm:$0xff]
        %v635 = vld [vmem:[#allocation2 + $0xc10] sm:$0xff]
        %v636 = vld [vmem:[#allocation2 + $0xc18] sm:$0xff]
        %v637 = vld [vmem:[#allocation2 + $0xc20] sm:$0xff]
        %v638 = vld [vmem:[#allocation2 + $0xc28] sm:$0xff]
        %v639 = vld [vmem:[#allocation2 + $0xc30] sm:$0xff]
        %v640 = vld [vmem:[#allocation2 + $0xc38] sm:$0xff]
        %v641 = vld [vmem:[#allocation2 + $0xc40] sm:$0xff]
        %v642 = vld [vmem:[#allocation2 + $0xc48] sm:$0xff]
        %v643 = vld [vmem:[#allocation2 + $0xc50] sm:$0xff]
        %v644 = vld [vmem:[#allocation2 + $0xc58] sm:$0xff]
        %v645 = vld [vmem:[#allocation2 + $0xc60] sm:$0xff]
        %v646 = vld [vmem:[#allocation2 + $0xc68] sm:$0xff]
        %v647 = vld [vmem:[#allocation2 + $0xc70] sm:$0xff]
        %v648 = vld [vmem:[#allocation2 + $0xc78] sm:$0xff]
        %v649 = vld [vmem:[#allocation2 + $0xc80] sm:$0xff]
        %v650 = vld [vmem:[#allocation2 + $0xc88] sm:$0xff]
        %v651 = vld [vmem:[#allocation2 + $0xc90] sm:$0xff]
        %v652 = vld [vmem:[#allocation2 + $0xc98] sm:$0xff]
        %v653 = vld [vmem:[#allocation2 + $0xca0] sm:$0xff]
        %v654 = vld [vmem:[#allocation2 + $0xca8] sm:$0xff]
        %v655 = vld [vmem:[#allocation2 + $0xcb0] sm:$0xff]
        %v656 = vld [vmem:[#allocation2 + $0xcb8] sm:$0xff]
        %v657 = vld [vmem:[#allocation2 + $0xcc0] sm:$0xff]
        %v658 = vld [vmem:[#allocation2 + $0xcc8] sm:$0xff]
        %v659 = vld [vmem:[#allocation2 + $0xcd0] sm:$0xff]
        %v660 = vld [vmem:[#allocation2 + $0xcd8] sm:$0xff]
        %v661 = vld [vmem:[#allocation2 + $0xce0] sm:$0xff]
        %v662 = vld [vmem:[#allocation2 + $0xce8] sm:$0xff]
        %v663 = vld [vmem:[#allocation2 + $0xcf0] sm:$0xff]
        %v664 = vld [vmem:[#allocation2 + $0xcf8] sm:$0xff]
        %v665 = vld [vmem:[#allocation2 + $0xd00] sm:$0xff]
        %v666 = vld [vmem:[#allocation2 + $0xd08] sm:$0xff]
        %v667 = vld [vmem:[#allocation2 + $0xd10] sm:$0xff]
        %v668 = vld [vmem:[#allocation2 + $0xd18] sm:$0xff]
        %v669 = vld [vmem:[#allocation2 + $0xd20] sm:$0xff]
        %v670 = vld [vmem:[#allocation2 + $0xd28] sm:$0xff]
        %v671 = vld [vmem:[#allocation2 + $0xd30] sm:$0xff]
        %v672 = vld [vmem:[#allocation2 + $0xd38] sm:$0xff]
        %v673 = vld [vmem:[#allocation2 + $0xd40] sm:$0xff]
        %v674 = vld [vmem:[#allocation2 + $0xd48] sm:$0xff]
        %v675 = vld [vmem:[#allocation2 + $0xd50] sm:$0xff]
        %v676 = vld [vmem:[#allocation2 + $0xd58] sm:$0xff]
        %v677 = vld [vmem:[#allocation2 + $0xd60] sm:$0xff]
        %v678 = vld [vmem:[#allocation2 + $0xd68] sm:$0xff]
        %v679 = vld [vmem:[#allocation2 + $0xd70] sm:$0xff]
        %v680 = vld [vmem:[#allocation2 + $0xd78] sm:$0xff]
        %v681 = vld [vmem:[#allocation2 + $0xd80] sm:$0xff]
        %v682 = vld [vmem:[#allocation2 + $0xd88] sm:$0xff]
        %v683 = vld [vmem:[#allocation2 + $0xd90] sm:$0xff]
        %v684 = vld [vmem:[#allocation2 + $0xd98] sm:$0xff]
        %v685 = vld [vmem:[#allocation2 + $0xda0] sm:$0xff]
        %v686 = vld [vmem:[#allocation2 + $0xda8] sm:$0xff]
        %v687 = vld [vmem:[#allocation2 + $0xdb0] sm:$0xff]
        %v688 = vld [vmem:[#allocation2 + $0xdb8] sm:$0xff]
        %v689 = vld [vmem:[#allocation2 + $0xdc0] sm:$0xff]
        %v690 = vld [vmem:[#allocation2 + $0xdc8] sm:$0xff]
        %v691 = vld [vmem:[#allocation2 + $0xdd0] sm:$0xff]
        %v692 = vld [vmem:[#allocation2 + $0xdd8] sm:$0xff]
        %v693 = vld [vmem:[#allocation2 + $0xde0] sm:$0xff]
        %v694 = vld [vmem:[#allocation2 + $0xde8] sm:$0xff]
        %v695 = vld [vmem:[#allocation2 + $0xdf0] sm:$0xff]
        %v696 = vld [vmem:[#allocation2 + $0xdf8] sm:$0xff]
        %v697 = vld [vmem:[#allocation2 + $0xe00] sm:$0xff]
        %v698 = vld [vmem:[#allocation2 + $0xe08] sm:$0xff]
        %v699 = vld [vmem:[#allocation2 + $0xe10] sm:$0xff]
        %v700 = vld [vmem:[#allocation2 + $0xe18] sm:$0xff]
        %v701 = vld [vmem:[#allocation2 + $0xe20] sm:$0xff]
        %v702 = vld [vmem:[#allocation2 + $0xe28] sm:$0xff]
        %v703 = vld [vmem:[#allocation2 + $0xe30] sm:$0xff]
        %v704 = vld [vmem:[#allocation2 + $0xe38] sm:$0xff]
        %v705 = vld [vmem:[#allocation2 + $0xe40] sm:$0xff]
        %v706 = vld [vmem:[#allocation2 + $0xe48] sm:$0xff]
        %v707 = vld [vmem:[#allocation2 + $0xe50] sm:$0xff]
        %v708 = vld [vmem:[#allocation2 + $0xe58] sm:$0xff]
        %v709 = vld [vmem:[#allocation2 + $0xe60] sm:$0xff]
        %v710 = vld [vmem:[#allocation2 + $0xe68] sm:$0xff]
        %v711 = vld [vmem:[#allocation2 + $0xe70] sm:$0xff]
        %v712 = vld [vmem:[#allocation2 + $0xe78] sm:$0xff]
        %v713 = vld [vmem:[#allocation2 + $0xe80] sm:$0xff]
        %v714 = vld [vmem:[#allocation2 + $0xe88] sm:$0xff]
        %v715 = vld [vmem:[#allocation2 + $0xe90] sm:$0xff]
        %v716 = vld [vmem:[#allocation2 + $0xe98] sm:$0xff]
        %v717 = vld [vmem:[#allocation2 + $0xea0] sm:$0xff]
        %v718 = vld [vmem:[#allocation2 + $0xea8] sm:$0xff]
        %v719 = vld [vmem:[#allocation2 + $0xeb0] sm:$0xff]
        %v720 = vld [vmem:[#allocation2 + $0xeb8] sm:$0xff]
        %v721 = vld [vmem:[#allocation2 + $0xec0] sm:$0xff]
        %v722 = vld [vmem:[#allocation2 + $0xec8] sm:$0xff]
        %v723 = vld [vmem:[#allocation2 + $0xed0] sm:$0xff]
        %v724 = vld [vmem:[#allocation2 + $0xed8] sm:$0xff]
        %v725 = vld [vmem:[#allocation2 + $0xee0] sm:$0xff]
        %v726 = vld [vmem:[#allocation2 + $0xee8] sm:$0xff]
        %v727 = vld [vmem:[#allocation2 + $0xef0] sm:$0xff]
        %v728 = vld [vmem:[#allocation2 + $0xef8] sm:$0xff]
        %v729 = vld [vmem:[#allocation2 + $0xf00] sm:$0xff]
        %v730 = vld [vmem:[#allocation2 + $0xf08] sm:$0xff]
        %v731 = vld [vmem:[#allocation2 + $0xf10] sm:$0xff]
        %v732 = vld [vmem:[#allocation2 + $0xf18] sm:$0xff]
        %v733 = vld [vmem:[#allocation2 + $0xf20] sm:$0xff]
        %v734 = vld [vmem:[#allocation2 + $0xf28] sm:$0xff]
        %v735 = vld [vmem:[#allocation2 + $0xf30] sm:$0xff]
        %v736 = vld [vmem:[#allocation2 + $0xf38] sm:$0xff]
        %v737 = vld [vmem:[#allocation2 + $0xf40] sm:$0xff]
        %v738 = vld [vmem:[#allocation2 + $0xf48] sm:$0xff]
        %v739 = vld [vmem:[#allocation2 + $0xf50] sm:$0xff]
        %v740 = vld [vmem:[#allocation2 + $0xf58] sm:$0xff]
        %v741 = vld [vmem:[#allocation2 + $0xf60] sm:$0xff]
        %v742 = vld [vmem:[#allocation2 + $0xf68] sm:$0xff]
        %v743 = vld [vmem:[#allocation2 + $0xf70] sm:$0xff]
        %v744 = vld [vmem:[#allocation2 + $0xf78] sm:$0xff]
        %v745 = vld [vmem:[#allocation2 + $0xf80] sm:$0xff]
        %v746 = vld [vmem:[#allocation2 + $0xf88] sm:$0xff]
        %v747 = vld [vmem:[#allocation2 + $0xf90] sm:$0xff]
        %v748 = vld [vmem:[#allocation2 + $0xf98] sm:$0xff]
        %v749 = vld [vmem:[#allocation2 + $0xfa0] sm:$0xff]
        %v750 = vld [vmem:[#allocation2 + $0xfa8] sm:$0xff]
        %v751 = vld [vmem:[#allocation2 + $0xfb0] sm:$0xff]
        %v752 = vld [vmem:[#allocation2 + $0xfb8] sm:$0xff]
        %v753 = vld [vmem:[#allocation2 + $0xfc0] sm:$0xff]
        %v754 = vld [vmem:[#allocation2 + $0xfc8] sm:$0xff]
        %v755 = vld [vmem:[#allocation2 + $0xfd0] sm:$0xff]
        %v756 = vld [vmem:[#allocation2 + $0xfd8] sm:$0xff]
        %v757 = vld [vmem:[#allocation2 + $0xfe0] sm:$0xff]
        %v758 = vld [vmem:[#allocation2 + $0xfe8] sm:$0xff]
        %v759 = vld [vmem:[#allocation2 + $0xff0] sm:$0xff]
        %v760 = vld [vmem:[#allocation2 + $0xff8] sm:$0xff]
        %v761 = vld [vmem:[#allocation2 + $0x1000] sm:$0xff]
        %v762 = vld [vmem:[#allocation2 + $0x1008] sm:$0xff]
        %v763 = vld [vmem:[#allocation2 + $0x1010] sm:$0xff]
        %v764 = vld [vmem:[#allocation2 + $0x1018] sm:$0xff]
        %v765 = vld [vmem:[#allocation2 + $0x1020] sm:$0xff]
        %v766 = vld [vmem:[#allocation2 + $0x1028] sm:$0xff]
        %v767 = vld [vmem:[#allocation2 + $0x1030] sm:$0xff]
        %v768 = vld [vmem:[#allocation2 + $0x1038] sm:$0xff]
        %v769 = vld [vmem:[#allocation2 + $0x1040] sm:$0xff]
        %v770 = vld [vmem:[#allocation2 + $0x1048] sm:$0xff]
        %v771 = vld [vmem:[#allocation2 + $0x1050] sm:$0xff]
        %v772 = vld [vmem:[#allocation2 + $0x1058] sm:$0xff]
        %v773 = vld [vmem:[#allocation2 + $0x1060] sm:$0xff]
        %v774 = vld [vmem:[#allocation2 + $0x1068] sm:$0xff]
        %v775 = vld [vmem:[#allocation2 + $0x1070] sm:$0xff]
        %v776 = vld [vmem:[#allocation2 + $0x1078] sm:$0xff]
        %v777 = vld [vmem:[#allocation2 + $0x1080] sm:$0xff]
        %v778 = vld [vmem:[#allocation2 + $0x1088] sm:$0xff]
        %v779 = vld [vmem:[#allocation2 + $0x1090] sm:$0xff]
        %v780 = vld [vmem:[#allocation2 + $0x1098] sm:$0xff]
        %v781 = vld [vmem:[#allocation2 + $0x10a0] sm:$0xff]
        %v782 = vld [vmem:[#allocation2 + $0x10a8] sm:$0xff]
        %v783 = vld [vmem:[#allocation2 + $0x10b0] sm:$0xff]
        %v784 = vld [vmem:[#allocation2 + $0x10b8] sm:$0xff]
        %v785 = vld [vmem:[#allocation2 + $0x10c0] sm:$0xff]
        %v786 = vld [vmem:[#allocation2 + $0x10c8] sm:$0xff]
        %v787 = vld [vmem:[#allocation2 + $0x10d0] sm:$0xff]
        %v788 = vld [vmem:[#allocation2 + $0x10d8] sm:$0xff]
        %v789 = vld [vmem:[#allocation2 + $0x10e0] sm:$0xff]
        %v790 = vld [vmem:[#allocation2 + $0x10e8] sm:$0xff]
        %v791 = vld [vmem:[#allocation2 + $0x10f0] sm:$0xff]
        %v792 = vld [vmem:[#allocation2 + $0x10f8] sm:$0xff]
        %v793 = vld [vmem:[#allocation2 + $0x1100] sm:$0xff]
        %v794 = vld [vmem:[#allocation2 + $0x1108] sm:$0xff]
        %v795 = vld [vmem:[#allocation2 + $0x1110] sm:$0xff]
        %v796 = vld [vmem:[#allocation2 + $0x1118] sm:$0xff]
        %v797 = vld [vmem:[#allocation2 + $0x1120] sm:$0xff]
        %v798 = vld [vmem:[#allocation2 + $0x1128] sm:$0xff]
        %v799 = vld [vmem:[#allocation2 + $0x1130] sm:$0xff]
        %v800 = vld [vmem:[#allocation2 + $0x1138] sm:$0xff]
        %v801 = vld [vmem:[#allocation2 + $0x1140] sm:$0xff]
        %v802 = vld [vmem:[#allocation2 + $0x1148] sm:$0xff]
        %v803 = vld [vmem:[#allocation2 + $0x1150] sm:$0xff]
        %v804 = vld [vmem:[#allocation2 + $0x1158] sm:$0xff]
        %v805 = vld [vmem:[#allocation2 + $0x1160] sm:$0xff]
        %v806 = vld [vmem:[#allocation2 + $0x1168] sm:$0xff]
        %v807 = vld [vmem:[#allocation2 + $0x1170] sm:$0xff]
        %v808 = vld [vmem:[#allocation2 + $0x1178] sm:$0xff]
        %v809 = vld [vmem:[#allocation2 + $0x1180] sm:$0xff]
        %v810 = vld [vmem:[#allocation2 + $0x1188] sm:$0xff]
        %v811 = vld [vmem:[#allocation2 + $0x1190] sm:$0xff]
        %v812 = vld [vmem:[#allocation2 + $0x1198] sm:$0xff]
        %v813 = vld [vmem:[#allocation2 + $0x11a0] sm:$0xff]
        %v814 = vld [vmem:[#allocation2 + $0x11a8] sm:$0xff]
        %v815 = vld [vmem:[#allocation2 + $0x11b0] sm:$0xff]
        %v816 = vld [vmem:[#allocation2 + $0x11b8] sm:$0xff]
        %v817 = vld [vmem:[#allocation2 + $0x11c0] sm:$0xff]
        %v818 = vld [vmem:[#allocation2 + $0x11c8] sm:$0xff]
        %v819 = vld [vmem:[#allocation2 + $0x11d0] sm:$0xff]
        %v820 = vld [vmem:[#allocation2 + $0x11d8] sm:$0xff]
        %v821 = vld [vmem:[#allocation2 + $0x11e0] sm:$0xff]
        %v822 = vld [vmem:[#allocation2 + $0x11e8] sm:$0xff]
        %v823 = vld [vmem:[#allocation2 + $0x11f0] sm:$0xff]
        %v824 = vld [vmem:[#allocation2 + $0x11f8] sm:$0xff]
        %v827 = vunpack.c.l.s4 1983009808
        %v828 = vunpack.c.0.s8 %v827
        %v829 = vlaneseq
        %v830 = vshrl.u32 %v829, 7
        %v831 = vsub.s32 %v828, %v830
        %v832 = vrot.slane %v248, %v831
        %v833 = vcombine.high %v832, %v832
        %836 = vmatprep.subr.mxu0 %v250
        %837 = vmatpush1.msra.mxu0 %v249
        %838 = vmatprep.subr.mxu0 %v268
        %839 = vmatpush1.msra.mxu0 %v267
        %840 = vmatprep.subr.mxu0 %v286
        %841 = vmatpush1.msra.mxu0 %v285
        %842 = vmatprep.subr.mxu0 %v304
        %843 = vmatpush1.msra.mxu0 %v303
        %844 = vmatprep.subr.mxu0 %v322
        %845 = vmatpush1.msra.mxu0 %v321
        %846 = vmatprep.subr.mxu0 %v340
        %847 = vmatpush1.msra.mxu0 %v339
        %848 = vmatprep.subr.mxu0 %v358
        %849 = vmatpush1.msra.mxu0 %v357
        %850 = vmatprep.subr.mxu0 %v376
        %851 = vmatpush1.msra.mxu0 %v375
        %852 = vmatprep.subr.mxu0 %v394
        %853 = vmatpush1.msra.mxu0 %v393
        %854 = vmatprep.subr.mxu0 %v412
        %855 = vmatpush1.msra.mxu0 %v411
        %856 = vmatprep.subr.mxu0 %v430
        %857 = vmatpush1.msra.mxu0 %v429
        %858 = vmatprep.subr.mxu0 %v448
        %859 = vmatpush1.msra.mxu0 %v447
        %860 = vmatprep.subr.mxu0 %v466
        %861 = vmatpush1.msra.mxu0 %v465
        %862 = vmatprep.subr.mxu0 %v484
        %863 = vmatpush1.msra.mxu0 %v483
        %864 = vmatprep.subr.mxu0 %v502
        %865 = vmatpush1.msra.mxu0 %v501
        %866 = vmatprep.subr.mxu0 %v520
        %867 = vmatpush1.msra.mxu0 %v519
        %868 = vmatprep.subr.mxu0 %v538
        %869 = vmatpush1.msra.mxu0 %v537
        %870 = vmatprep.subr.mxu0 %v556
        %871 = vmatpush1.msra.mxu0 %v555
        %872 = vmatprep.subr.mxu0 %v574
        %873 = vmatpush1.msra.mxu0 %v573
        %874 = vmatprep.subr.mxu0 %v592
        %875 = vmatpush1.msra.mxu0 %v591
        %876 = vmatprep.subr.mxu0 %v610
        %877 = vmatpush1.msra.mxu0 %v609
        %878 = vmatprep.subr.mxu0 %v628
        %879 = vmatpush1.msra.mxu0 %v627
        %880 = vmatprep.subr.mxu0 %v646
        %881 = vmatpush1.msra.mxu0 %v645
        %882 = vmatprep.subr.mxu0 %v664
        %883 = vmatpush1.msra.mxu0 %v663
        %884 = vmatprep.subr.mxu0 %v682
        %885 = vmatpush1.msra.mxu0 %v681
        %886 = vmatprep.subr.mxu0 %v700
        %887 = vmatpush1.msra.mxu0 %v699
        %888 = vmatprep.subr.mxu0 %v718
        %889 = vmatpush1.msra.mxu0 %v717
        %890 = vmatprep.subr.mxu0 %v736
        %891 = vmatpush1.msra.mxu0 %v735
        %892 = vmatprep.subr.mxu0 %v754
        %893 = vmatpush1.msra.mxu0 %v753
        %894 = vmatprep.subr.mxu0 %v772
        %895 = vmatpush1.msra.mxu0 %v771
        %896 = vmatprep.subr.mxu0 %v790
        %897 = vmatpush1.msra.mxu0 %v789
        %898 = vmatprep.subr.mxu0 %v808
        %899 = vmatpush1.msra.mxu0 %v807
        %900 = vmatprep.mubr.f32.mxu0 %v833
        %901 = vmatmul.mubr.f32.gmra.mrb[0].mxu0 %v832
        %v902 = vpop.f32.mrb[0].mxu0
        %v903 = vadd.f32 0.0, %v902
        %v904 = vpop.f32.mrb[0].mxu0
        %v905 = vadd.f32 0.0, %v904
        %906 = vdwg.mxu0
        %907 = vmatprep.subr.mxu0 %v252
        %908 = vmatpush1.msra.mxu0 %v251
        %909 = vmatprep.subr.mxu0 %v270
        %910 = vmatpush1.msra.mxu0 %v269
        %911 = vmatprep.subr.mxu0 %v288
        %912 = vmatpush1.msra.mxu0 %v287
        %913 = vmatprep.subr.mxu0 %v306
        %914 = vmatpush1.msra.mxu0 %v305
        %915 = vmatprep.subr.mxu0 %v324
        %916 = vmatpush1.msra.mxu0 %v323
        %917 = vmatprep.subr.mxu0 %v342
        %918 = vmatpush1.msra.mxu0 %v341
        %919 = vmatprep.subr.mxu0 %v360
        %920 = vmatpush1.msra.mxu0 %v359
        %921 = vmatprep.subr.mxu0 %v378
        %922 = vmatpush1.msra.mxu0 %v377
        %923 = vmatprep.subr.mxu0 %v396
        %924 = vmatpush1.msra.mxu0 %v395
        %925 = vmatprep.subr.mxu0 %v414
        %926 = vmatpush1.msra.mxu0 %v413
        %927 = vmatprep.subr.mxu0 %v432
        %928 = vmatpush1.msra.mxu0 %v431
        %929 = vmatprep.subr.mxu0 %v450
        %930 = vmatpush1.msra.mxu0 %v449
        %931 = vmatprep.subr.mxu0 %v468
        %932 = vmatpush1.msra.mxu0 %v467
        %933 = vmatprep.subr.mxu0 %v486
        %934 = vmatpush1.msra.mxu0 %v485
        %935 = vmatprep.subr.mxu0 %v504
        %936 = vmatpush1.msra.mxu0 %v503
        %937 = vmatprep.subr.mxu0 %v522
        %938 = vmatpush1.msra.mxu0 %v521
        %939 = vmatprep.subr.mxu0 %v540
        %940 = vmatpush1.msra.mxu0 %v539
        %941 = vmatprep.subr.mxu0 %v558
        %942 = vmatpush1.msra.mxu0 %v557
        %943 = vmatprep.subr.mxu0 %v576
        %944 = vmatpush1.msra.mxu0 %v575
        %945 = vmatprep.subr.mxu0 %v594
        %946 = vmatpush1.msra.mxu0 %v593
        %947 = vmatprep.subr.mxu0 %v612
        %948 = vmatpush1.msra.mxu0 %v611
        %949 = vmatprep.subr.mxu0 %v630
        %950 = vmatpush1.msra.mxu0 %v629
        %951 = vmatprep.subr.mxu0 %v648
        %952 = vmatpush1.msra.mxu0 %v647
        %953 = vmatprep.subr.mxu0 %v666
        %954 = vmatpush1.msra.mxu0 %v665
        %955 = vmatprep.subr.mxu0 %v684
        %956 = vmatpush1.msra.mxu0 %v683
        %957 = vmatprep.subr.mxu0 %v702
        %958 = vmatpush1.msra.mxu0 %v701
        %959 = vmatprep.subr.mxu0 %v720
        %960 = vmatpush1.msra.mxu0 %v719
        %961 = vmatprep.subr.mxu0 %v738
        %962 = vmatpush1.msra.mxu0 %v737
        %963 = vmatprep.subr.mxu0 %v756
        %964 = vmatpush1.msra.mxu0 %v755
        %965 = vmatprep.subr.mxu0 %v774
        %966 = vmatpush1.msra.mxu0 %v773
        %967 = vmatprep.subr.mxu0 %v792
        %968 = vmatpush1.msra.mxu0 %v791
        %969 = vmatprep.subr.mxu0 %v810
        %970 = vmatpush1.msra.mxu0 %v809
        %971 = vmatprep.mubr.f32.mxu0 %v833
        %972 = vmatmul.mubr.f32.gmra.mrb[0].mxu0 %v832
        %v973 = vpop.f32.mrb[0].mxu0
        %v974 = vadd.f32 0.0, %v973
        %v975 = vpop.f32.mrb[0].mxu0
        %v976 = vadd.f32 0.0, %v975
        %977 = vdwg.mxu0
        %978 = vmatprep.subr.mxu0 %v254
        %979 = vmatpush1.msra.mxu0 %v253
        %980 = vmatprep.subr.mxu0 %v272
        %981 = vmatpush1.msra.mxu0 %v271
        %982 = vmatprep.subr.mxu0 %v290
        %983 = vmatpush1.msra.mxu0 %v289
        %984 = vmatprep.subr.mxu0 %v308
        %985 = vmatpush1.msra.mxu0 %v307
        %986 = vmatprep.subr.mxu0 %v326
        %987 = vmatpush1.msra.mxu0 %v325
        %988 = vmatprep.subr.mxu0 %v344
        %989 = vmatpush1.msra.mxu0 %v343
        %990 = vmatprep.subr.mxu0 %v362
        %991 = vmatpush1.msra.mxu0 %v361
        %992 = vmatprep.subr.mxu0 %v380
        %993 = vmatpush1.msra.mxu0 %v379
        %994 = vmatprep.subr.mxu0 %v398
        %995 = vmatpush1.msra.mxu0 %v397
        %996 = vmatprep.subr.mxu0 %v416
        %997 = vmatpush1.msra.mxu0 %v415
        %998 = vmatprep.subr.mxu0 %v434
        %999 = vmatpush1.msra.mxu0 %v433
        %1000 = vmatprep.subr.mxu0 %v452
        %1001 = vmatpush1.msra.mxu0 %v451
        %1002 = vmatprep.subr.mxu0 %v470
        %1003 = vmatpush1.msra.mxu0 %v469
        %1004 = vmatprep.subr.mxu0 %v488
        %1005 = vmatpush1.msra.mxu0 %v487
        %1006 = vmatprep.subr.mxu0 %v506
        %1007 = vmatpush1.msra.mxu0 %v505
        %1008 = vmatprep.subr.mxu0 %v524
        %1009 = vmatpush1.msra.mxu0 %v523
        %1010 = vmatprep.subr.mxu0 %v542
        %1011 = vmatpush1.msra.mxu0 %v541
        %1012 = vmatprep.subr.mxu0 %v560
        %1013 = vmatpush1.msra.mxu0 %v559
        %1014 = vmatprep.subr.mxu0 %v578
        %1015 = vmatpush1.msra.mxu0 %v577
        %1016 = vmatprep.subr.mxu0 %v596
        %1017 = vmatpush1.msra.mxu0 %v595
        %1018 = vmatprep.subr.mxu0 %v614
        %1019 = vmatpush1.msra.mxu0 %v613
        %1020 = vmatprep.subr.mxu0 %v632
        %1021 = vmatpush1.msra.mxu0 %v631
        %1022 = vmatprep.subr.mxu0 %v650
        %1023 = vmatpush1.msra.mxu0 %v649
        %1024 = vmatprep.subr.mxu0 %v668
        %1025 = vmatpush1.msra.mxu0 %v667
        %1026 = vmatprep.subr.mxu0 %v686
        %1027 = vmatpush1.msra.mxu0 %v685
        %1028 = vmatprep.subr.mxu0 %v704
        %1029 = vmatpush1.msra.mxu0 %v703
        %1030 = vmatprep.subr.mxu0 %v722
        %1031 = vmatpush1.msra.mxu0 %v721
        %1032 = vmatprep.subr.mxu0 %v740
        %1033 = vmatpush1.msra.mxu0 %v739
        %1034 = vmatprep.subr.mxu0 %v758
        %1035 = vmatpush1.msra.mxu0 %v757
        %1036 = vmatprep.subr.mxu0 %v776
        %1037 = vmatpush1.msra.mxu0 %v775
        %1038 = vmatprep.subr.mxu0 %v794
        %1039 = vmatpush1.msra.mxu0 %v793
        %1040 = vmatprep.subr.mxu0 %v812
        %1041 = vmatpush1.msra.mxu0 %v811
        %1042 = vmatprep.mubr.f32.mxu0 %v833
        %1043 = vmatmul.mubr.f32.gmra.mrb[0].mxu0 %v832
        %v1044 = vpop.f32.mrb[0].mxu0
        %v1045 = vadd.f32 0.0, %v1044
        %v1046 = vpop.f32.mrb[0].mxu0
        %v1047 = vadd.f32 0.0, %v1046
        %1048 = vdwg.mxu0
        %1049 = vmatprep.subr.mxu0 %v256
        %1050 = vmatpush1.msra.mxu0 %v255
        %1051 = vmatprep.subr.mxu0 %v274
        %1052 = vmatpush1.msra.mxu0 %v273
        %1053 = vmatprep.subr.mxu0 %v292
        %1054 = vmatpush1.msra.mxu0 %v291
        %1055 = vmatprep.subr.mxu0 %v310
        %1056 = vmatpush1.msra.mxu0 %v309
        %1057 = vmatprep.subr.mxu0 %v328
        %1058 = vmatpush1.msra.mxu0 %v327
        %1059 = vmatprep.subr.mxu0 %v346
        %1060 = vmatpush1.msra.mxu0 %v345
        %1061 = vmatprep.subr.mxu0 %v364
        %1062 = vmatpush1.msra.mxu0 %v363
        %1063 = vmatprep.subr.mxu0 %v382
        %1064 = vmatpush1.msra.mxu0 %v381
        %1065 = vmatprep.subr.mxu0 %v400
        %1066 = vmatpush1.msra.mxu0 %v399
        %1067 = vmatprep.subr.mxu0 %v418
        %1068 = vmatpush1.msra.mxu0 %v417
        %1069 = vmatprep.subr.mxu0 %v436
        %1070 = vmatpush1.msra.mxu0 %v435
        %1071 = vmatprep.subr.mxu0 %v454
        %1072 = vmatpush1.msra.mxu0 %v453
        %1073 = vmatprep.subr.mxu0 %v472
        %1074 = vmatpush1.msra.mxu0 %v471
        %1075 = vmatprep.subr.mxu0 %v490
        %1076 = vmatpush1.msra.mxu0 %v489
        %1077 = vmatprep.subr.mxu0 %v508
        %1078 = vmatpush1.msra.mxu0 %v507
        %1079 = vmatprep.subr.mxu0 %v526
        %1080 = vmatpush1.msra.mxu0 %v525
        %1081 = vmatprep.subr.mxu0 %v544
        %1082 = vmatpush1.msra.mxu0 %v543
        %1083 = vmatprep.subr.mxu0 %v562
        %1084 = vmatpush1.msra.mxu0 %v561
        %1085 = vmatprep.subr.mxu0 %v580
        %1086 = vmatpush1.msra.mxu0 %v579
        %1087 = vmatprep.subr.mxu0 %v598
        %1088 = vmatpush1.msra.mxu0 %v597
        %1089 = vmatprep.subr.mxu0 %v616
        %1090 = vmatpush1.msra.mxu0 %v615
        %1091 = vmatprep.subr.mxu0 %v634
        %1092 = vmatpush1.msra.mxu0 %v633
        %1093 = vmatprep.subr.mxu0 %v652
        %1094 = vmatpush1.msra.mxu0 %v651
        %1095 = vmatprep.subr.mxu0 %v670
        %1096 = vmatpush1.msra.mxu0 %v669
        %1097 = vmatprep.subr.mxu0 %v688
        %1098 = vmatpush1.msra.mxu0 %v687
        %1099 = vmatprep.subr.mxu0 %v706
        %1100 = vmatpush1.msra.mxu0 %v705
        %1101 = vmatprep.subr.mxu0 %v724
        %1102 = vmatpush1.msra.mxu0 %v723
        %1103 = vmatprep.subr.mxu0 %v742
        %1104 = vmatpush1.msra.mxu0 %v741
        %1105 = vmatprep.subr.mxu0 %v760
        %1106 = vmatpush1.msra.mxu0 %v759
        %1107 = vmatprep.subr.mxu0 %v778
        %1108 = vmatpush1.msra.mxu0 %v777
        %1109 = vmatprep.subr.mxu0 %v796
        %1110 = vmatpush1.msra.mxu0 %v795
        %1111 = vmatprep.subr.mxu0 %v814
        %1112 = vmatpush1.msra.mxu0 %v813
        %1113 = vmatprep.mubr.f32.mxu0 %v833
        %1114 = vmatmul.mubr.f32.gmra.mrb[0].mxu0 %v832
        %v1115 = vpop.f32.mrb[0].mxu0
        %v1116 = vadd.f32 0.0, %v1115
        %v1117 = vpop.f32.mrb[0].mxu0
        %v1118 = vadd.f32 0.0, %v1117
        %1119 = vdwg.mxu0
        %1120 = vmatprep.subr.mxu0 %v258
        %1121 = vmatpush1.msra.mxu0 %v257
        %1122 = vmatprep.subr.mxu0 %v276
        %1123 = vmatpush1.msra.mxu0 %v275
        %1124 = vmatprep.subr.mxu0 %v294
        %1125 = vmatpush1.msra.mxu0 %v293
        %1126 = vmatprep.subr.mxu0 %v312
        %1127 = vmatpush1.msra.mxu0 %v311
        %1128 = vmatprep.subr.mxu0 %v330
        %1129 = vmatpush1.msra.mxu0 %v329
        %1130 = vmatprep.subr.mxu0 %v348
        %1131 = vmatpush1.msra.mxu0 %v347
        %1132 = vmatprep.subr.mxu0 %v366
        %1133 = vmatpush1.msra.mxu0 %v365
        %1134 = vmatprep.subr.mxu0 %v384
        %1135 = vmatpush1.msra.mxu0 %v383
        %1136 = vmatprep.subr.mxu0 %v402
        %1137 = vmatpush1.msra.mxu0 %v401
        %1138 = vmatprep.subr.mxu0 %v420
        %1139 = vmatpush1.msra.mxu0 %v419
        %1140 = vmatprep.subr.mxu0 %v438
        %1141 = vmatpush1.msra.mxu0 %v437
        %1142 = vmatprep.subr.mxu0 %v456
        %1143 = vmatpush1.msra.mxu0 %v455
        %1144 = vmatprep.subr.mxu0 %v474
        %1145 = vmatpush1.msra.mxu0 %v473
        %1146 = vmatprep.subr.mxu0 %v492
        %1147 = vmatpush1.msra.mxu0 %v491
        %1148 = vmatprep.subr.mxu0 %v510
        %1149 = vmatpush1.msra.mxu0 %v509
        %1150 = vmatprep.subr.mxu0 %v528
        %1151 = vmatpush1.msra.mxu0 %v527
        %1152 = vmatprep.subr.mxu0 %v546
        %1153 = vmatpush1.msra.mxu0 %v545
        %1154 = vmatprep.subr.mxu0 %v564
        %1155 = vmatpush1.msra.mxu0 %v563
        %1156 = vmatprep.subr.mxu0 %v582
        %1157 = vmatpush1.msra.mxu0 %v581
        %1158 = vmatprep.subr.mxu0 %v600
        %1159 = vmatpush1.msra.mxu0 %v599
        %1160 = vmatprep.subr.mxu0 %v618
        %1161 = vmatpush1.msra.mxu0 %v617
        %1162 = vmatprep.subr.mxu0 %v636
        %1163 = vmatpush1.msra.mxu0 %v635
        %1164 = vmatprep.subr.mxu0 %v654
        %1165 = vmatpush1.msra.mxu0 %v653
        %1166 = vmatprep.subr.mxu0 %v672
        %1167 = vmatpush1.msra.mxu0 %v671
        %1168 = vmatprep.subr.mxu0 %v690
        %1169 = vmatpush1.msra.mxu0 %v689
        %1170 = vmatprep.subr.mxu0 %v708
        %1171 = vmatpush1.msra.mxu0 %v707
        %1172 = vmatprep.subr.mxu0 %v726
        %1173 = vmatpush1.msra.mxu0 %v725
        %1174 = vmatprep.subr.mxu0 %v744
        %1175 = vmatpush1.msra.mxu0 %v743
        %1176 = vmatprep.subr.mxu0 %v762
        %1177 = vmatpush1.msra.mxu0 %v761
        %1178 = vmatprep.subr.mxu0 %v780
        %1179 = vmatpush1.msra.mxu0 %v779
        %1180 = vmatprep.subr.mxu0 %v798
        %1181 = vmatpush1.msra.mxu0 %v797
        %1182 = vmatprep.subr.mxu0 %v816
        %1183 = vmatpush1.msra.mxu0 %v815
        %1184 = vmatprep.mubr.f32.mxu0 %v833
        %1185 = vmatmul.mubr.f32.gmra.mrb[0].mxu0 %v832
        %v1186 = vpop.f32.mrb[0].mxu0
        %v1187 = vadd.f32 0.0, %v1186
        %v1188 = vpop.f32.mrb[0].mxu0
        %v1189 = vadd.f32 0.0, %v1188
        %1190 = vdwg.mxu0
        %1191 = vmatprep.subr.mxu0 %v260
        %1192 = vmatpush1.msra.mxu0 %v259
        %1193 = vmatprep.subr.mxu0 %v278
        %1194 = vmatpush1.msra.mxu0 %v277
        %1195 = vmatprep.subr.mxu0 %v296
        %1196 = vmatpush1.msra.mxu0 %v295
        %1197 = vmatprep.subr.mxu0 %v314
        %1198 = vmatpush1.msra.mxu0 %v313
        %1199 = vmatprep.subr.mxu0 %v332
        %1200 = vmatpush1.msra.mxu0 %v331
        %1201 = vmatprep.subr.mxu0 %v350
        %1202 = vmatpush1.msra.mxu0 %v349
        %1203 = vmatprep.subr.mxu0 %v368
        %1204 = vmatpush1.msra.mxu0 %v367
        %1205 = vmatprep.subr.mxu0 %v386
        %1206 = vmatpush1.msra.mxu0 %v385
        %1207 = vmatprep.subr.mxu0 %v404
        %1208 = vmatpush1.msra.mxu0 %v403
        %1209 = vmatprep.subr.mxu0 %v422
        %1210 = vmatpush1.msra.mxu0 %v421
        %1211 = vmatprep.subr.mxu0 %v440
        %1212 = vmatpush1.msra.mxu0 %v439
        %1213 = vmatprep.subr.mxu0 %v458
        %1214 = vmatpush1.msra.mxu0 %v457
        %1215 = vmatprep.subr.mxu0 %v476
        %1216 = vmatpush1.msra.mxu0 %v475
        %1217 = vmatprep.subr.mxu0 %v494
        %1218 = vmatpush1.msra.mxu0 %v493
        %1219 = vmatprep.subr.mxu0 %v512
        %1220 = vmatpush1.msra.mxu0 %v511
        %1221 = vmatprep.subr.mxu0 %v530
        %1222 = vmatpush1.msra.mxu0 %v529
        %1223 = vmatprep.subr.mxu0 %v548
        %1224 = vmatpush1.msra.mxu0 %v547
        %1225 = vmatprep.subr.mxu0 %v566
        %1226 = vmatpush1.msra.mxu0 %v565
        %1227 = vmatprep.subr.mxu0 %v584
        %1228 = vmatpush1.msra.mxu0 %v583
        %1229 = vmatprep.subr.mxu0 %v602
        %1230 = vmatpush1.msra.mxu0 %v601
        %1231 = vmatprep.subr.mxu0 %v620
        %1232 = vmatpush1.msra.mxu0 %v619
        %1233 = vmatprep.subr.mxu0 %v638
        %1234 = vmatpush1.msra.mxu0 %v637
        %1235 = vmatprep.subr.mxu0 %v656
        %1236 = vmatpush1.msra.mxu0 %v655
        %1237 = vmatprep.subr.mxu0 %v674
        %1238 = vmatpush1.msra.mxu0 %v673
        %1239 = vmatprep.subr.mxu0 %v692
        %1240 = vmatpush1.msra.mxu0 %v691
        %1241 = vmatprep.subr.mxu0 %v710
        %1242 = vmatpush1.msra.mxu0 %v709
        %1243 = vmatprep.subr.mxu0 %v728
        %1244 = vmatpush1.msra.mxu0 %v727
        %1245 = vmatprep.subr.mxu0 %v746
        %1246 = vmatpush1.msra.mxu0 %v745
        %1247 = vmatprep.subr.mxu0 %v764
        %1248 = vmatpush1.msra.mxu0 %v763
        %1249 = vmatprep.subr.mxu0 %v782
        %1250 = vmatpush1.msra.mxu0 %v781
        %1251 = vmatprep.subr.mxu0 %v800
        %1252 = vmatpush1.msra.mxu0 %v799
        %1253 = vmatprep.subr.mxu0 %v818
        %1254 = vmatpush1.msra.mxu0 %v817
        %1255 = vmatprep.mubr.f32.mxu0 %v833
        %1256 = vmatmul.mubr.f32.gmra.mrb[0].mxu0 %v832
        %v1257 = vpop.f32.mrb[0].mxu0
        %v1258 = vadd.f32 0.0, %v1257
        %v1259 = vpop.f32.mrb[0].mxu0
        %v1260 = vadd.f32 0.0, %v1259
        %1261 = vdwg.mxu0
        %1262 = vmatprep.subr.mxu0 %v262
        %1263 = vmatpush1.msra.mxu0 %v261
        %1264 = vmatprep.subr.mxu0 %v280
        %1265 = vmatpush1.msra.mxu0 %v279
        %1266 = vmatprep.subr.mxu0 %v298
        %1267 = vmatpush1.msra.mxu0 %v297
        %1268 = vmatprep.subr.mxu0 %v316
        %1269 = vmatpush1.msra.mxu0 %v315
        %1270 = vmatprep.subr.mxu0 %v334
        %1271 = vmatpush1.msra.mxu0 %v333
        %1272 = vmatprep.subr.mxu0 %v352
        %1273 = vmatpush1.msra.mxu0 %v351
        %1274 = vmatprep.subr.mxu0 %v370
        %1275 = vmatpush1.msra.mxu0 %v369
        %1276 = vmatprep.subr.mxu0 %v388
        %1277 = vmatpush1.msra.mxu0 %v387
        %1278 = vmatprep.subr.mxu0 %v406
        %1279 = vmatpush1.msra.mxu0 %v405
        %1280 = vmatprep.subr.mxu0 %v424
        %1281 = vmatpush1.msra.mxu0 %v423
        %1282 = vmatprep.subr.mxu0 %v442
        %1283 = vmatpush1.msra.mxu0 %v441
        %1284 = vmatprep.subr.mxu0 %v460
        %1285 = vmatpush1.msra.mxu0 %v459
        %1286 = vmatprep.subr.mxu0 %v478
        %1287 = vmatpush1.msra.mxu0 %v477
        %1288 = vmatprep.subr.mxu0 %v496
        %1289 = vmatpush1.msra.mxu0 %v495
        %1290 = vmatprep.subr.mxu0 %v514
        %1291 = vmatpush1.msra.mxu0 %v513
        %1292 = vmatprep.subr.mxu0 %v532
        %1293 = vmatpush1.msra.mxu0 %v531
        %1294 = vmatprep.subr.mxu0 %v550
        %1295 = vmatpush1.msra.mxu0 %v549
        %1296 = vmatprep.subr.mxu0 %v568
        %1297 = vmatpush1.msra.mxu0 %v567
        %1298 = vmatprep.subr.mxu0 %v586
        %1299 = vmatpush1.msra.mxu0 %v585
        %1300 = vmatprep.subr.mxu0 %v604
        %1301 = vmatpush1.msra.mxu0 %v603
        %1302 = vmatprep.subr.mxu0 %v622
        %1303 = vmatpush1.msra.mxu0 %v621
        %1304 = vmatprep.subr.mxu0 %v640
        %1305 = vmatpush1.msra.mxu0 %v639
        %1306 = vmatprep.subr.mxu0 %v658
        %1307 = vmatpush1.msra.mxu0 %v657
        %1308 = vmatprep.subr.mxu0 %v676
        %1309 = vmatpush1.msra.mxu0 %v675
        %1310 = vmatprep.subr.mxu0 %v694
        %1311 = vmatpush1.msra.mxu0 %v693
        %1312 = vmatprep.subr.mxu0 %v712
        %1313 = vmatpush1.msra.mxu0 %v711
        %1314 = vmatprep.subr.mxu0 %v730
        %1315 = vmatpush1.msra.mxu0 %v729
        %1316 = vmatprep.subr.mxu0 %v748
        %1317 = vmatpush1.msra.mxu0 %v747
        %1318 = vmatprep.subr.mxu0 %v766
        %1319 = vmatpush1.msra.mxu0 %v765
        %1320 = vmatprep.subr.mxu0 %v784
        %1321 = vmatpush1.msra.mxu0 %v783
        %1322 = vmatprep.subr.mxu0 %v802
        %1323 = vmatpush1.msra.mxu0 %v801
        %1324 = vmatprep.subr.mxu0 %v820
        %1325 = vmatpush1.msra.mxu0 %v819
        %1326 = vmatprep.mubr.f32.mxu0 %v833
        %1327 = vmatmul.mubr.f32.gmra.mrb[0].mxu0 %v832
        %v1328 = vpop.f32.mrb[0].mxu0
        %v1329 = vadd.f32 0.0, %v1328
        %v1330 = vpop.f32.mrb[0].mxu0
        %v1331 = vadd.f32 0.0, %v1330
        %1332 = vdwg.mxu0
        %1333 = vmatprep.subr.mxu0 %v264
        %1334 = vmatpush1.msra.mxu0 %v263
        %1335 = vmatprep.subr.mxu0 %v282
        %1336 = vmatpush1.msra.mxu0 %v281
        %1337 = vmatprep.subr.mxu0 %v300
        %1338 = vmatpush1.msra.mxu0 %v299
        %1339 = vmatprep.subr.mxu0 %v318
        %1340 = vmatpush1.msra.mxu0 %v317
        %1341 = vmatprep.subr.mxu0 %v336
        %1342 = vmatpush1.msra.mxu0 %v335
        %1343 = vmatprep.subr.mxu0 %v354
        %1344 = vmatpush1.msra.mxu0 %v353
        %1345 = vmatprep.subr.mxu0 %v372
        %1346 = vmatpush1.msra.mxu0 %v371
        %1347 = vmatprep.subr.mxu0 %v390
        %1348 = vmatpush1.msra.mxu0 %v389
        %1349 = vmatprep.subr.mxu0 %v408
        %1350 = vmatpush1.msra.mxu0 %v407
        %1351 = vmatprep.subr.mxu0 %v426
        %1352 = vmatpush1.msra.mxu0 %v425
        %1353 = vmatprep.subr.mxu0 %v444
        %1354 = vmatpush1.msra.mxu0 %v443
        %1355 = vmatprep.subr.mxu0 %v462
        %1356 = vmatpush1.msra.mxu0 %v461
        %1357 = vmatprep.subr.mxu0 %v480
        %1358 = vmatpush1.msra.mxu0 %v479
        %1359 = vmatprep.subr.mxu0 %v498
        %1360 = vmatpush1.msra.mxu0 %v497
        %1361 = vmatprep.subr.mxu0 %v516
        %1362 = vmatpush1.msra.mxu0 %v515
        %1363 = vmatprep.subr.mxu0 %v534
        %1364 = vmatpush1.msra.mxu0 %v533
        %1365 = vmatprep.subr.mxu0 %v552
        %1366 = vmatpush1.msra.mxu0 %v551
        %1367 = vmatprep.subr.mxu0 %v570
        %1368 = vmatpush1.msra.mxu0 %v569
        %1369 = vmatprep.subr.mxu0 %v588
        %1370 = vmatpush1.msra.mxu0 %v587
        %1371 = vmatprep.subr.mxu0 %v606
        %1372 = vmatpush1.msra.mxu0 %v605
        %1373 = vmatprep.subr.mxu0 %v624
        %1374 = vmatpush1.msra.mxu0 %v623
        %1375 = vmatprep.subr.mxu0 %v642
        %1376 = vmatpush1.msra.mxu0 %v641
        %1377 = vmatprep.subr.mxu0 %v660
        %1378 = vmatpush1.msra.mxu0 %v659
        %1379 = vmatprep.subr.mxu0 %v678
        %1380 = vmatpush1.msra.mxu0 %v677
        %1381 = vmatprep.subr.mxu0 %v696
        %1382 = vmatpush1.msra.mxu0 %v695
        %1383 = vmatprep.subr.mxu0 %v714
        %1384 = vmatpush1.msra.mxu0 %v713
        %1385 = vmatprep.subr.mxu0 %v732
        %1386 = vmatpush1.msra.mxu0 %v731
        %1387 = vmatprep.subr.mxu0 %v750
        %1388 = vmatpush1.msra.mxu0 %v749
        %1389 = vmatprep.subr.mxu0 %v768
        %1390 = vmatpush1.msra.mxu0 %v767
        %1391 = vmatprep.subr.mxu0 %v786
        %1392 = vmatpush1.msra.mxu0 %v785
        %1393 = vmatprep.subr.mxu0 %v804
        %1394 = vmatpush1.msra.mxu0 %v803
        %1395 = vmatprep.subr.mxu0 %v822
        %1396 = vmatpush1.msra.mxu0 %v821
        %1397 = vmatprep.mubr.f32.mxu0 %v833
        %1398 = vmatmul.mubr.f32.gmra.mrb[0].mxu0 %v832
        %v1399 = vpop.f32.mrb[0].mxu0
        %v1400 = vadd.f32 0.0, %v1399
        %v1401 = vpop.f32.mrb[0].mxu0
        %v1402 = vadd.f32 0.0, %v1401
        %1403 = vdwg.mxu0
        %1404 = vmatprep.subr.mxu0 %v266
        %1405 = vmatpush1.msra.mxu0 %v265
        %1406 = vmatprep.subr.mxu0 %v284
        %1407 = vmatpush1.msra.mxu0 %v283
        %1408 = vmatprep.subr.mxu0 %v302
        %1409 = vmatpush1.msra.mxu0 %v301
        %1410 = vmatprep.subr.mxu0 %v320
        %1411 = vmatpush1.msra.mxu0 %v319
        %1412 = vmatprep.subr.mxu0 %v338
        %1413 = vmatpush1.msra.mxu0 %v337
        %1414 = vmatprep.subr.mxu0 %v356
        %1415 = vmatpush1.msra.mxu0 %v355
        %1416 = vmatprep.subr.mxu0 %v374
        %1417 = vmatpush1.msra.mxu0 %v373
        %1418 = vmatprep.subr.mxu0 %v392
        %1419 = vmatpush1.msra.mxu0 %v391
        %1420 = vmatprep.subr.mxu0 %v410
        %1421 = vmatpush1.msra.mxu0 %v409
        %1422 = vmatprep.subr.mxu0 %v428
        %1423 = vmatpush1.msra.mxu0 %v427
        %1424 = vmatprep.subr.mxu0 %v446
        %1425 = vmatpush1.msra.mxu0 %v445
        %1426 = vmatprep.subr.mxu0 %v464
        %1427 = vmatpush1.msra.mxu0 %v463
        %1428 = vmatprep.subr.mxu0 %v482
        %1429 = vmatpush1.msra.mxu0 %v481
        %1430 = vmatprep.subr.mxu0 %v500
        %1431 = vmatpush1.msra.mxu0 %v499
        %1432 = vmatprep.subr.mxu0 %v518
        %1433 = vmatpush1.msra.mxu0 %v517
        %1434 = vmatprep.subr.mxu0 %v536
        %1435 = vmatpush1.msra.mxu0 %v535
        %1436 = vmatprep.subr.mxu0 %v554
        %1437 = vmatpush1.msra.mxu0 %v553
        %1438 = vmatprep.subr.mxu0 %v572
        %1439 = vmatpush1.msra.mxu0 %v571
        %1440 = vmatprep.subr.mxu0 %v590
        %1441 = vmatpush1.msra.mxu0 %v589
        %1442 = vmatprep.subr.mxu0 %v608
        %1443 = vmatpush1.msra.mxu0 %v607
        %1444 = vmatprep.subr.mxu0 %v626
        %1445 = vmatpush1.msra.mxu0 %v625
        %1446 = vmatprep.subr.mxu0 %v644
        %1447 = vmatpush1.msra.mxu0 %v643
        %1448 = vmatprep.subr.mxu0 %v662
        %1449 = vmatpush1.msra.mxu0 %v661
        %1450 = vmatprep.subr.mxu0 %v680
        %1451 = vmatpush1.msra.mxu0 %v679
        %1452 = vmatprep.subr.mxu0 %v698
        %1453 = vmatpush1.msra.mxu0 %v697
        %1454 = vmatprep.subr.mxu0 %v716
        %1455 = vmatpush1.msra.mxu0 %v715
        %1456 = vmatprep.subr.mxu0 %v734
        %1457 = vmatpush1.msra.mxu0 %v733
        %1458 = vmatprep.subr.mxu0 %v752
        %1459 = vmatpush1.msra.mxu0 %v751
        %1460 = vmatprep.subr.mxu0 %v770
        %1461 = vmatpush1.msra.mxu0 %v769
        %1462 = vmatprep.subr.mxu0 %v788
        %1463 = vmatpush1.msra.mxu0 %v787
        %1464 = vmatprep.subr.mxu0 %v806
        %1465 = vmatpush1.msra.mxu0 %v805
        %1466 = vmatprep.subr.mxu0 %v824
        %1467 = vmatpush1.msra.mxu0 %v823
        %1468 = vmatprep.mubr.f32.mxu0 %v833
        %1469 = vmatmul.mubr.f32.gmra.mrb[0].mxu0 %v832
        %v1470 = vpop.f32.mrb[0].mxu0
        %v1471 = vadd.f32 0.0, %v1470
        %v1472 = vpop.f32.mrb[0].mxu0
        %v1473 = vadd.f32 0.0, %v1472
        %1474 = vdwg.mxu0
        %v1475 = vld [vmem:[%s242] sm:$0xf]
        %v1476 = vld [vmem:[#allocation4] sm:$0xff]
        %v1477 = vld [vmem:[#allocation4 + $0x8] sm:$0xff]
        %v1478 = vld [vmem:[#allocation4 + $0x10] sm:$0xff]
        %v1479 = vld [vmem:[#allocation4 + $0x18] sm:$0xff]
        %v1480 = vld [vmem:[#allocation4 + $0x20] sm:$0xff]
        %v1481 = vld [vmem:[#allocation4 + $0x28] sm:$0xff]
        %v1482 = vld [vmem:[#allocation4 + $0x30] sm:$0xff]
        %v1483 = vld [vmem:[#allocation4 + $0x38] sm:$0xff]
        %v1484 = vld [vmem:[#allocation4 + $0x40] sm:$0xff]
        %v1485 = vld [vmem:[#allocation4 + $0x48] sm:$0xff]
        %v1486 = vld [vmem:[#allocation4 + $0x50] sm:$0xff]
        %v1487 = vld [vmem:[#allocation4 + $0x58] sm:$0xff]
        %v1488 = vld [vmem:[#allocation4 + $0x60] sm:$0xff]
        %v1489 = vld [vmem:[#allocation4 + $0x68] sm:$0xff]
        %v1490 = vld [vmem:[#allocation4 + $0x70] sm:$0xff]
        %v1491 = vld [vmem:[#allocation4 + $0x78] sm:$0xff]
        %v1492 = vld [vmem:[#allocation4 + $0x80] sm:$0xff]
        %v1493 = vld [vmem:[#allocation4 + $0x88] sm:$0xff]
        %v1494 = vld [vmem:[#allocation4 + $0x90] sm:$0xff]
        %v1495 = vld [vmem:[#allocation4 + $0x98] sm:$0xff]
        %v1496 = vld [vmem:[#allocation4 + $0xa0] sm:$0xff]
        %v1497 = vld [vmem:[#allocation4 + $0xa8] sm:$0xff]
        %v1498 = vld [vmem:[#allocation4 + $0xb0] sm:$0xff]
        %v1499 = vld [vmem:[#allocation4 + $0xb8] sm:$0xff]
        %v1500 = vld [vmem:[#allocation4 + $0xc0] sm:$0xff]
        %v1501 = vld [vmem:[#allocation4 + $0xc8] sm:$0xff]
        %v1502 = vld [vmem:[#allocation4 + $0xd0] sm:$0xff]
        %v1503 = vld [vmem:[#allocation4 + $0xd8] sm:$0xff]
        %v1504 = vld [vmem:[#allocation4 + $0xe0] sm:$0xff]
        %v1505 = vld [vmem:[#allocation4 + $0xe8] sm:$0xff]
        %v1506 = vld [vmem:[#allocation4 + $0xf0] sm:$0xff]
        %v1507 = vld [vmem:[#allocation4 + $0xf8] sm:$0xff]
        %v1508 = vld [vmem:[#allocation4 + $0x100] sm:$0xff]
        %v1509 = vld [vmem:[#allocation4 + $0x108] sm:$0xff]
        %v1510 = vld [vmem:[#allocation4 + $0x110] sm:$0xff]
        %v1511 = vld [vmem:[#allocation4 + $0x118] sm:$0xff]
        %v1512 = vld [vmem:[#allocation4 + $0x120] sm:$0xff]
        %v1513 = vld [vmem:[#allocation4 + $0x128] sm:$0xff]
        %v1514 = vld [vmem:[#allocation4 + $0x130] sm:$0xff]
        %v1515 = vld [vmem:[#allocation4 + $0x138] sm:$0xff]
        %v1516 = vld [vmem:[#allocation4 + $0x140] sm:$0xff]
        %v1517 = vld [vmem:[#allocation4 + $0x148] sm:$0xff]
        %v1518 = vld [vmem:[#allocation4 + $0x150] sm:$0xff]
        %v1519 = vld [vmem:[#allocation4 + $0x158] sm:$0xff]
        %v1520 = vld [vmem:[#allocation4 + $0x160] sm:$0xff]
        %v1521 = vld [vmem:[#allocation4 + $0x168] sm:$0xff]
        %v1522 = vld [vmem:[#allocation4 + $0x170] sm:$0xff]
        %v1523 = vld [vmem:[#allocation4 + $0x178] sm:$0xff]
        %v1524 = vld [vmem:[#allocation4 + $0x180] sm:$0xff]
        %v1525 = vld [vmem:[#allocation4 + $0x188] sm:$0xff]
        %v1526 = vld [vmem:[#allocation4 + $0x190] sm:$0xff]
        %v1527 = vld [vmem:[#allocation4 + $0x198] sm:$0xff]
        %v1528 = vld [vmem:[#allocation4 + $0x1a0] sm:$0xff]
        %v1529 = vld [vmem:[#allocation4 + $0x1a8] sm:$0xff]
        %v1530 = vld [vmem:[#allocation4 + $0x1b0] sm:$0xff]
        %v1531 = vld [vmem:[#allocation4 + $0x1b8] sm:$0xff]
        %v1532 = vld [vmem:[#allocation4 + $0x1c0] sm:$0xff]
        %v1533 = vld [vmem:[#allocation4 + $0x1c8] sm:$0xff]
        %v1534 = vld [vmem:[#allocation4 + $0x1d0] sm:$0xff]
        %v1535 = vld [vmem:[#allocation4 + $0x1d8] sm:$0xff]
        %v1536 = vld [vmem:[#allocation4 + $0x1e0] sm:$0xff]
        %v1537 = vld [vmem:[#allocation4 + $0x1e8] sm:$0xff]
        %v1538 = vld [vmem:[#allocation4 + $0x1f0] sm:$0xff]
        %v1539 = vld [vmem:[#allocation4 + $0x1f8] sm:$0xff]
        %v1540 = vld [vmem:[#allocation4 + $0x200] sm:$0xff]
        %v1541 = vld [vmem:[#allocation4 + $0x208] sm:$0xff]
        %v1542 = vld [vmem:[#allocation4 + $0x210] sm:$0xff]
        %v1543 = vld [vmem:[#allocation4 + $0x218] sm:$0xff]
        %v1544 = vld [vmem:[#allocation4 + $0x220] sm:$0xff]
        %v1545 = vld [vmem:[#allocation4 + $0x228] sm:$0xff]
        %v1546 = vld [vmem:[#allocation4 + $0x230] sm:$0xff]
        %v1547 = vld [vmem:[#allocation4 + $0x238] sm:$0xff]
        %v1548 = vld [vmem:[#allocation4 + $0x240] sm:$0xff]
        %v1549 = vld [vmem:[#allocation4 + $0x248] sm:$0xff]
        %v1550 = vld [vmem:[#allocation4 + $0x250] sm:$0xff]
        %v1551 = vld [vmem:[#allocation4 + $0x258] sm:$0xff]
        %v1552 = vld [vmem:[#allocation4 + $0x260] sm:$0xff]
        %v1553 = vld [vmem:[#allocation4 + $0x268] sm:$0xff]
        %v1554 = vld [vmem:[#allocation4 + $0x270] sm:$0xff]
        %v1555 = vld [vmem:[#allocation4 + $0x278] sm:$0xff]
        %v1556 = vld [vmem:[#allocation4 + $0x280] sm:$0xff]
        %v1557 = vld [vmem:[#allocation4 + $0x288] sm:$0xff]
        %v1558 = vld [vmem:[#allocation4 + $0x290] sm:$0xff]
        %v1559 = vld [vmem:[#allocation4 + $0x298] sm:$0xff]
        %v1560 = vld [vmem:[#allocation4 + $0x2a0] sm:$0xff]
        %v1561 = vld [vmem:[#allocation4 + $0x2a8] sm:$0xff]
        %v1562 = vld [vmem:[#allocation4 + $0x2b0] sm:$0xff]
        %v1563 = vld [vmem:[#allocation4 + $0x2b8] sm:$0xff]
        %v1564 = vld [vmem:[#allocation4 + $0x2c0] sm:$0xff]
        %v1565 = vld [vmem:[#allocation4 + $0x2c8] sm:$0xff]
        %v1566 = vld [vmem:[#allocation4 + $0x2d0] sm:$0xff]
        %v1567 = vld [vmem:[#allocation4 + $0x2d8] sm:$0xff]
        %v1568 = vld [vmem:[#allocation4 + $0x2e0] sm:$0xff]
        %v1569 = vld [vmem:[#allocation4 + $0x2e8] sm:$0xff]
        %v1570 = vld [vmem:[#allocation4 + $0x2f0] sm:$0xff]
        %v1571 = vld [vmem:[#allocation4 + $0x2f8] sm:$0xff]
        %v1572 = vld [vmem:[#allocation4 + $0x300] sm:$0xff]
        %v1573 = vld [vmem:[#allocation4 + $0x308] sm:$0xff]
        %v1574 = vld [vmem:[#allocation4 + $0x310] sm:$0xff]
        %v1575 = vld [vmem:[#allocation4 + $0x318] sm:$0xff]
        %v1576 = vld [vmem:[#allocation4 + $0x320] sm:$0xff]
        %v1577 = vld [vmem:[#allocation4 + $0x328] sm:$0xff]
        %v1578 = vld [vmem:[#allocation4 + $0x330] sm:$0xff]
        %v1579 = vld [vmem:[#allocation4 + $0x338] sm:$0xff]
        %v1580 = vld [vmem:[#allocation4 + $0x340] sm:$0xff]
        %v1581 = vld [vmem:[#allocation4 + $0x348] sm:$0xff]
        %v1582 = vld [vmem:[#allocation4 + $0x350] sm:$0xff]
        %v1583 = vld [vmem:[#allocation4 + $0x358] sm:$0xff]
        %v1584 = vld [vmem:[#allocation4 + $0x360] sm:$0xff]
        %v1585 = vld [vmem:[#allocation4 + $0x368] sm:$0xff]
        %v1586 = vld [vmem:[#allocation4 + $0x370] sm:$0xff]
        %v1587 = vld [vmem:[#allocation4 + $0x378] sm:$0xff]
        %v1588 = vld [vmem:[#allocation4 + $0x380] sm:$0xff]
        %v1589 = vld [vmem:[#allocation4 + $0x388] sm:$0xff]
        %v1590 = vld [vmem:[#allocation4 + $0x390] sm:$0xff]
        %v1591 = vld [vmem:[#allocation4 + $0x398] sm:$0xff]
        %v1592 = vld [vmem:[#allocation4 + $0x3a0] sm:$0xff]
        %v1593 = vld [vmem:[#allocation4 + $0x3a8] sm:$0xff]
        %v1594 = vld [vmem:[#allocation4 + $0x3b0] sm:$0xff]
        %v1595 = vld [vmem:[#allocation4 + $0x3b8] sm:$0xff]
        %v1596 = vld [vmem:[#allocation4 + $0x3c0] sm:$0xff]
        %v1597 = vld [vmem:[#allocation4 + $0x3c8] sm:$0xff]
        %v1598 = vld [vmem:[#allocation4 + $0x3d0] sm:$0xff]
        %v1599 = vld [vmem:[#allocation4 + $0x3d8] sm:$0xff]
        %v1600 = vld [vmem:[#allocation4 + $0x3e0] sm:$0xff]
        %v1601 = vld [vmem:[#allocation4 + $0x3e8] sm:$0xff]
        %v1602 = vld [vmem:[#allocation4 + $0x3f0] sm:$0xff]
        %v1603 = vld [vmem:[#allocation4 + $0x3f8] sm:$0xff]
        %v1604 = vld [vmem:[#allocation4 + $0x400] sm:$0xff]
        %v1605 = vld [vmem:[#allocation4 + $0x408] sm:$0xff]
        %v1606 = vld [vmem:[#allocation4 + $0x410] sm:$0xff]
        %v1607 = vld [vmem:[#allocation4 + $0x418] sm:$0xff]
        %v1608 = vld [vmem:[#allocation4 + $0x420] sm:$0xff]
        %v1609 = vld [vmem:[#allocation4 + $0x428] sm:$0xff]
        %v1610 = vld [vmem:[#allocation4 + $0x430] sm:$0xff]
        %v1611 = vld [vmem:[#allocation4 + $0x438] sm:$0xff]
        %v1612 = vld [vmem:[#allocation4 + $0x440] sm:$0xff]
        %v1613 = vld [vmem:[#allocation4 + $0x448] sm:$0xff]
        %v1614 = vld [vmem:[#allocation4 + $0x450] sm:$0xff]
        %v1615 = vld [vmem:[#allocation4 + $0x458] sm:$0xff]
        %v1616 = vld [vmem:[#allocation4 + $0x460] sm:$0xff]
        %v1617 = vld [vmem:[#allocation4 + $0x468] sm:$0xff]
        %v1618 = vld [vmem:[#allocation4 + $0x470] sm:$0xff]
        %v1619 = vld [vmem:[#allocation4 + $0x478] sm:$0xff]
        %v1620 = vld [vmem:[#allocation4 + $0x480] sm:$0xff]
        %v1621 = vld [vmem:[#allocation4 + $0x488] sm:$0xff]
        %v1622 = vld [vmem:[#allocation4 + $0x490] sm:$0xff]
        %v1623 = vld [vmem:[#allocation4 + $0x498] sm:$0xff]
        %v1624 = vld [vmem:[#allocation4 + $0x4a0] sm:$0xff]
        %v1625 = vld [vmem:[#allocation4 + $0x4a8] sm:$0xff]
        %v1626 = vld [vmem:[#allocation4 + $0x4b0] sm:$0xff]
        %v1627 = vld [vmem:[#allocation4 + $0x4b8] sm:$0xff]
        %v1628 = vld [vmem:[#allocation4 + $0x4c0] sm:$0xff]
        %v1629 = vld [vmem:[#allocation4 + $0x4c8] sm:$0xff]
        %v1630 = vld [vmem:[#allocation4 + $0x4d0] sm:$0xff]
        %v1631 = vld [vmem:[#allocation4 + $0x4d8] sm:$0xff]
        %v1632 = vld [vmem:[#allocation4 + $0x4e0] sm:$0xff]
        %v1633 = vld [vmem:[#allocation4 + $0x4e8] sm:$0xff]
        %v1634 = vld [vmem:[#allocation4 + $0x4f0] sm:$0xff]
        %v1635 = vld [vmem:[#allocation4 + $0x4f8] sm:$0xff]
        %v1636 = vld [vmem:[#allocation4 + $0x500] sm:$0xff]
        %v1637 = vld [vmem:[#allocation4 + $0x508] sm:$0xff]
        %v1638 = vld [vmem:[#allocation4 + $0x510] sm:$0xff]
        %v1639 = vld [vmem:[#allocation4 + $0x518] sm:$0xff]
        %v1640 = vld [vmem:[#allocation4 + $0x520] sm:$0xff]
        %v1641 = vld [vmem:[#allocation4 + $0x528] sm:$0xff]
        %v1642 = vld [vmem:[#allocation4 + $0x530] sm:$0xff]
        %v1643 = vld [vmem:[#allocation4 + $0x538] sm:$0xff]
        %v1644 = vld [vmem:[#allocation4 + $0x540] sm:$0xff]
        %v1645 = vld [vmem:[#allocation4 + $0x548] sm:$0xff]
        %v1646 = vld [vmem:[#allocation4 + $0x550] sm:$0xff]
        %v1647 = vld [vmem:[#allocation4 + $0x558] sm:$0xff]
        %v1648 = vld [vmem:[#allocation4 + $0x560] sm:$0xff]
        %v1649 = vld [vmem:[#allocation4 + $0x568] sm:$0xff]
        %v1650 = vld [vmem:[#allocation4 + $0x570] sm:$0xff]
        %v1651 = vld [vmem:[#allocation4 + $0x578] sm:$0xff]
        %v1652 = vld [vmem:[#allocation4 + $0x580] sm:$0xff]
        %v1653 = vld [vmem:[#allocation4 + $0x588] sm:$0xff]
        %v1654 = vld [vmem:[#allocation4 + $0x590] sm:$0xff]
        %v1655 = vld [vmem:[#allocation4 + $0x598] sm:$0xff]
        %v1656 = vld [vmem:[#allocation4 + $0x5a0] sm:$0xff]
        %v1657 = vld [vmem:[#allocation4 + $0x5a8] sm:$0xff]
        %v1658 = vld [vmem:[#allocation4 + $0x5b0] sm:$0xff]
        %v1659 = vld [vmem:[#allocation4 + $0x5b8] sm:$0xff]
        %v1660 = vld [vmem:[#allocation4 + $0x5c0] sm:$0xff]
        %v1661 = vld [vmem:[#allocation4 + $0x5c8] sm:$0xff]
        %v1662 = vld [vmem:[#allocation4 + $0x5d0] sm:$0xff]
        %v1663 = vld [vmem:[#allocation4 + $0x5d8] sm:$0xff]
        %v1664 = vld [vmem:[#allocation4 + $0x5e0] sm:$0xff]
        %v1665 = vld [vmem:[#allocation4 + $0x5e8] sm:$0xff]
        %v1666 = vld [vmem:[#allocation4 + $0x5f0] sm:$0xff]
        %v1667 = vld [vmem:[#allocation4 + $0x5f8] sm:$0xff]
        %v1668 = vld [vmem:[#allocation4 + $0x600] sm:$0xff]
        %v1669 = vld [vmem:[#allocation4 + $0x608] sm:$0xff]
        %v1670 = vld [vmem:[#allocation4 + $0x610] sm:$0xff]
        %v1671 = vld [vmem:[#allocation4 + $0x618] sm:$0xff]
        %v1672 = vld [vmem:[#allocation4 + $0x620] sm:$0xff]
        %v1673 = vld [vmem:[#allocation4 + $0x628] sm:$0xff]
        %v1674 = vld [vmem:[#allocation4 + $0x630] sm:$0xff]
        %v1675 = vld [vmem:[#allocation4 + $0x638] sm:$0xff]
        %v1676 = vld [vmem:[#allocation4 + $0x640] sm:$0xff]
        %v1677 = vld [vmem:[#allocation4 + $0x648] sm:$0xff]
        %v1678 = vld [vmem:[#allocation4 + $0x650] sm:$0xff]
        %v1679 = vld [vmem:[#allocation4 + $0x658] sm:$0xff]
        %v1680 = vld [vmem:[#allocation4 + $0x660] sm:$0xff]
        %v1681 = vld [vmem:[#allocation4 + $0x668] sm:$0xff]
        %v1682 = vld [vmem:[#allocation4 + $0x670] sm:$0xff]
        %v1683 = vld [vmem:[#allocation4 + $0x678] sm:$0xff]
        %v1684 = vld [vmem:[#allocation4 + $0x680] sm:$0xff]
        %v1685 = vld [vmem:[#allocation4 + $0x688] sm:$0xff]
        %v1686 = vld [vmem:[#allocation4 + $0x690] sm:$0xff]
        %v1687 = vld [vmem:[#allocation4 + $0x698] sm:$0xff]
        %v1688 = vld [vmem:[#allocation4 + $0x6a0] sm:$0xff]
        %v1689 = vld [vmem:[#allocation4 + $0x6a8] sm:$0xff]
        %v1690 = vld [vmem:[#allocation4 + $0x6b0] sm:$0xff]
        %v1691 = vld [vmem:[#allocation4 + $0x6b8] sm:$0xff]
        %v1692 = vld [vmem:[#allocation4 + $0x6c0] sm:$0xff]
        %v1693 = vld [vmem:[#allocation4 + $0x6c8] sm:$0xff]
        %v1694 = vld [vmem:[#allocation4 + $0x6d0] sm:$0xff]
        %v1695 = vld [vmem:[#allocation4 + $0x6d8] sm:$0xff]
        %v1696 = vld [vmem:[#allocation4 + $0x6e0] sm:$0xff]
        %v1697 = vld [vmem:[#allocation4 + $0x6e8] sm:$0xff]
        %v1698 = vld [vmem:[#allocation4 + $0x6f0] sm:$0xff]
        %v1699 = vld [vmem:[#allocation4 + $0x6f8] sm:$0xff]
        %v1700 = vld [vmem:[#allocation4 + $0x700] sm:$0xff]
        %v1701 = vld [vmem:[#allocation4 + $0x708] sm:$0xff]
        %v1702 = vld [vmem:[#allocation4 + $0x710] sm:$0xff]
        %v1703 = vld [vmem:[#allocation4 + $0x718] sm:$0xff]
        %v1704 = vld [vmem:[#allocation4 + $0x720] sm:$0xff]
        %v1705 = vld [vmem:[#allocation4 + $0x728] sm:$0xff]
        %v1706 = vld [vmem:[#allocation4 + $0x730] sm:$0xff]
        %v1707 = vld [vmem:[#allocation4 + $0x738] sm:$0xff]
        %v1708 = vld [vmem:[#allocation4 + $0x740] sm:$0xff]
        %v1709 = vld [vmem:[#allocation4 + $0x748] sm:$0xff]
        %v1710 = vld [vmem:[#allocation4 + $0x750] sm:$0xff]
        %v1711 = vld [vmem:[#allocation4 + $0x758] sm:$0xff]
        %v1712 = vld [vmem:[#allocation4 + $0x760] sm:$0xff]
        %v1713 = vld [vmem:[#allocation4 + $0x768] sm:$0xff]
        %v1714 = vld [vmem:[#allocation4 + $0x770] sm:$0xff]
        %v1715 = vld [vmem:[#allocation4 + $0x778] sm:$0xff]
        %v1716 = vld [vmem:[#allocation4 + $0x780] sm:$0xff]
        %v1717 = vld [vmem:[#allocation4 + $0x788] sm:$0xff]
        %v1718 = vld [vmem:[#allocation4 + $0x790] sm:$0xff]
        %v1719 = vld [vmem:[#allocation4 + $0x798] sm:$0xff]
        %v1720 = vld [vmem:[#allocation4 + $0x7a0] sm:$0xff]
        %v1721 = vld [vmem:[#allocation4 + $0x7a8] sm:$0xff]
        %v1722 = vld [vmem:[#allocation4 + $0x7b0] sm:$0xff]
        %v1723 = vld [vmem:[#allocation4 + $0x7b8] sm:$0xff]
        %v1724 = vld [vmem:[#allocation4 + $0x7c0] sm:$0xff]
        %v1725 = vld [vmem:[#allocation4 + $0x7c8] sm:$0xff]
        %v1726 = vld [vmem:[#allocation4 + $0x7d0] sm:$0xff]
        %v1727 = vld [vmem:[#allocation4 + $0x7d8] sm:$0xff]
        %v1728 = vld [vmem:[#allocation4 + $0x7e0] sm:$0xff]
        %v1729 = vld [vmem:[#allocation4 + $0x7e8] sm:$0xff]
        %v1730 = vld [vmem:[#allocation4 + $0x7f0] sm:$0xff]
        %v1731 = vld [vmem:[#allocation4 + $0x7f8] sm:$0xff]
        %v1732 = vld [vmem:[#allocation4 + $0x800] sm:$0xff]
        %v1733 = vld [vmem:[#allocation4 + $0x808] sm:$0xff]
        %v1734 = vld [vmem:[#allocation4 + $0x810] sm:$0xff]
        %v1735 = vld [vmem:[#allocation4 + $0x818] sm:$0xff]
        %v1736 = vld [vmem:[#allocation4 + $0x820] sm:$0xff]
        %v1737 = vld [vmem:[#allocation4 + $0x828] sm:$0xff]
        %v1738 = vld [vmem:[#allocation4 + $0x830] sm:$0xff]
        %v1739 = vld [vmem:[#allocation4 + $0x838] sm:$0xff]
        %v1740 = vld [vmem:[#allocation4 + $0x840] sm:$0xff]
        %v1741 = vld [vmem:[#allocation4 + $0x848] sm:$0xff]
        %v1742 = vld [vmem:[#allocation4 + $0x850] sm:$0xff]
        %v1743 = vld [vmem:[#allocation4 + $0x858] sm:$0xff]
        %v1744 = vld [vmem:[#allocation4 + $0x860] sm:$0xff]
        %v1745 = vld [vmem:[#allocation4 + $0x868] sm:$0xff]
        %v1746 = vld [vmem:[#allocation4 + $0x870] sm:$0xff]
        %v1747 = vld [vmem:[#allocation4 + $0x878] sm:$0xff]
        %v1748 = vld [vmem:[#allocation4 + $0x880] sm:$0xff]
        %v1749 = vld [vmem:[#allocation4 + $0x888] sm:$0xff]
        %v1750 = vld [vmem:[#allocation4 + $0x890] sm:$0xff]
        %v1751 = vld [vmem:[#allocation4 + $0x898] sm:$0xff]
        %v1752 = vld [vmem:[#allocation4 + $0x8a0] sm:$0xff]
        %v1753 = vld [vmem:[#allocation4 + $0x8a8] sm:$0xff]
        %v1754 = vld [vmem:[#allocation4 + $0x8b0] sm:$0xff]
        %v1755 = vld [vmem:[#allocation4 + $0x8b8] sm:$0xff]
        %v1756 = vld [vmem:[#allocation4 + $0x8c0] sm:$0xff]
        %v1757 = vld [vmem:[#allocation4 + $0x8c8] sm:$0xff]
        %v1758 = vld [vmem:[#allocation4 + $0x8d0] sm:$0xff]
        %v1759 = vld [vmem:[#allocation4 + $0x8d8] sm:$0xff]
        %v1760 = vld [vmem:[#allocation4 + $0x8e0] sm:$0xff]
        %v1761 = vld [vmem:[#allocation4 + $0x8e8] sm:$0xff]
        %v1762 = vld [vmem:[#allocation4 + $0x8f0] sm:$0xff]
        %v1763 = vld [vmem:[#allocation4 + $0x8f8] sm:$0xff]
        %v1764 = vld [vmem:[#allocation4 + $0x900] sm:$0xff]
        %v1765 = vld [vmem:[#allocation4 + $0x908] sm:$0xff]
        %v1766 = vld [vmem:[#allocation4 + $0x910] sm:$0xff]
        %v1767 = vld [vmem:[#allocation4 + $0x918] sm:$0xff]
        %v1768 = vld [vmem:[#allocation4 + $0x920] sm:$0xff]
        %v1769 = vld [vmem:[#allocation4 + $0x928] sm:$0xff]
        %v1770 = vld [vmem:[#allocation4 + $0x930] sm:$0xff]
        %v1771 = vld [vmem:[#allocation4 + $0x938] sm:$0xff]
        %v1772 = vld [vmem:[#allocation4 + $0x940] sm:$0xff]
        %v1773 = vld [vmem:[#allocation4 + $0x948] sm:$0xff]
        %v1774 = vld [vmem:[#allocation4 + $0x950] sm:$0xff]
        %v1775 = vld [vmem:[#allocation4 + $0x958] sm:$0xff]
        %v1776 = vld [vmem:[#allocation4 + $0x960] sm:$0xff]
        %v1777 = vld [vmem:[#allocation4 + $0x968] sm:$0xff]
        %v1778 = vld [vmem:[#allocation4 + $0x970] sm:$0xff]
        %v1779 = vld [vmem:[#allocation4 + $0x978] sm:$0xff]
        %v1780 = vld [vmem:[#allocation4 + $0x980] sm:$0xff]
        %v1781 = vld [vmem:[#allocation4 + $0x988] sm:$0xff]
        %v1782 = vld [vmem:[#allocation4 + $0x990] sm:$0xff]
        %v1783 = vld [vmem:[#allocation4 + $0x998] sm:$0xff]
        %v1784 = vld [vmem:[#allocation4 + $0x9a0] sm:$0xff]
        %v1785 = vld [vmem:[#allocation4 + $0x9a8] sm:$0xff]
        %v1786 = vld [vmem:[#allocation4 + $0x9b0] sm:$0xff]
        %v1787 = vld [vmem:[#allocation4 + $0x9b8] sm:$0xff]
        %v1788 = vld [vmem:[#allocation4 + $0x9c0] sm:$0xff]
        %v1789 = vld [vmem:[#allocation4 + $0x9c8] sm:$0xff]
        %v1790 = vld [vmem:[#allocation4 + $0x9d0] sm:$0xff]
        %v1791 = vld [vmem:[#allocation4 + $0x9d8] sm:$0xff]
        %v1792 = vld [vmem:[#allocation4 + $0x9e0] sm:$0xff]
        %v1793 = vld [vmem:[#allocation4 + $0x9e8] sm:$0xff]
        %v1794 = vld [vmem:[#allocation4 + $0x9f0] sm:$0xff]
        %v1795 = vld [vmem:[#allocation4 + $0x9f8] sm:$0xff]
        %v1796 = vld [vmem:[#allocation4 + $0xa00] sm:$0xff]
        %v1797 = vld [vmem:[#allocation4 + $0xa08] sm:$0xff]
        %v1798 = vld [vmem:[#allocation4 + $0xa10] sm:$0xff]
        %v1799 = vld [vmem:[#allocation4 + $0xa18] sm:$0xff]
        %v1800 = vld [vmem:[#allocation4 + $0xa20] sm:$0xff]
        %v1801 = vld [vmem:[#allocation4 + $0xa28] sm:$0xff]
        %v1802 = vld [vmem:[#allocation4 + $0xa30] sm:$0xff]
        %v1803 = vld [vmem:[#allocation4 + $0xa38] sm:$0xff]
        %v1804 = vld [vmem:[#allocation4 + $0xa40] sm:$0xff]
        %v1805 = vld [vmem:[#allocation4 + $0xa48] sm:$0xff]
        %v1806 = vld [vmem:[#allocation4 + $0xa50] sm:$0xff]
        %v1807 = vld [vmem:[#allocation4 + $0xa58] sm:$0xff]
        %v1808 = vld [vmem:[#allocation4 + $0xa60] sm:$0xff]
        %v1809 = vld [vmem:[#allocation4 + $0xa68] sm:$0xff]
        %v1810 = vld [vmem:[#allocation4 + $0xa70] sm:$0xff]
        %v1811 = vld [vmem:[#allocation4 + $0xa78] sm:$0xff]
        %v1812 = vld [vmem:[#allocation4 + $0xa80] sm:$0xff]
        %v1813 = vld [vmem:[#allocation4 + $0xa88] sm:$0xff]
        %v1814 = vld [vmem:[#allocation4 + $0xa90] sm:$0xff]
        %v1815 = vld [vmem:[#allocation4 + $0xa98] sm:$0xff]
        %v1816 = vld [vmem:[#allocation4 + $0xaa0] sm:$0xff]
        %v1817 = vld [vmem:[#allocation4 + $0xaa8] sm:$0xff]
        %v1818 = vld [vmem:[#allocation4 + $0xab0] sm:$0xff]
        %v1819 = vld [vmem:[#allocation4 + $0xab8] sm:$0xff]
        %v1820 = vld [vmem:[#allocation4 + $0xac0] sm:$0xff]
        %v1821 = vld [vmem:[#allocation4 + $0xac8] sm:$0xff]
        %v1822 = vld [vmem:[#allocation4 + $0xad0] sm:$0xff]
        %v1823 = vld [vmem:[#allocation4 + $0xad8] sm:$0xff]
        %v1824 = vld [vmem:[#allocation4 + $0xae0] sm:$0xff]
        %v1825 = vld [vmem:[#allocation4 + $0xae8] sm:$0xff]
        %v1826 = vld [vmem:[#allocation4 + $0xaf0] sm:$0xff]
        %v1827 = vld [vmem:[#allocation4 + $0xaf8] sm:$0xff]
        %v1828 = vld [vmem:[#allocation4 + $0xb00] sm:$0xff]
        %v1829 = vld [vmem:[#allocation4 + $0xb08] sm:$0xff]
        %v1830 = vld [vmem:[#allocation4 + $0xb10] sm:$0xff]
        %v1831 = vld [vmem:[#allocation4 + $0xb18] sm:$0xff]
        %v1832 = vld [vmem:[#allocation4 + $0xb20] sm:$0xff]
        %v1833 = vld [vmem:[#allocation4 + $0xb28] sm:$0xff]
        %v1834 = vld [vmem:[#allocation4 + $0xb30] sm:$0xff]
        %v1835 = vld [vmem:[#allocation4 + $0xb38] sm:$0xff]
        %v1836 = vld [vmem:[#allocation4 + $0xb40] sm:$0xff]
        %v1837 = vld [vmem:[#allocation4 + $0xb48] sm:$0xff]
        %v1838 = vld [vmem:[#allocation4 + $0xb50] sm:$0xff]
        %v1839 = vld [vmem:[#allocation4 + $0xb58] sm:$0xff]
        %v1840 = vld [vmem:[#allocation4 + $0xb60] sm:$0xff]
        %v1841 = vld [vmem:[#allocation4 + $0xb68] sm:$0xff]
        %v1842 = vld [vmem:[#allocation4 + $0xb70] sm:$0xff]
        %v1843 = vld [vmem:[#allocation4 + $0xb78] sm:$0xff]
        %v1844 = vld [vmem:[#allocation4 + $0xb80] sm:$0xff]
        %v1845 = vld [vmem:[#allocation4 + $0xb88] sm:$0xff]
        %v1846 = vld [vmem:[#allocation4 + $0xb90] sm:$0xff]
        %v1847 = vld [vmem:[#allocation4 + $0xb98] sm:$0xff]
        %v1848 = vld [vmem:[#allocation4 + $0xba0] sm:$0xff]
        %v1849 = vld [vmem:[#allocation4 + $0xba8] sm:$0xff]
        %v1850 = vld [vmem:[#allocation4 + $0xbb0] sm:$0xff]
        %v1851 = vld [vmem:[#allocation4 + $0xbb8] sm:$0xff]
        %v1852 = vld [vmem:[#allocation4 + $0xbc0] sm:$0xff]
        %v1853 = vld [vmem:[#allocation4 + $0xbc8] sm:$0xff]
        %v1854 = vld [vmem:[#allocation4 + $0xbd0] sm:$0xff]
        %v1855 = vld [vmem:[#allocation4 + $0xbd8] sm:$0xff]
        %v1856 = vld [vmem:[#allocation4 + $0xbe0] sm:$0xff]
        %v1857 = vld [vmem:[#allocation4 + $0xbe8] sm:$0xff]
        %v1858 = vld [vmem:[#allocation4 + $0xbf0] sm:$0xff]
        %v1859 = vld [vmem:[#allocation4 + $0xbf8] sm:$0xff]
        %v1860 = vld [vmem:[#allocation4 + $0xc00] sm:$0xff]
        %v1861 = vld [vmem:[#allocation4 + $0xc08] sm:$0xff]
        %v1862 = vld [vmem:[#allocation4 + $0xc10] sm:$0xff]
        %v1863 = vld [vmem:[#allocation4 + $0xc18] sm:$0xff]
        %v1864 = vld [vmem:[#allocation4 + $0xc20] sm:$0xff]
        %v1865 = vld [vmem:[#allocation4 + $0xc28] sm:$0xff]
        %v1866 = vld [vmem:[#allocation4 + $0xc30] sm:$0xff]
        %v1867 = vld [vmem:[#allocation4 + $0xc38] sm:$0xff]
        %v1868 = vld [vmem:[#allocation4 + $0xc40] sm:$0xff]
        %v1869 = vld [vmem:[#allocation4 + $0xc48] sm:$0xff]
        %v1870 = vld [vmem:[#allocation4 + $0xc50] sm:$0xff]
        %v1871 = vld [vmem:[#allocation4 + $0xc58] sm:$0xff]
        %v1872 = vld [vmem:[#allocation4 + $0xc60] sm:$0xff]
        %v1873 = vld [vmem:[#allocation4 + $0xc68] sm:$0xff]
        %v1874 = vld [vmem:[#allocation4 + $0xc70] sm:$0xff]
        %v1875 = vld [vmem:[#allocation4 + $0xc78] sm:$0xff]
        %v1876 = vld [vmem:[#allocation4 + $0xc80] sm:$0xff]
        %v1877 = vld [vmem:[#allocation4 + $0xc88] sm:$0xff]
        %v1878 = vld [vmem:[#allocation4 + $0xc90] sm:$0xff]
        %v1879 = vld [vmem:[#allocation4 + $0xc98] sm:$0xff]
        %v1880 = vld [vmem:[#allocation4 + $0xca0] sm:$0xff]
        %v1881 = vld [vmem:[#allocation4 + $0xca8] sm:$0xff]
        %v1882 = vld [vmem:[#allocation4 + $0xcb0] sm:$0xff]
        %v1883 = vld [vmem:[#allocation4 + $0xcb8] sm:$0xff]
        %v1884 = vld [vmem:[#allocation4 + $0xcc0] sm:$0xff]
        %v1885 = vld [vmem:[#allocation4 + $0xcc8] sm:$0xff]
        %v1886 = vld [vmem:[#allocation4 + $0xcd0] sm:$0xff]
        %v1887 = vld [vmem:[#allocation4 + $0xcd8] sm:$0xff]
        %v1888 = vld [vmem:[#allocation4 + $0xce0] sm:$0xff]
        %v1889 = vld [vmem:[#allocation4 + $0xce8] sm:$0xff]
        %v1890 = vld [vmem:[#allocation4 + $0xcf0] sm:$0xff]
        %v1891 = vld [vmem:[#allocation4 + $0xcf8] sm:$0xff]
        %v1892 = vld [vmem:[#allocation4 + $0xd00] sm:$0xff]
        %v1893 = vld [vmem:[#allocation4 + $0xd08] sm:$0xff]
        %v1894 = vld [vmem:[#allocation4 + $0xd10] sm:$0xff]
        %v1895 = vld [vmem:[#allocation4 + $0xd18] sm:$0xff]
        %v1896 = vld [vmem:[#allocation4 + $0xd20] sm:$0xff]
        %v1897 = vld [vmem:[#allocation4 + $0xd28] sm:$0xff]
        %v1898 = vld [vmem:[#allocation4 + $0xd30] sm:$0xff]
        %v1899 = vld [vmem:[#allocation4 + $0xd38] sm:$0xff]
        %v1900 = vld [vmem:[#allocation4 + $0xd40] sm:$0xff]
        %v1901 = vld [vmem:[#allocation4 + $0xd48] sm:$0xff]
        %v1902 = vld [vmem:[#allocation4 + $0xd50] sm:$0xff]
        %v1903 = vld [vmem:[#allocation4 + $0xd58] sm:$0xff]
        %v1904 = vld [vmem:[#allocation4 + $0xd60] sm:$0xff]
        %v1905 = vld [vmem:[#allocation4 + $0xd68] sm:$0xff]
        %v1906 = vld [vmem:[#allocation4 + $0xd70] sm:$0xff]
        %v1907 = vld [vmem:[#allocation4 + $0xd78] sm:$0xff]
        %v1908 = vld [vmem:[#allocation4 + $0xd80] sm:$0xff]
        %v1909 = vld [vmem:[#allocation4 + $0xd88] sm:$0xff]
        %v1910 = vld [vmem:[#allocation4 + $0xd90] sm:$0xff]
        %v1911 = vld [vmem:[#allocation4 + $0xd98] sm:$0xff]
        %v1912 = vld [vmem:[#allocation4 + $0xda0] sm:$0xff]
        %v1913 = vld [vmem:[#allocation4 + $0xda8] sm:$0xff]
        %v1914 = vld [vmem:[#allocation4 + $0xdb0] sm:$0xff]
        %v1915 = vld [vmem:[#allocation4 + $0xdb8] sm:$0xff]
        %v1916 = vld [vmem:[#allocation4 + $0xdc0] sm:$0xff]
        %v1917 = vld [vmem:[#allocation4 + $0xdc8] sm:$0xff]
        %v1918 = vld [vmem:[#allocation4 + $0xdd0] sm:$0xff]
        %v1919 = vld [vmem:[#allocation4 + $0xdd8] sm:$0xff]
        %v1920 = vld [vmem:[#allocation4 + $0xde0] sm:$0xff]
        %v1921 = vld [vmem:[#allocation4 + $0xde8] sm:$0xff]
        %v1922 = vld [vmem:[#allocation4 + $0xdf0] sm:$0xff]
        %v1923 = vld [vmem:[#allocation4 + $0xdf8] sm:$0xff]
        %v1924 = vld [vmem:[#allocation4 + $0xe00] sm:$0xff]
        %v1925 = vld [vmem:[#allocation4 + $0xe08] sm:$0xff]
        %v1926 = vld [vmem:[#allocation4 + $0xe10] sm:$0xff]
        %v1927 = vld [vmem:[#allocation4 + $0xe18] sm:$0xff]
        %v1928 = vld [vmem:[#allocation4 + $0xe20] sm:$0xff]
        %v1929 = vld [vmem:[#allocation4 + $0xe28] sm:$0xff]
        %v1930 = vld [vmem:[#allocation4 + $0xe30] sm:$0xff]
        %v1931 = vld [vmem:[#allocation4 + $0xe38] sm:$0xff]
        %v1932 = vld [vmem:[#allocation4 + $0xe40] sm:$0xff]
        %v1933 = vld [vmem:[#allocation4 + $0xe48] sm:$0xff]
        %v1934 = vld [vmem:[#allocation4 + $0xe50] sm:$0xff]
        %v1935 = vld [vmem:[#allocation4 + $0xe58] sm:$0xff]
        %v1936 = vld [vmem:[#allocation4 + $0xe60] sm:$0xff]
        %v1937 = vld [vmem:[#allocation4 + $0xe68] sm:$0xff]
        %v1938 = vld [vmem:[#allocation4 + $0xe70] sm:$0xff]
        %v1939 = vld [vmem:[#allocation4 + $0xe78] sm:$0xff]
        %v1940 = vld [vmem:[#allocation4 + $0xe80] sm:$0xff]
        %v1941 = vld [vmem:[#allocation4 + $0xe88] sm:$0xff]
        %v1942 = vld [vmem:[#allocation4 + $0xe90] sm:$0xff]
        %v1943 = vld [vmem:[#allocation4 + $0xe98] sm:$0xff]
        %v1944 = vld [vmem:[#allocation4 + $0xea0] sm:$0xff]
        %v1945 = vld [vmem:[#allocation4 + $0xea8] sm:$0xff]
        %v1946 = vld [vmem:[#allocation4 + $0xeb0] sm:$0xff]
        %v1947 = vld [vmem:[#allocation4 + $0xeb8] sm:$0xff]
        %v1948 = vld [vmem:[#allocation4 + $0xec0] sm:$0xff]
        %v1949 = vld [vmem:[#allocation4 + $0xec8] sm:$0xff]
        %v1950 = vld [vmem:[#allocation4 + $0xed0] sm:$0xff]
        %v1951 = vld [vmem:[#allocation4 + $0xed8] sm:$0xff]
        %v1952 = vld [vmem:[#allocation4 + $0xee0] sm:$0xff]
        %v1953 = vld [vmem:[#allocation4 + $0xee8] sm:$0xff]
        %v1954 = vld [vmem:[#allocation4 + $0xef0] sm:$0xff]
        %v1955 = vld [vmem:[#allocation4 + $0xef8] sm:$0xff]
        %v1956 = vld [vmem:[#allocation4 + $0xf00] sm:$0xff]
        %v1957 = vld [vmem:[#allocation4 + $0xf08] sm:$0xff]
        %v1958 = vld [vmem:[#allocation4 + $0xf10] sm:$0xff]
        %v1959 = vld [vmem:[#allocation4 + $0xf18] sm:$0xff]
        %v1960 = vld [vmem:[#allocation4 + $0xf20] sm:$0xff]
        %v1961 = vld [vmem:[#allocation4 + $0xf28] sm:$0xff]
        %v1962 = vld [vmem:[#allocation4 + $0xf30] sm:$0xff]
        %v1963 = vld [vmem:[#allocation4 + $0xf38] sm:$0xff]
        %v1964 = vld [vmem:[#allocation4 + $0xf40] sm:$0xff]
        %v1965 = vld [vmem:[#allocation4 + $0xf48] sm:$0xff]
        %v1966 = vld [vmem:[#allocation4 + $0xf50] sm:$0xff]
        %v1967 = vld [vmem:[#allocation4 + $0xf58] sm:$0xff]
        %v1968 = vld [vmem:[#allocation4 + $0xf60] sm:$0xff]
        %v1969 = vld [vmem:[#allocation4 + $0xf68] sm:$0xff]
        %v1970 = vld [vmem:[#allocation4 + $0xf70] sm:$0xff]
        %v1971 = vld [vmem:[#allocation4 + $0xf78] sm:$0xff]
        %v1972 = vld [vmem:[#allocation4 + $0xf80] sm:$0xff]
        %v1973 = vld [vmem:[#allocation4 + $0xf88] sm:$0xff]
        %v1974 = vld [vmem:[#allocation4 + $0xf90] sm:$0xff]
        %v1975 = vld [vmem:[#allocation4 + $0xf98] sm:$0xff]
        %v1976 = vld [vmem:[#allocation4 + $0xfa0] sm:$0xff]
        %v1977 = vld [vmem:[#allocation4 + $0xfa8] sm:$0xff]
        %v1978 = vld [vmem:[#allocation4 + $0xfb0] sm:$0xff]
        %v1979 = vld [vmem:[#allocation4 + $0xfb8] sm:$0xff]
        %v1980 = vld [vmem:[#allocation4 + $0xfc0] sm:$0xff]
        %v1981 = vld [vmem:[#allocation4 + $0xfc8] sm:$0xff]
        %v1982 = vld [vmem:[#allocation4 + $0xfd0] sm:$0xff]
        %v1983 = vld [vmem:[#allocation4 + $0xfd8] sm:$0xff]
        %v1984 = vld [vmem:[#allocation4 + $0xfe0] sm:$0xff]
        %v1985 = vld [vmem:[#allocation4 + $0xfe8] sm:$0xff]
        %v1986 = vld [vmem:[#allocation4 + $0xff0] sm:$0xff]
        %v1987 = vld [vmem:[#allocation4 + $0xff8] sm:$0xff]
        %v1988 = vld [vmem:[#allocation4 + $0x1000] sm:$0xff]
        %v1989 = vld [vmem:[#allocation4 + $0x1008] sm:$0xff]
        %v1990 = vld [vmem:[#allocation4 + $0x1010] sm:$0xff]
        %v1991 = vld [vmem:[#allocation4 + $0x1018] sm:$0xff]
        %v1992 = vld [vmem:[#allocation4 + $0x1020] sm:$0xff]
        %v1993 = vld [vmem:[#allocation4 + $0x1028] sm:$0xff]
        %v1994 = vld [vmem:[#allocation4 + $0x1030] sm:$0xff]
        %v1995 = vld [vmem:[#allocation4 + $0x1038] sm:$0xff]
        %v1996 = vld [vmem:[#allocation4 + $0x1040] sm:$0xff]
        %v1997 = vld [vmem:[#allocation4 + $0x1048] sm:$0xff]
        %v1998 = vld [vmem:[#allocation4 + $0x1050] sm:$0xff]
        %v1999 = vld [vmem:[#allocation4 + $0x1058] sm:$0xff]
        %v2000 = vld [vmem:[#allocation4 + $0x1060] sm:$0xff]
        %v2001 = vld [vmem:[#allocation4 + $0x1068] sm:$0xff]
        %v2002 = vld [vmem:[#allocation4 + $0x1070] sm:$0xff]
        %v2003 = vld [vmem:[#allocation4 + $0x1078] sm:$0xff]
        %v2004 = vld [vmem:[#allocation4 + $0x1080] sm:$0xff]
        %v2005 = vld [vmem:[#allocation4 + $0x1088] sm:$0xff]
        %v2006 = vld [vmem:[#allocation4 + $0x1090] sm:$0xff]
        %v2007 = vld [vmem:[#allocation4 + $0x1098] sm:$0xff]
        %v2008 = vld [vmem:[#allocation4 + $0x10a0] sm:$0xff]
        %v2009 = vld [vmem:[#allocation4 + $0x10a8] sm:$0xff]
        %v2010 = vld [vmem:[#allocation4 + $0x10b0] sm:$0xff]
        %v2011 = vld [vmem:[#allocation4 + $0x10b8] sm:$0xff]
        %v2012 = vld [vmem:[#allocation4 + $0x10c0] sm:$0xff]
        %v2013 = vld [vmem:[#allocation4 + $0x10c8] sm:$0xff]
        %v2014 = vld [vmem:[#allocation4 + $0x10d0] sm:$0xff]
        %v2015 = vld [vmem:[#allocation4 + $0x10d8] sm:$0xff]
        %v2016 = vld [vmem:[#allocation4 + $0x10e0] sm:$0xff]
        %v2017 = vld [vmem:[#allocation4 + $0x10e8] sm:$0xff]
        %v2018 = vld [vmem:[#allocation4 + $0x10f0] sm:$0xff]
        %v2019 = vld [vmem:[#allocation4 + $0x10f8] sm:$0xff]
        %v2020 = vld [vmem:[#allocation4 + $0x1100] sm:$0xff]
        %v2021 = vld [vmem:[#allocation4 + $0x1108] sm:$0xff]
        %v2022 = vld [vmem:[#allocation4 + $0x1110] sm:$0xff]
        %v2023 = vld [vmem:[#allocation4 + $0x1118] sm:$0xff]
        %v2024 = vld [vmem:[#allocation4 + $0x1120] sm:$0xff]
        %v2025 = vld [vmem:[#allocation4 + $0x1128] sm:$0xff]
        %v2026 = vld [vmem:[#allocation4 + $0x1130] sm:$0xff]
        %v2027 = vld [vmem:[#allocation4 + $0x1138] sm:$0xff]
        %v2028 = vld [vmem:[#allocation4 + $0x1140] sm:$0xff]
        %v2029 = vld [vmem:[#allocation4 + $0x1148] sm:$0xff]
        %v2030 = vld [vmem:[#allocation4 + $0x1150] sm:$0xff]
        %v2031 = vld [vmem:[#allocation4 + $0x1158] sm:$0xff]
        %v2032 = vld [vmem:[#allocation4 + $0x1160] sm:$0xff]
        %v2033 = vld [vmem:[#allocation4 + $0x1168] sm:$0xff]
        %v2034 = vld [vmem:[#allocation4 + $0x1170] sm:$0xff]
        %v2035 = vld [vmem:[#allocation4 + $0x1178] sm:$0xff]
        %v2036 = vld [vmem:[#allocation4 + $0x1180] sm:$0xff]
        %v2037 = vld [vmem:[#allocation4 + $0x1188] sm:$0xff]
        %v2038 = vld [vmem:[#allocation4 + $0x1190] sm:$0xff]
        %v2039 = vld [vmem:[#allocation4 + $0x1198] sm:$0xff]
        %v2040 = vld [vmem:[#allocation4 + $0x11a0] sm:$0xff]
        %v2041 = vld [vmem:[#allocation4 + $0x11a8] sm:$0xff]
        %v2042 = vld [vmem:[#allocation4 + $0x11b0] sm:$0xff]
        %v2043 = vld [vmem:[#allocation4 + $0x11b8] sm:$0xff]
        %v2044 = vld [vmem:[#allocation4 + $0x11c0] sm:$0xff]
        %v2045 = vld [vmem:[#allocation4 + $0x11c8] sm:$0xff]
        %v2046 = vld [vmem:[#allocation4 + $0x11d0] sm:$0xff]
        %v2047 = vld [vmem:[#allocation4 + $0x11d8] sm:$0xff]
        %v2048 = vld [vmem:[#allocation4 + $0x11e0] sm:$0xff]
        %v2049 = vld [vmem:[#allocation4 + $0x11e8] sm:$0xff]
        %v2050 = vld [vmem:[#allocation4 + $0x11f0] sm:$0xff]
        %v2051 = vld [vmem:[#allocation4 + $0x11f8] sm:$0xff]
        %v2054 = vunpack.c.l.s4 1983009808
        %v2055 = vunpack.c.0.s8 %v2054
        %v2056 = vlaneseq
        %v2057 = vshrl.u32 %v2056, 7
        %v2058 = vsub.s32 %v2055, %v2057
        %v2059 = vrot.slane %v1475, %v2058
        %v2060 = vcombine.high %v2059, %v2059
        %2063 = vmatprep.subr.mxu0 %v1477
        %2064 = vmatpush1.msra.mxu0 %v1476
        %2065 = vmatprep.subr.mxu0 %v1495
        %2066 = vmatpush1.msra.mxu0 %v1494
        %2067 = vmatprep.subr.mxu0 %v1513
        %2068 = vmatpush1.msra.mxu0 %v1512
        %2069 = vmatprep.subr.mxu0 %v1531
        %2070 = vmatpush1.msra.mxu0 %v1530
        %2071 = vmatprep.subr.mxu0 %v1549
        %2072 = vmatpush1.msra.mxu0 %v1548
        %2073 = vmatprep.subr.mxu0 %v1567
        %2074 = vmatpush1.msra.mxu0 %v1566
        %2075 = vmatprep.subr.mxu0 %v1585
        %2076 = vmatpush1.msra.mxu0 %v1584
        %2077 = vmatprep.subr.mxu0 %v1603
        %2078 = vmatpush1.msra.mxu0 %v1602
        %2079 = vmatprep.subr.mxu0 %v1621
        %2080 = vmatpush1.msra.mxu0 %v1620
        %2081 = vmatprep.subr.mxu0 %v1639
        %2082 = vmatpush1.msra.mxu0 %v1638
        %2083 = vmatprep.subr.mxu0 %v1657
        %2084 = vmatpush1.msra.mxu0 %v1656
        %2085 = vmatprep.subr.mxu0 %v1675
        %2086 = vmatpush1.msra.mxu0 %v1674
        %2087 = vmatprep.subr.mxu0 %v1693
        %2088 = vmatpush1.msra.mxu0 %v1692
        %2089 = vmatprep.subr.mxu0 %v1711
        %2090 = vmatpush1.msra.mxu0 %v1710
        %2091 = vmatprep.subr.mxu0 %v1729
        %2092 = vmatpush1.msra.mxu0 %v1728
        %2093 = vmatprep.subr.mxu0 %v1747
        %2094 = vmatpush1.msra.mxu0 %v1746
        %2095 = vmatprep.subr.mxu0 %v1765
        %2096 = vmatpush1.msra.mxu0 %v1764
        %2097 = vmatprep.subr.mxu0 %v1783
        %2098 = vmatpush1.msra.mxu0 %v1782
        %2099 = vmatprep.subr.mxu0 %v1801
        %2100 = vmatpush1.msra.mxu0 %v1800
        %2101 = vmatprep.subr.mxu0 %v1819
        %2102 = vmatpush1.msra.mxu0 %v1818
        %2103 = vmatprep.subr.mxu0 %v1837
        %2104 = vmatpush1.msra.mxu0 %v1836
        %2105 = vmatprep.subr.mxu0 %v1855
        %2106 = vmatpush1.msra.mxu0 %v1854
        %2107 = vmatprep.subr.mxu0 %v1873
        %2108 = vmatpush1.msra.mxu0 %v1872
        %2109 = vmatprep.subr.mxu0 %v1891
        %2110 = vmatpush1.msra.mxu0 %v1890
        %2111 = vmatprep.subr.mxu0 %v1909
        %2112 = vmatpush1.msra.mxu0 %v1908
        %2113 = vmatprep.subr.mxu0 %v1927
        %2114 = vmatpush1.msra.mxu0 %v1926
        %2115 = vmatprep.subr.mxu0 %v1945
        %2116 = vmatpush1.msra.mxu0 %v1944
        %2117 = vmatprep.subr.mxu0 %v1963
        %2118 = vmatpush1.msra.mxu0 %v1962
        %2119 = vmatprep.subr.mxu0 %v1981
        %2120 = vmatpush1.msra.mxu0 %v1980
        %2121 = vmatprep.subr.mxu0 %v1999
        %2122 = vmatpush1.msra.mxu0 %v1998
        %2123 = vmatprep.subr.mxu0 %v2017
        %2124 = vmatpush1.msra.mxu0 %v2016
        %2125 = vmatprep.subr.mxu0 %v2035
        %2126 = vmatpush1.msra.mxu0 %v2034
        %2127 = vmatprep.mubr.f32.mxu0 %v2060
        %2128 = vmatmul.mubr.f32.gmra.mrb[0].mxu0 %v2059
        %v2129 = vpop.f32.mrb[0].mxu0
        %v2130 = vadd.f32 0.0, %v2129
        %v2131 = vpop.f32.mrb[0].mxu0
        %v2132 = vadd.f32 0.0, %v2131
        %2133 = vdwg.mxu0
        %2134 = vmatprep.subr.mxu0 %v1479
        %2135 = vmatpush1.msra.mxu0 %v1478
        %2136 = vmatprep.subr.mxu0 %v1497
        %2137 = vmatpush1.msra.mxu0 %v1496
        %2138 = vmatprep.subr.mxu0 %v1515
        %2139 = vmatpush1.msra.mxu0 %v1514
        %2140 = vmatprep.subr.mxu0 %v1533
        %2141 = vmatpush1.msra.mxu0 %v1532
        %2142 = vmatprep.subr.mxu0 %v1551
        %2143 = vmatpush1.msra.mxu0 %v1550
        %2144 = vmatprep.subr.mxu0 %v1569
        %2145 = vmatpush1.msra.mxu0 %v1568
        %2146 = vmatprep.subr.mxu0 %v1587
        %2147 = vmatpush1.msra.mxu0 %v1586
        %2148 = vmatprep.subr.mxu0 %v1605
        %2149 = vmatpush1.msra.mxu0 %v1604
        %2150 = vmatprep.subr.mxu0 %v1623
        %2151 = vmatpush1.msra.mxu0 %v1622
        %2152 = vmatprep.subr.mxu0 %v1641
        %2153 = vmatpush1.msra.mxu0 %v1640
        %2154 = vmatprep.subr.mxu0 %v1659
        %2155 = vmatpush1.msra.mxu0 %v1658
        %2156 = vmatprep.subr.mxu0 %v1677
        %2157 = vmatpush1.msra.mxu0 %v1676
        %2158 = vmatprep.subr.mxu0 %v1695
        %2159 = vmatpush1.msra.mxu0 %v1694
        %2160 = vmatprep.subr.mxu0 %v1713
        %2161 = vmatpush1.msra.mxu0 %v1712
        %2162 = vmatprep.subr.mxu0 %v1731
        %2163 = vmatpush1.msra.mxu0 %v1730
        %2164 = vmatprep.subr.mxu0 %v1749
        %2165 = vmatpush1.msra.mxu0 %v1748
        %2166 = vmatprep.subr.mxu0 %v1767
        %2167 = vmatpush1.msra.mxu0 %v1766
        %2168 = vmatprep.subr.mxu0 %v1785
        %2169 = vmatpush1.msra.mxu0 %v1784
        %2170 = vmatprep.subr.mxu0 %v1803
        %2171 = vmatpush1.msra.mxu0 %v1802
        %2172 = vmatprep.subr.mxu0 %v1821
        %2173 = vmatpush1.msra.mxu0 %v1820
        %2174 = vmatprep.subr.mxu0 %v1839
        %2175 = vmatpush1.msra.mxu0 %v1838
        %2176 = vmatprep.subr.mxu0 %v1857
        %2177 = vmatpush1.msra.mxu0 %v1856
        %2178 = vmatprep.subr.mxu0 %v1875
        %2179 = vmatpush1.msra.mxu0 %v1874
        %2180 = vmatprep.subr.mxu0 %v1893
        %2181 = vmatpush1.msra.mxu0 %v1892
        %2182 = vmatprep.subr.mxu0 %v1911
        %2183 = vmatpush1.msra.mxu0 %v1910
        %2184 = vmatprep.subr.mxu0 %v1929
        %2185 = vmatpush1.msra.mxu0 %v1928
        %2186 = vmatprep.subr.mxu0 %v1947
        %2187 = vmatpush1.msra.mxu0 %v1946
        %2188 = vmatprep.subr.mxu0 %v1965
        %2189 = vmatpush1.msra.mxu0 %v1964
        %2190 = vmatprep.subr.mxu0 %v1983
        %2191 = vmatpush1.msra.mxu0 %v1982
        %2192 = vmatprep.subr.mxu0 %v2001
        %2193 = vmatpush1.msra.mxu0 %v2000
        %2194 = vmatprep.subr.mxu0 %v2019
        %2195 = vmatpush1.msra.mxu0 %v2018
        %2196 = vmatprep.subr.mxu0 %v2037
        %2197 = vmatpush1.msra.mxu0 %v2036
        %2198 = vmatprep.mubr.f32.mxu0 %v2060
        %2199 = vmatmul.mubr.f32.gmra.mrb[0].mxu0 %v2059
        %v2200 = vpop.f32.mrb[0].mxu0
        %v2201 = vadd.f32 0.0, %v2200
        %v2202 = vpop.f32.mrb[0].mxu0
        %v2203 = vadd.f32 0.0, %v2202
        %2204 = vdwg.mxu0
        %2205 = vmatprep.subr.mxu0 %v1481
        %2206 = vmatpush1.msra.mxu0 %v1480
        %2207 = vmatprep.subr.mxu0 %v1499
        %2208 = vmatpush1.msra.mxu0 %v1498
        %2209 = vmatprep.subr.mxu0 %v1517
        %2210 = vmatpush1.msra.mxu0 %v1516
        %2211 = vmatprep.subr.mxu0 %v1535
        %2212 = vmatpush1.msra.mxu0 %v1534
        %2213 = vmatprep.subr.mxu0 %v1553
        %2214 = vmatpush1.msra.mxu0 %v1552
        %2215 = vmatprep.subr.mxu0 %v1571
        %2216 = vmatpush1.msra.mxu0 %v1570
        %2217 = vmatprep.subr.mxu0 %v1589
        %2218 = vmatpush1.msra.mxu0 %v1588
        %2219 = vmatprep.subr.mxu0 %v1607
        %2220 = vmatpush1.msra.mxu0 %v1606
        %2221 = vmatprep.subr.mxu0 %v1625
        %2222 = vmatpush1.msra.mxu0 %v1624
        %2223 = vmatprep.subr.mxu0 %v1643
        %2224 = vmatpush1.msra.mxu0 %v1642
        %2225 = vmatprep.subr.mxu0 %v1661
        %2226 = vmatpush1.msra.mxu0 %v1660
        %2227 = vmatprep.subr.mxu0 %v1679
        %2228 = vmatpush1.msra.mxu0 %v1678
        %2229 = vmatprep.subr.mxu0 %v1697
        %2230 = vmatpush1.msra.mxu0 %v1696
        %2231 = vmatprep.subr.mxu0 %v1715
        %2232 = vmatpush1.msra.mxu0 %v1714
        %2233 = vmatprep.subr.mxu0 %v1733
        %2234 = vmatpush1.msra.mxu0 %v1732
        %2235 = vmatprep.subr.mxu0 %v1751
        %2236 = vmatpush1.msra.mxu0 %v1750
        %2237 = vmatprep.subr.mxu0 %v1769
        %2238 = vmatpush1.msra.mxu0 %v1768
        %2239 = vmatprep.subr.mxu0 %v1787
        %2240 = vmatpush1.msra.mxu0 %v1786
        %2241 = vmatprep.subr.mxu0 %v1805
        %2242 = vmatpush1.msra.mxu0 %v1804
        %2243 = vmatprep.subr.mxu0 %v1823
        %2244 = vmatpush1.msra.mxu0 %v1822
        %2245 = vmatprep.subr.mxu0 %v1841
        %2246 = vmatpush1.msra.mxu0 %v1840
        %2247 = vmatprep.subr.mxu0 %v1859
        %2248 = vmatpush1.msra.mxu0 %v1858
        %2249 = vmatprep.subr.mxu0 %v1877
        %2250 = vmatpush1.msra.mxu0 %v1876
        %2251 = vmatprep.subr.mxu0 %v1895
        %2252 = vmatpush1.msra.mxu0 %v1894
        %2253 = vmatprep.subr.mxu0 %v1913
        %2254 = vmatpush1.msra.mxu0 %v1912
        %2255 = vmatprep.subr.mxu0 %v1931
        %2256 = vmatpush1.msra.mxu0 %v1930
        %2257 = vmatprep.subr.mxu0 %v1949
        %2258 = vmatpush1.msra.mxu0 %v1948
        %2259 = vmatprep.subr.mxu0 %v1967
        %2260 = vmatpush1.msra.mxu0 %v1966
        %2261 = vmatprep.subr.mxu0 %v1985
        %2262 = vmatpush1.msra.mxu0 %v1984
        %2263 = vmatprep.subr.mxu0 %v2003
        %2264 = vmatpush1.msra.mxu0 %v2002
        %2265 = vmatprep.subr.mxu0 %v2021
        %2266 = vmatpush1.msra.mxu0 %v2020
        %2267 = vmatprep.subr.mxu0 %v2039
        %2268 = vmatpush1.msra.mxu0 %v2038
        %2269 = vmatprep.mubr.f32.mxu0 %v2060
        %2270 = vmatmul.mubr.f32.gmra.mrb[0].mxu0 %v2059
        %v2271 = vpop.f32.mrb[0].mxu0
        %v2272 = vadd.f32 0.0, %v2271
        %v2273 = vpop.f32.mrb[0].mxu0
        %v2274 = vadd.f32 0.0, %v2273
        %2275 = vdwg.mxu0
        %2276 = vmatprep.subr.mxu0 %v1483
        %2277 = vmatpush1.msra.mxu0 %v1482
        %2278 = vmatprep.subr.mxu0 %v1501
        %2279 = vmatpush1.msra.mxu0 %v1500
        %2280 = vmatprep.subr.mxu0 %v1519
        %2281 = vmatpush1.msra.mxu0 %v1518
        %2282 = vmatprep.subr.mxu0 %v1537
        %2283 = vmatpush1.msra.mxu0 %v1536
        %2284 = vmatprep.subr.mxu0 %v1555
        %2285 = vmatpush1.msra.mxu0 %v1554
        %2286 = vmatprep.subr.mxu0 %v1573
        %2287 = vmatpush1.msra.mxu0 %v1572
        %2288 = vmatprep.subr.mxu0 %v1591
        %2289 = vmatpush1.msra.mxu0 %v1590
        %2290 = vmatprep.subr.mxu0 %v1609
        %2291 = vmatpush1.msra.mxu0 %v1608
        %2292 = vmatprep.subr.mxu0 %v1627
        %2293 = vmatpush1.msra.mxu0 %v1626
        %2294 = vmatprep.subr.mxu0 %v1645
        %2295 = vmatpush1.msra.mxu0 %v1644
        %2296 = vmatprep.subr.mxu0 %v1663
        %2297 = vmatpush1.msra.mxu0 %v1662
        %2298 = vmatprep.subr.mxu0 %v1681
        %2299 = vmatpush1.msra.mxu0 %v1680
        %2300 = vmatprep.subr.mxu0 %v1699
        %2301 = vmatpush1.msra.mxu0 %v1698
        %2302 = vmatprep.subr.mxu0 %v1717
        %2303 = vmatpush1.msra.mxu0 %v1716
        %2304 = vmatprep.subr.mxu0 %v1735
        %2305 = vmatpush1.msra.mxu0 %v1734
        %2306 = vmatprep.subr.mxu0 %v1753
        %2307 = vmatpush1.msra.mxu0 %v1752
        %2308 = vmatprep.subr.mxu0 %v1771
        %2309 = vmatpush1.msra.mxu0 %v1770
        %2310 = vmatprep.subr.mxu0 %v1789
        %2311 = vmatpush1.msra.mxu0 %v1788
        %2312 = vmatprep.subr.mxu0 %v1807
        %2313 = vmatpush1.msra.mxu0 %v1806
        %2314 = vmatprep.subr.mxu0 %v1825
        %2315 = vmatpush1.msra.mxu0 %v1824
        %2316 = vmatprep.subr.mxu0 %v1843
        %2317 = vmatpush1.msra.mxu0 %v1842
        %2318 = vmatprep.subr.mxu0 %v1861
        %2319 = vmatpush1.msra.mxu0 %v1860
        %2320 = vmatprep.subr.mxu0 %v1879
        %2321 = vmatpush1.msra.mxu0 %v1878
        %2322 = vmatprep.subr.mxu0 %v1897
        %2323 = vmatpush1.msra.mxu0 %v1896
        %2324 = vmatprep.subr.mxu0 %v1915
        %2325 = vmatpush1.msra.mxu0 %v1914
        %2326 = vmatprep.subr.mxu0 %v1933
        %2327 = vmatpush1.msra.mxu0 %v1932
        %2328 = vmatprep.subr.mxu0 %v1951
        %2329 = vmatpush1.msra.mxu0 %v1950
        %2330 = vmatprep.subr.mxu0 %v1969
        %2331 = vmatpush1.msra.mxu0 %v1968
        %2332 = vmatprep.subr.mxu0 %v1987
        %2333 = vmatpush1.msra.mxu0 %v1986
        %2334 = vmatprep.subr.mxu0 %v2005
        %2335 = vmatpush1.msra.mxu0 %v2004
        %2336 = vmatprep.subr.mxu0 %v2023
        %2337 = vmatpush1.msra.mxu0 %v2022
        %2338 = vmatprep.subr.mxu0 %v2041
        %2339 = vmatpush1.msra.mxu0 %v2040
        %2340 = vmatprep.mubr.f32.mxu0 %v2060
        %2341 = vmatmul.mubr.f32.gmra.mrb[0].mxu0 %v2059
        %v2342 = vpop.f32.mrb[0].mxu0
        %v2343 = vadd.f32 0.0, %v2342
        %v2344 = vpop.f32.mrb[0].mxu0
        %v2345 = vadd.f32 0.0, %v2344
        %2346 = vdwg.mxu0
        %2347 = vmatprep.subr.mxu0 %v1485
        %2348 = vmatpush1.msra.mxu0 %v1484
        %2349 = vmatprep.subr.mxu0 %v1503
        %2350 = vmatpush1.msra.mxu0 %v1502
        %2351 = vmatprep.subr.mxu0 %v1521
        %2352 = vmatpush1.msra.mxu0 %v1520
        %2353 = vmatprep.subr.mxu0 %v1539
        %2354 = vmatpush1.msra.mxu0 %v1538
        %2355 = vmatprep.subr.mxu0 %v1557
        %2356 = vmatpush1.msra.mxu0 %v1556
        %2357 = vmatprep.subr.mxu0 %v1575
        %2358 = vmatpush1.msra.mxu0 %v1574
        %2359 = vmatprep.subr.mxu0 %v1593
        %2360 = vmatpush1.msra.mxu0 %v1592
        %2361 = vmatprep.subr.mxu0 %v1611
        %2362 = vmatpush1.msra.mxu0 %v1610
        %2363 = vmatprep.subr.mxu0 %v1629
        %2364 = vmatpush1.msra.mxu0 %v1628
        %2365 = vmatprep.subr.mxu0 %v1647
        %2366 = vmatpush1.msra.mxu0 %v1646
        %2367 = vmatprep.subr.mxu0 %v1665
        %2368 = vmatpush1.msra.mxu0 %v1664
        %2369 = vmatprep.subr.mxu0 %v1683
        %2370 = vmatpush1.msra.mxu0 %v1682
        %2371 = vmatprep.subr.mxu0 %v1701
        %2372 = vmatpush1.msra.mxu0 %v1700
        %2373 = vmatprep.subr.mxu0 %v1719
        %2374 = vmatpush1.msra.mxu0 %v1718
        %2375 = vmatprep.subr.mxu0 %v1737
        %2376 = vmatpush1.msra.mxu0 %v1736
        %2377 = vmatprep.subr.mxu0 %v1755
        %2378 = vmatpush1.msra.mxu0 %v1754
        %2379 = vmatprep.subr.mxu0 %v1773
        %2380 = vmatpush1.msra.mxu0 %v1772
        %2381 = vmatprep.subr.mxu0 %v1791
        %2382 = vmatpush1.msra.mxu0 %v1790
        %2383 = vmatprep.subr.mxu0 %v1809
        %2384 = vmatpush1.msra.mxu0 %v1808
        %2385 = vmatprep.subr.mxu0 %v1827
        %2386 = vmatpush1.msra.mxu0 %v1826
        %2387 = vmatprep.subr.mxu0 %v1845
        %2388 = vmatpush1.msra.mxu0 %v1844
        %2389 = vmatprep.subr.mxu0 %v1863
        %2390 = vmatpush1.msra.mxu0 %v1862
        %2391 = vmatprep.subr.mxu0 %v1881
        %2392 = vmatpush1.msra.mxu0 %v1880
        %2393 = vmatprep.subr.mxu0 %v1899
        %2394 = vmatpush1.msra.mxu0 %v1898
        %2395 = vmatprep.subr.mxu0 %v1917
        %2396 = vmatpush1.msra.mxu0 %v1916
        %2397 = vmatprep.subr.mxu0 %v1935
        %2398 = vmatpush1.msra.mxu0 %v1934
        %2399 = vmatprep.subr.mxu0 %v1953
        %2400 = vmatpush1.msra.mxu0 %v1952
        %2401 = vmatprep.subr.mxu0 %v1971
        %2402 = vmatpush1.msra.mxu0 %v1970
        %2403 = vmatprep.subr.mxu0 %v1989
        %2404 = vmatpush1.msra.mxu0 %v1988
        %2405 = vmatprep.subr.mxu0 %v2007
        %2406 = vmatpush1.msra.mxu0 %v2006
        %2407 = vmatprep.subr.mxu0 %v2025
        %2408 = vmatpush1.msra.mxu0 %v2024
        %2409 = vmatprep.subr.mxu0 %v2043
        %2410 = vmatpush1.msra.mxu0 %v2042
        %2411 = vmatprep.mubr.f32.mxu0 %v2060
        %2412 = vmatmul.mubr.f32.gmra.mrb[0].mxu0 %v2059
        %v2413 = vpop.f32.mrb[0].mxu0
        %v2414 = vadd.f32 0.0, %v2413
        %v2415 = vpop.f32.mrb[0].mxu0
        %v2416 = vadd.f32 0.0, %v2415
        %2417 = vdwg.mxu0
        %2418 = vmatprep.subr.mxu0 %v1487
        %2419 = vmatpush1.msra.mxu0 %v1486
        %2420 = vmatprep.subr.mxu0 %v1505
        %2421 = vmatpush1.msra.mxu0 %v1504
        %2422 = vmatprep.subr.mxu0 %v1523
        %2423 = vmatpush1.msra.mxu0 %v1522
        %2424 = vmatprep.subr.mxu0 %v1541
        %2425 = vmatpush1.msra.mxu0 %v1540
        %2426 = vmatprep.subr.mxu0 %v1559
        %2427 = vmatpush1.msra.mxu0 %v1558
        %2428 = vmatprep.subr.mxu0 %v1577
        %2429 = vmatpush1.msra.mxu0 %v1576
        %2430 = vmatprep.subr.mxu0 %v1595
        %2431 = vmatpush1.msra.mxu0 %v1594
        %2432 = vmatprep.subr.mxu0 %v1613
        %2433 = vmatpush1.msra.mxu0 %v1612
        %2434 = vmatprep.subr.mxu0 %v1631
        %2435 = vmatpush1.msra.mxu0 %v1630
        %2436 = vmatprep.subr.mxu0 %v1649
        %2437 = vmatpush1.msra.mxu0 %v1648
        %2438 = vmatprep.subr.mxu0 %v1667
        %2439 = vmatpush1.msra.mxu0 %v1666
        %2440 = vmatprep.subr.mxu0 %v1685
        %2441 = vmatpush1.msra.mxu0 %v1684
        %2442 = vmatprep.subr.mxu0 %v1703
        %2443 = vmatpush1.msra.mxu0 %v1702
        %2444 = vmatprep.subr.mxu0 %v1721
        %2445 = vmatpush1.msra.mxu0 %v1720
        %2446 = vmatprep.subr.mxu0 %v1739
        %2447 = vmatpush1.msra.mxu0 %v1738
        %2448 = vmatprep.subr.mxu0 %v1757
        %2449 = vmatpush1.msra.mxu0 %v1756
        %2450 = vmatprep.subr.mxu0 %v1775
        %2451 = vmatpush1.msra.mxu0 %v1774
        %2452 = vmatprep.subr.mxu0 %v1793
        %2453 = vmatpush1.msra.mxu0 %v1792
        %2454 = vmatprep.subr.mxu0 %v1811
        %2455 = vmatpush1.msra.mxu0 %v1810
        %2456 = vmatprep.subr.mxu0 %v1829
        %2457 = vmatpush1.msra.mxu0 %v1828
        %2458 = vmatprep.subr.mxu0 %v1847
        %2459 = vmatpush1.msra.mxu0 %v1846
        %2460 = vmatprep.subr.mxu0 %v1865
        %2461 = vmatpush1.msra.mxu0 %v1864
        %2462 = vmatprep.subr.mxu0 %v1883
        %2463 = vmatpush1.msra.mxu0 %v1882
        %2464 = vmatprep.subr.mxu0 %v1901
        %2465 = vmatpush1.msra.mxu0 %v1900
        %2466 = vmatprep.subr.mxu0 %v1919
        %2467 = vmatpush1.msra.mxu0 %v1918
        %2468 = vmatprep.subr.mxu0 %v1937
        %2469 = vmatpush1.msra.mxu0 %v1936
        %2470 = vmatprep.subr.mxu0 %v1955
        %2471 = vmatpush1.msra.mxu0 %v1954
        %2472 = vmatprep.subr.mxu0 %v1973
        %2473 = vmatpush1.msra.mxu0 %v1972
        %2474 = vmatprep.subr.mxu0 %v1991
        %2475 = vmatpush1.msra.mxu0 %v1990
        %2476 = vmatprep.subr.mxu0 %v2009
        %2477 = vmatpush1.msra.mxu0 %v2008
        %2478 = vmatprep.subr.mxu0 %v2027
        %2479 = vmatpush1.msra.mxu0 %v2026
        %2480 = vmatprep.subr.mxu0 %v2045
        %2481 = vmatpush1.msra.mxu0 %v2044
        %2482 = vmatprep.mubr.f32.mxu0 %v2060
        %2483 = vmatmul.mubr.f32.gmra.mrb[0].mxu0 %v2059
        %v2484 = vpop.f32.mrb[0].mxu0
        %v2485 = vadd.f32 0.0, %v2484
        %v2486 = vpop.f32.mrb[0].mxu0
        %v2487 = vadd.f32 0.0, %v2486
        %2488 = vdwg.mxu0
        %2489 = vmatprep.subr.mxu0 %v1489
        %2490 = vmatpush1.msra.mxu0 %v1488
        %2491 = vmatprep.subr.mxu0 %v1507
        %2492 = vmatpush1.msra.mxu0 %v1506
        %2493 = vmatprep.subr.mxu0 %v1525
        %2494 = vmatpush1.msra.mxu0 %v1524
        %2495 = vmatprep.subr.mxu0 %v1543
        %2496 = vmatpush1.msra.mxu0 %v1542
        %2497 = vmatprep.subr.mxu0 %v1561
        %2498 = vmatpush1.msra.mxu0 %v1560
        %2499 = vmatprep.subr.mxu0 %v1579
        %2500 = vmatpush1.msra.mxu0 %v1578
        %2501 = vmatprep.subr.mxu0 %v1597
        %2502 = vmatpush1.msra.mxu0 %v1596
        %2503 = vmatprep.subr.mxu0 %v1615
        %2504 = vmatpush1.msra.mxu0 %v1614
        %2505 = vmatprep.subr.mxu0 %v1633
        %2506 = vmatpush1.msra.mxu0 %v1632
        %2507 = vmatprep.subr.mxu0 %v1651
        %2508 = vmatpush1.msra.mxu0 %v1650
        %2509 = vmatprep.subr.mxu0 %v1669
        %2510 = vmatpush1.msra.mxu0 %v1668
        %2511 = vmatprep.subr.mxu0 %v1687
        %2512 = vmatpush1.msra.mxu0 %v1686
        %2513 = vmatprep.subr.mxu0 %v1705
        %2514 = vmatpush1.msra.mxu0 %v1704
        %2515 = vmatprep.subr.mxu0 %v1723
        %2516 = vmatpush1.msra.mxu0 %v1722
        %2517 = vmatprep.subr.mxu0 %v1741
        %2518 = vmatpush1.msra.mxu0 %v1740
        %2519 = vmatprep.subr.mxu0 %v1759
        %2520 = vmatpush1.msra.mxu0 %v1758
        %2521 = vmatprep.subr.mxu0 %v1777
        %2522 = vmatpush1.msra.mxu0 %v1776
        %2523 = vmatprep.subr.mxu0 %v1795
        %2524 = vmatpush1.msra.mxu0 %v1794
        %2525 = vmatprep.subr.mxu0 %v1813
        %2526 = vmatpush1.msra.mxu0 %v1812
        %2527 = vmatprep.subr.mxu0 %v1831
        %2528 = vmatpush1.msra.mxu0 %v1830
        %2529 = vmatprep.subr.mxu0 %v1849
        %2530 = vmatpush1.msra.mxu0 %v1848
        %2531 = vmatprep.subr.mxu0 %v1867
        %2532 = vmatpush1.msra.mxu0 %v1866
        %2533 = vmatprep.subr.mxu0 %v1885
        %2534 = vmatpush1.msra.mxu0 %v1884
        %2535 = vmatprep.subr.mxu0 %v1903
        %2536 = vmatpush1.msra.mxu0 %v1902
        %2537 = vmatprep.subr.mxu0 %v1921
        %2538 = vmatpush1.msra.mxu0 %v1920
        %2539 = vmatprep.subr.mxu0 %v1939
        %2540 = vmatpush1.msra.mxu0 %v1938
        %2541 = vmatprep.subr.mxu0 %v1957
        %2542 = vmatpush1.msra.mxu0 %v1956
        %2543 = vmatprep.subr.mxu0 %v1975
        %2544 = vmatpush1.msra.mxu0 %v1974
        %2545 = vmatprep.subr.mxu0 %v1993
        %2546 = vmatpush1.msra.mxu0 %v1992
        %2547 = vmatprep.subr.mxu0 %v2011
        %2548 = vmatpush1.msra.mxu0 %v2010
        %2549 = vmatprep.subr.mxu0 %v2029
        %2550 = vmatpush1.msra.mxu0 %v2028
        %2551 = vmatprep.subr.mxu0 %v2047
        %2552 = vmatpush1.msra.mxu0 %v2046
        %2553 = vmatprep.mubr.f32.mxu0 %v2060
        %2554 = vmatmul.mubr.f32.gmra.mrb[0].mxu0 %v2059
        %v2555 = vpop.f32.mrb[0].mxu0
        %v2556 = vadd.f32 0.0, %v2555
        %v2557 = vpop.f32.mrb[0].mxu0
        %v2558 = vadd.f32 0.0, %v2557
        %2559 = vdwg.mxu0
        %2560 = vmatprep.subr.mxu0 %v1491
        %2561 = vmatpush1.msra.mxu0 %v1490
        %2562 = vmatprep.subr.mxu0 %v1509
        %2563 = vmatpush1.msra.mxu0 %v1508
        %2564 = vmatprep.subr.mxu0 %v1527
        %2565 = vmatpush1.msra.mxu0 %v1526
        %2566 = vmatprep.subr.mxu0 %v1545
        %2567 = vmatpush1.msra.mxu0 %v1544
        %2568 = vmatprep.subr.mxu0 %v1563
        %2569 = vmatpush1.msra.mxu0 %v1562
        %2570 = vmatprep.subr.mxu0 %v1581
        %2571 = vmatpush1.msra.mxu0 %v1580
        %2572 = vmatprep.subr.mxu0 %v1599
        %2573 = vmatpush1.msra.mxu0 %v1598
        %2574 = vmatprep.subr.mxu0 %v1617
        %2575 = vmatpush1.msra.mxu0 %v1616
        %2576 = vmatprep.subr.mxu0 %v1635
        %2577 = vmatpush1.msra.mxu0 %v1634
        %2578 = vmatprep.subr.mxu0 %v1653
        %2579 = vmatpush1.msra.mxu0 %v1652
        %2580 = vmatprep.subr.mxu0 %v1671
        %2581 = vmatpush1.msra.mxu0 %v1670
        %2582 = vmatprep.subr.mxu0 %v1689
        %2583 = vmatpush1.msra.mxu0 %v1688
        %2584 = vmatprep.subr.mxu0 %v1707
        %2585 = vmatpush1.msra.mxu0 %v1706
        %2586 = vmatprep.subr.mxu0 %v1725
        %2587 = vmatpush1.msra.mxu0 %v1724
        %2588 = vmatprep.subr.mxu0 %v1743
        %2589 = vmatpush1.msra.mxu0 %v1742
        %2590 = vmatprep.subr.mxu0 %v1761
        %2591 = vmatpush1.msra.mxu0 %v1760
        %2592 = vmatprep.subr.mxu0 %v1779
        %2593 = vmatpush1.msra.mxu0 %v1778
        %2594 = vmatprep.subr.mxu0 %v1797
        %2595 = vmatpush1.msra.mxu0 %v1796
        %2596 = vmatprep.subr.mxu0 %v1815
        %2597 = vmatpush1.msra.mxu0 %v1814
        %2598 = vmatprep.subr.mxu0 %v1833
        %2599 = vmatpush1.msra.mxu0 %v1832
        %2600 = vmatprep.subr.mxu0 %v1851
        %2601 = vmatpush1.msra.mxu0 %v1850
        %2602 = vmatprep.subr.mxu0 %v1869
        %2603 = vmatpush1.msra.mxu0 %v1868
        %2604 = vmatprep.subr.mxu0 %v1887
        %2605 = vmatpush1.msra.mxu0 %v1886
        %2606 = vmatprep.subr.mxu0 %v1905
        %2607 = vmatpush1.msra.mxu0 %v1904
        %2608 = vmatprep.subr.mxu0 %v1923
        %2609 = vmatpush1.msra.mxu0 %v1922
        %2610 = vmatprep.subr.mxu0 %v1941
        %2611 = vmatpush1.msra.mxu0 %v1940
        %2612 = vmatprep.subr.mxu0 %v1959
        %2613 = vmatpush1.msra.mxu0 %v1958
        %2614 = vmatprep.subr.mxu0 %v1977
        %2615 = vmatpush1.msra.mxu0 %v1976
        %2616 = vmatprep.subr.mxu0 %v1995
        %2617 = vmatpush1.msra.mxu0 %v1994
        %2618 = vmatprep.subr.mxu0 %v2013
        %2619 = vmatpush1.msra.mxu0 %v2012
        %2620 = vmatprep.subr.mxu0 %v2031
        %2621 = vmatpush1.msra.mxu0 %v2030
        %2622 = vmatprep.subr.mxu0 %v2049
        %2623 = vmatpush1.msra.mxu0 %v2048
        %2624 = vmatprep.mubr.f32.mxu0 %v2060
        %2625 = vmatmul.mubr.f32.gmra.mrb[0].mxu0 %v2059
        %v2626 = vpop.f32.mrb[0].mxu0
        %v2627 = vadd.f32 0.0, %v2626
        %v2628 = vpop.f32.mrb[0].mxu0
        %v2629 = vadd.f32 0.0, %v2628
        %2630 = vdwg.mxu0
        %2631 = vmatprep.subr.mxu0 %v1493
        %2632 = vmatpush1.msra.mxu0 %v1492
        %2633 = vmatprep.subr.mxu0 %v1511
        %2634 = vmatpush1.msra.mxu0 %v1510
        %2635 = vmatprep.subr.mxu0 %v1529
        %2636 = vmatpush1.msra.mxu0 %v1528
        %2637 = vmatprep.subr.mxu0 %v1547
        %2638 = vmatpush1.msra.mxu0 %v1546
        %2639 = vmatprep.subr.mxu0 %v1565
        %2640 = vmatpush1.msra.mxu0 %v1564
        %2641 = vmatprep.subr.mxu0 %v1583
        %2642 = vmatpush1.msra.mxu0 %v1582
        %2643 = vmatprep.subr.mxu0 %v1601
        %2644 = vmatpush1.msra.mxu0 %v1600
        %2645 = vmatprep.subr.mxu0 %v1619
        %2646 = vmatpush1.msra.mxu0 %v1618
        %2647 = vmatprep.subr.mxu0 %v1637
        %2648 = vmatpush1.msra.mxu0 %v1636
        %2649 = vmatprep.subr.mxu0 %v1655
        %2650 = vmatpush1.msra.mxu0 %v1654
        %2651 = vmatprep.subr.mxu0 %v1673
        %2652 = vmatpush1.msra.mxu0 %v1672
        %2653 = vmatprep.subr.mxu0 %v1691
        %2654 = vmatpush1.msra.mxu0 %v1690
        %2655 = vmatprep.subr.mxu0 %v1709
        %2656 = vmatpush1.msra.mxu0 %v1708
        %2657 = vmatprep.subr.mxu0 %v1727
        %2658 = vmatpush1.msra.mxu0 %v1726
        %2659 = vmatprep.subr.mxu0 %v1745
        %2660 = vmatpush1.msra.mxu0 %v1744
        %2661 = vmatprep.subr.mxu0 %v1763
        %2662 = vmatpush1.msra.mxu0 %v1762
        %2663 = vmatprep.subr.mxu0 %v1781
        %2664 = vmatpush1.msra.mxu0 %v1780
        %2665 = vmatprep.subr.mxu0 %v1799
        %2666 = vmatpush1.msra.mxu0 %v1798
        %2667 = vmatprep.subr.mxu0 %v1817
        %2668 = vmatpush1.msra.mxu0 %v1816
        %2669 = vmatprep.subr.mxu0 %v1835
        %2670 = vmatpush1.msra.mxu0 %v1834
        %2671 = vmatprep.subr.mxu0 %v1853
        %2672 = vmatpush1.msra.mxu0 %v1852
        %2673 = vmatprep.subr.mxu0 %v1871
        %2674 = vmatpush1.msra.mxu0 %v1870
        %2675 = vmatprep.subr.mxu0 %v1889
        %2676 = vmatpush1.msra.mxu0 %v1888
        %2677 = vmatprep.subr.mxu0 %v1907
        %2678 = vmatpush1.msra.mxu0 %v1906
        %2679 = vmatprep.subr.mxu0 %v1925
        %2680 = vmatpush1.msra.mxu0 %v1924
        %2681 = vmatprep.subr.mxu0 %v1943
        %2682 = vmatpush1.msra.mxu0 %v1942
        %2683 = vmatprep.subr.mxu0 %v1961
        %2684 = vmatpush1.msra.mxu0 %v1960
        %2685 = vmatprep.subr.mxu0 %v1979
        %2686 = vmatpush1.msra.mxu0 %v1978
        %2687 = vmatprep.subr.mxu0 %v1997
        %2688 = vmatpush1.msra.mxu0 %v1996
        %2689 = vmatprep.subr.mxu0 %v2015
        %2690 = vmatpush1.msra.mxu0 %v2014
        %2691 = vmatprep.subr.mxu0 %v2033
        %2692 = vmatpush1.msra.mxu0 %v2032
        %2693 = vmatprep.subr.mxu0 %v2051
        %2694 = vmatpush1.msra.mxu0 %v2050
        %2695 = vmatprep.mubr.f32.mxu0 %v2060
        %2696 = vmatmul.mubr.f32.gmra.mrb[0].mxu0 %v2059
        %v2697 = vpop.f32.mrb[0].mxu0
        %v2698 = vadd.f32 0.0, %v2697
        %v2699 = vpop.f32.mrb[0].mxu0
        %v2700 = vadd.f32 0.0, %v2699
        %2701 = vdwg.mxu0
        %v2702 = vmul.f32 %v903, %v2130
        %v2703 = vmul.f32 %v905, %v2132
        %v2704 = vmul.f32 %v974, %v2201
        %v2705 = vmul.f32 %v976, %v2203
        %v2706 = vmul.f32 %v1045, %v2272
        %v2707 = vmul.f32 %v1047, %v2274
        %v2708 = vmul.f32 %v1116, %v2343
        %v2709 = vmul.f32 %v1118, %v2345
        %v2710 = vmul.f32 %v1187, %v2414
        %v2711 = vmul.f32 %v1189, %v2416
        %v2712 = vmul.f32 %v1258, %v2485
        %v2713 = vmul.f32 %v1260, %v2487
        %v2714 = vmul.f32 %v1329, %v2556
        %v2715 = vmul.f32 %v1331, %v2558
        %v2716 = vmul.f32 %v1400, %v2627
        %v2717 = vmul.f32 %v1402, %v2629
        %v2718 = vmul.f32 %v1471, %v2698
        %v2719 = vmul.f32 %v1473, %v2700
        %v2738 = vcombine.low %v2702, %v2703
        %v2739 = vcombine.low %v2704, %v2705
        %v2741 = vunpack.c.l.s4 1983009808
        %v2742 = vunpack.c.0.s8 %v2741
        %v2743 = vlaneseq
        %v2744 = vshrl.u32 %v2743, 7
        %v2745 = vsub.s32 %v2742, %v2744
        %v2746 = vrot.slane %v2738, %v2745
        %v2748 = vunpack.c.l.s4 1983009808
        %v2749 = vunpack.c.0.s8 %v2748
        %v2750 = vlaneseq
        %v2751 = vshrl.u32 %v2750, 7
        %v2752 = vsub.s32 %v2749, %v2751
        %v2753 = vrot.slane %v2739, %v2752
        %v2754 = vcombine.low %v2746, %v2753
        %v2755 = vcombine.low %v2706, %v2707
        %v2756 = vcombine.low %v2708, %v2709
        %v2758 = vunpack.c.l.s4 1983009808
        %v2759 = vunpack.c.0.s8 %v2758
        %v2760 = vlaneseq
        %v2761 = vshrl.u32 %v2760, 7
        %v2762 = vsub.s32 %v2759, %v2761
        %v2763 = vrot.slane %v2755, %v2762
        %v2765 = vunpack.c.l.s4 1983009808
        %v2766 = vunpack.c.0.s8 %v2765
        %v2767 = vlaneseq
        %v2768 = vshrl.u32 %v2767, 7
        %v2769 = vsub.s32 %v2766, %v2768
        %v2770 = vrot.slane %v2756, %v2769
        %v2771 = vcombine.low %v2763, %v2770
        %v2772 = vcombine.low %v2710, %v2711
        %v2773 = vcombine.low %v2712, %v2713
        %v2775 = vunpack.c.l.s4 1983009808
        %v2776 = vunpack.c.0.s8 %v2775
        %v2777 = vlaneseq
        %v2778 = vshrl.u32 %v2777, 7
        %v2779 = vsub.s32 %v2776, %v2778
        %v2780 = vrot.slane %v2772, %v2779
        %v2782 = vunpack.c.l.s4 1983009808
        %v2783 = vunpack.c.0.s8 %v2782
        %v2784 = vlaneseq
        %v2785 = vshrl.u32 %v2784, 7
        %v2786 = vsub.s32 %v2783, %v2785
        %v2787 = vrot.slane %v2773, %v2786
        %v2788 = vcombine.low %v2780, %v2787
        %v2789 = vcombine.low %v2714, %v2715
        %v2790 = vcombine.low %v2716, %v2717
        %v2792 = vunpack.c.l.s4 1983009808
        %v2793 = vunpack.c.0.s8 %v2792
        %v2794 = vlaneseq
        %v2795 = vshrl.u32 %v2794, 7
        %v2796 = vsub.s32 %v2793, %v2795
        %v2797 = vrot.slane %v2789, %v2796
        %v2799 = vunpack.c.l.s4 1983009808
        %v2800 = vunpack.c.0.s8 %v2799
        %v2801 = vlaneseq
        %v2802 = vshrl.u32 %v2801, 7
        %v2803 = vsub.s32 %v2800, %v2802
        %v2804 = vrot.slane %v2790, %v2803
        %v2805 = vcombine.low %v2797, %v2804
        %v2806 = vcombine.low %v2718, %v2719
        %v2808 = vunpack.c.l.s4 1983009808
        %v2809 = vunpack.c.0.s8 %v2808
        %v2810 = vlaneseq
        %v2811 = vshrl.u32 %v2810, 7
        %v2812 = vsub.s32 %v2809, %v2811
        %v2813 = vrot.slane %v2806, %v2812
        %2819 = vst [vmem:[%s247] sm:$0xff] %v2754
        %2820 = vst [vmem:[%s247 + $0x8] sm:$0xff] %v2771
        %2821 = vst [vmem:[%s247 + $0x10] sm:$0xff] %v2788
        %2822 = vst [vmem:[%s247 + $0x18] sm:$0xff] %v2805
        %2823 = vst [vmem:[%s247 + $0x20] sm:$0xf] %v2813
        %p2824 = scmp.lt.s32.totalorder %s17, 3
        %s2825 = scalar_select %p2824, %s17, 3
        %s2826 = smul.addr %s2825, 18
        %s2827 = smul.addr %s2826, 2
        %s2828 = scalar_lea.vmem %s4, %s2827
        // Predicated region
        $region45: #{appearance_composability.1} parent=35 // pred_check
          %p2829 = pneg %p129
        $region46: #{appearance_composability.1} parent=35 // pred_check_branch
          %2831 = sbr.rel (%p2829) target = $region48
        $region47: #{appearance_composability.1} parent=35 // pred_region
          _
        $region48: #{appearance_composability.1} parent=35 // pred_fallthru
          _
      $region36: #{appearance_composability.1} parent=5 // pred_fallthru
        _
      %p2832 = scmp.le.s32.totalorder 2, %s12
      // Predicated region
      $region49: #{appearance_composability.1} parent=5 // pred_check
        %p2833 = pneg %p2832
      $region50: #{appearance_composability.1} parent=5 // pred_check_branch
        %2835 = sbr.rel (%p2833) target = $region52
      $region51: #{appearance_composability.1} parent=5 // pred_region
        %s2836 = ssub.s32 %s12, 2
        // Predicated region
        $region53: #{appearance_composability.1} parent=51 // pred_check
          %p2837 = pneg %p135
        $region54: #{appearance_composability.1} parent=51 // pred_check_branch
          %2839 = sbr.rel (%p2837) target = $region56
        $region55: #{appearance_composability.1} parent=51 // pred_region
          %p2840 = scmp.lt.s32.totalorder %s18, 3
          %s2841 = scalar_select %p2840, %s18, 3
          %s2842 = smul.addr %s2841, 18
          %s2843 = smul.addr %s2842, 2
          %s2844 = scalar_lea.vmem %s4, %s2843
        $region56: #{appearance_composability.1} parent=51 // pred_fallthru
          _
      $region52: #{appearance_composability.1} parent=5 // pred_fallthru
        _
    $region6: #{appearance_composability.1} parent=1 // loop_footer
      %s16 = sadd.s32 1, %s12
    $region7: #{appearance_composability.1} parent=1 // loop_footer_branch
      %11 = sbr.rel target = $region3
    $region8: #{appearance_composability.1} parent=1 // loop_exit
      _
    %2845 = vsyncpa [#allocation3], 1
    %s2846 = scalar_lea.sflag [#allocation3], 1
    %2847 = vsyncpa %s2846, 1
    %2848 = vsyncpa [#allocation5], 1

</llo_original>
